<compile_context>
chip_gen: v7x
topology: tpu7x:2x2x1
jax: 0.10.0
libtpu: 0.0.40
codegen_flags: <defaults>
</compile_context>

<pallas_src>
import functools

import jax
import jax.numpy as jnp
from jax import lax
from jax.experimental import pallas as pl
from jax.experimental.pallas import tpu as pltpu


_LANE = 128   # lane width: pad all channel dims to multiples of this
_LPAD = 8     # left spatial halo offset in the scratch (8 keeps interior stores aligned)


def _round_up(x, m):
    return (x + m - 1) // m * m


# ------------------------------ fused kernel --------------------------------


def _fused_block_kernel(x_ref, w1_ref, s1_ref, b1_ref,
                        w2_ref, s2_ref, b2_ref,
                        w3_ref, s3_ref, b3_ref,
                        *rest,
                        stride, H, W, Ho, Wo, lpad, use_shortcut):
    """conv1x1+BN+ReLU6 -> conv3x3+BN+ReLU6 -> conv1x1+BN (+ conv1x1+BN shortcut)."""
    if use_shortcut:
        wsc_ref, ssc_ref, bsc_ref, o_ref, h1p_ref = rest
    else:
        o_ref, h1p_ref = rest

    cdt = jnp.bfloat16                      # MXU operand dtype; accumulate in f32
    Cin_p = x_ref.shape[-1]
    Cm_p = w1_ref.shape[-1]
    Cout_p = w3_ref.shape[-1]

    # Zero the spatial-halo scratch every step (cheap, VMEM-only; safe under
    # megacore "parallel" partitioning since no cross-iteration state is assumed).
    h1p_ref[...] = jnp.zeros_like(h1p_ref)

    # ---- stage 1: 1x1 expand + BN + ReLU6  (MXU: (H*W, Cin_p) @ (Cin_p, Cm_p)) ----
    x2d = x_ref[0].reshape(H * W, Cin_p)                          # bf16
    h1 = jnp.dot(x2d, w1_ref[...], preferred_element_type=jnp.float32)
    h1 = jnp.clip(h1 * s1_ref[...] + b1_ref[...], 0.0, 6.0)       # f32 epilogue

    # Interior write is tile-aligned: rows at leading offset 1, cols at sublane
    # offset `lpad`(=8); the never-written border rows/cols stay zero (the halo).
    h1p_ref[pl.ds(1, H), pl.ds(lpad, W), :] = h1.reshape(H, W, Cm_p)

    # ---- stage 2: 3x3 conv + BN + ReLU6 as 3 matmuls with K = 3*Cm_p --------------
    acc = jnp.zeros((Ho * Wo, Cm_p), jnp.float32)
    for ky in range(3):
        if stride == 1:
            rows = h1p_ref[pl.ds(ky, Ho), :, :]                   # (Ho, Wp_s, Cm_p)
            taps = [rows[:, lpad - 1 + kx: lpad - 1 + kx + Wo, :]
                    for kx in range(3)]
        else:
            # Strided row fetch straight from the ref (leading dim = addressing only).
            rows = h1p_ref[pl.ds(ky, Ho, stride), :, :]
            # TODO(synk): move the column stride into a strided ref read / DMA as well.
            taps = [lax.slice(rows,
                              (0, lpad - 1 + kx, 0),
                              (Ho, lpad - 1 + kx + (Wo - 1) * stride + 1, Cm_p),
                              (1, stride, 1))
                    for kx in range(3)]
        # Lane-axis concat of the kx taps -> K = 3*Cm_p per matmul push.
        patch = jnp.concatenate(taps, axis=-1)                    # (Ho, Wo, 3*Cm_p)
        patch = patch.reshape(Ho * Wo, 3 * Cm_p).astype(cdt)
        acc = acc + jnp.dot(patch, w2_ref[ky],
                            preferred_element_type=jnp.float32)

    h2 = jnp.clip(acc * s2_ref[...] + b2_ref[...], 0.0, 6.0)      # f32 epilogue

    # ---- stage 3: 1x1 project + BN, fused with the 1x1+BN shortcut + add ----------
    out = jnp.dot(h2.astype(cdt), w3_ref[...], preferred_element_type=jnp.float32)
    out = out * s3_ref[...] + b3_ref[...]
    if use_shortcut:
        sc = jnp.dot(x2d, wsc_ref[...], preferred_element_type=jnp.float32)
        out = out + sc * ssc_ref[...] + bsc_ref[...]

    o_ref[0] = out.reshape(Ho, Wo, Cout_p).astype(o_ref.dtype)


# ------------------------------ module wrapper -------------------------------


@functools.partial(jax.jit, static_argnames=("stride", "out_channels"))
def inverted_residual_pallas(x_nchw, params, *, stride, out_channels):
    """Forward pass of InvertedResidual. Input/output are NCHW (f32) like PyTorch."""
    N, Cin, H, W = x_nchw.shape
    Cin_p = params["w1"].shape[0]
    Cm_p = params["w1"].shape[1]
    Cout_p = params["w3"].shape[1]

    # Layout change + channel pad + bf16 cast, once at the block boundary.
    x = jnp.transpose(x_nchw, (0, 2, 3, 1))
    x = jnp.pad(x, ((0, 0), (0, 0), (0, 0), (0, Cin_p - Cin))).astype(jnp.bfloat16)

    Ho = (H + 2 - 3) // stride + 1
    Wo = (W + 2 - 3) // stride + 1
    use_shortcut = (stride == 1)

    lpad = _LPAD
    wp_s = lpad + _round_up(W + 1, 8)      # scratch width: halo cols at lpad-1 / lpad+W

    kernel = functools.partial(
        _fused_block_kernel, stride=stride, H=H, W=W, Ho=Ho, Wo=Wo,
        lpad=lpad, use_shortcut=use_shortcut)

    def pin(shape):
        # Whole-array operand, constant index_map -> fetched once, reused per step.
        nd = len(shape)
        return pl.BlockSpec(shape, lambda b, _nd=nd: (0,) * _nd)

    in_specs = [
        pl.BlockSpec((1, H, W, Cin_p), lambda b: (b, 0, 0, 0)),
        pin((Cin_p, Cm_p)), pin((1, Cm_p)), pin((1, Cm_p)),
        pin((3, 3 * Cm_p, Cm_p)), pin((1, Cm_p)), pin((1, Cm_p)),
        pin((Cm_p, Cout_p)), pin((1, Cout_p)), pin((1, Cout_p)),
    ]
    args = [x, params["w1"], params["s1"], params["b1"],
            params["w2"], params["s2"], params["b2"],
            params["w3"], params["s3"], params["b3"]]
    if use_shortcut:
        in_specs += [pin((Cin_p, Cout_p)), pin((1, Cout_p)), pin((1, Cout_p))]
        args += [params["wsc"], params["ssc"], params["bsc"]]

    out = pl.pallas_call(
        kernel,
        out_shape=jax.ShapeDtypeStruct((N, Ho, Wo, Cout_p), jnp.float32),
        grid=(N,),
        in_specs=in_specs,
        out_specs=pl.BlockSpec((1, Ho, Wo, Cout_p), lambda b: (b, 0, 0, 0)),
        scratch_shapes=[pltpu.VMEM((H + 2, wp_s, Cm_p), jnp.float32)],
        compiler_params=pltpu.CompilerParams(
            dimension_semantics=("parallel",),
            vmem_limit_bytes=32 * 1024 * 1024),
    )(*args)

    out = out[..., :out_channels]                 # drop lane padding
    return jnp.transpose(out, (0, 3, 1, 2))       # back to NCHW


# ------------------------------ parameter init -------------------------------


def _conv_bn_params(key, ci, co, ksize, eps=1e-5):
    kw, kb, kg, kbe, km, kv = jax.random.split(key, 6)
    if ksize == 1:
        w = 0.1 * jax.random.normal(kw, (ci, co), jnp.float32)
    else:
        w = 0.1 * jax.random.normal(kw, (ksize, ksize, ci, co), jnp.float32)
    conv_b = 0.1 * jax.random.normal(kb, (co,), jnp.float32)
    gamma = 1.0 + 0.1 * jax.random.normal(kg, (co,), jnp.float32)
    beta = 0.1 * jax.random.normal(kbe, (co,), jnp.float32)
    mean = 0.1 * jax.random.normal(km, (co,), jnp.float32)
    var = 0.5 + 0.1 * jnp.abs(jax.random.normal(kv, (co,), jnp.float32))
    scale = gamma / jnp.sqrt(var + eps)
    bias = (conv_b - mean) * scale + beta
    return w, scale, bias


def init_params(key, cin, cout, expansion=6):
    cm = cin * expansion
    k1, k2, k3, k4 = jax.random.split(key, 4)
    w1, s1, b1 = _conv_bn_params(k1, cin, cm, 1)
    w2, s2, b2 = _conv_bn_params(k2, cm, cm, 3)
    w3, s3, b3 = _conv_bn_params(k3, cm, cout, 1)
    wsc, ssc, bsc = _conv_bn_params(k4, cin, cout, 1)
    return dict(w1=w1, s1=s1, b1=b1, w2=w2, s2=s2, b2=b2,
                w3=w3, s3=s3, b3=b3, wsc=wsc, ssc=ssc, bsc=bsc)


def prepare_params(p):
    """Pad channels to multiples of 128, fold layouts, cast weights to bf16 (once)."""
    Cin, Cm = p["w1"].shape
    Cout = p["w3"].shape[1]
    Cin_p = _round_up(Cin, _LANE)
    Cm_p = _round_up(Cm, _LANE)
    Cout_p = _round_up(Cout, _LANE)

    def pad2(w, r, c):
        return jnp.pad(w, ((0, r - w.shape[0]), (0, c - w.shape[1])))

    def padv(v, c):
        return jnp.pad(v, (0, c - v.shape[0])).reshape(1, c).astype(jnp.float32)

    # (ky, kx, cin, cout) -> (ky, kx*cin, cout) to match the in-kernel K=3*Cm patches.
    w2 = jnp.pad(p["w2"], ((0, 0), (0, 0), (0, Cm_p - Cm), (0, Cm_p - Cm)))
    w2 = w2.reshape(3, 3 * Cm_p, Cm_p)

    return dict(
        w1=pad2(p["w1"], Cin_p, Cm_p).astype(jnp.bfloat16),
        s1=padv(p["s1"], Cm_p), b1=padv(p["b1"], Cm_p),
        w2=w2.astype(jnp.bfloat16),
        s2=padv(p["s2"], Cm_p), b2=padv(p["b2"], Cm_p),
        w3=pad2(p["w3"], Cm_p, Cout_p).astype(jnp.bfloat16),
        s3=padv(p["s3"], Cout_p), b3=padv(p["b3"], Cout_p),
        wsc=pad2(p["wsc"], Cin_p, Cout_p).astype(jnp.bfloat16),
        ssc=padv(p["ssc"], Cout_p), bsc=padv(p["bsc"], Cout_p),
    )


# ------------------------------ pure-JAX reference ---------------------------


def _ref_forward(x_nchw, p, stride):
    x = jnp.transpose(x_nchw, (0, 2, 3, 1)).astype(jnp.float32)
    dn = ("NHWC", "HWIO", "NHWC")

    def pw(z, w, s, b):
        y = lax.conv_general_dilated(z, w.reshape(1, 1, *w.shape), (1, 1),
                                     "VALID", dimension_numbers=dn)
        return y * s + b

    h = jnp.clip(pw(x, p["w1"], p["s1"], p["b1"]), 0.0, 6.0)
    h = lax.conv_general_dilated(h, p["w2"], (stride, stride),
                                 [(1, 1), (1, 1)], dimension_numbers=dn)
    h = jnp.clip(h * p["s2"] + p["b2"], 0.0, 6.0)
    out = pw(h, p["w3"], p["s3"], p["b3"])
    if stride == 1:
        out = out + pw(x, p["wsc"], p["ssc"], p["bsc"])
    return jnp.transpose(out, (0, 3, 1, 2))


# ----------------------------------- main ------------------------------------


if __name__ == "__main__":
    key = jax.random.PRNGKey(0)
    kx, kp = jax.random.split(key)

    N, Cin, H, W = 2, 4, 16, 16
    Cout, stride = 8, 1                 # stride=1 exercises the fused shortcut path

    x = jax.random.normal(kx, (N, Cin, H, W), jnp.float32)
    raw = init_params(kp, Cin, Cout, expansion=6)
    params = prepare_params(raw)        # one-time model-boundary padding / bf16 cast

    out = inverted_residual_pallas(x, params, stride=stride, out_channels=Cout)
    out = jax.block_until_ready(out)
    assert out.shape == (N, Cout, H, W), out.shape

    ref = _ref_forward(x, raw, stride)
    max_err = float(jnp.max(jnp.abs(out - ref)))
    # bf16 MXU operands (f32 accumulation + f32 BN/ReLU6 epilogues) vs. an f32
    # reference -> tolerance reflects bf16 rounding of activations/weights.
    if not jnp.allclose(out, ref, atol=5e-2, rtol=5e-2):
        raise AssertionError(f"Pallas output mismatch, max abs err = {max_err}")

    print("KERNEL_OK")
</pallas_src>

<mosaic_0001>
module attributes {stable_mosaic.version = 11 : i64} {
  func.func @_fused_block_kernel(%arg0: i32, %arg1: memref<1x16x16x128xbf16, #tpu.memory_space<vmem>>, %arg2: memref<128x128xbf16, #tpu.memory_space<vmem>>, %arg3: memref<1x128xf32, #tpu.memory_space<vmem>>, %arg4: memref<1x128xf32, #tpu.memory_space<vmem>>, %arg5: memref<3x384x128xbf16, #tpu.memory_space<vmem>>, %arg6: memref<1x128xf32, #tpu.memory_space<vmem>>, %arg7: memref<1x128xf32, #tpu.memory_space<vmem>>, %arg8: memref<128x128xbf16, #tpu.memory_space<vmem>>, %arg9: memref<1x128xf32, #tpu.memory_space<vmem>>, %arg10: memref<1x128xf32, #tpu.memory_space<vmem>>, %arg11: memref<128x128xbf16, #tpu.memory_space<vmem>>, %arg12: memref<1x128xf32, #tpu.memory_space<vmem>>, %arg13: memref<1x128xf32, #tpu.memory_space<vmem>>, %arg14: memref<1x16x16x128xf32, #tpu.memory_space<vmem>>, %arg15: memref<18x32x128xf32, #tpu.memory_space<vmem>>) attributes {dimension_semantics = [#tpu.dimension_semantics<parallel>], iteration_bounds = array<i64: 2>, scalar_prefetch = 0 : i64, scratch_operands = 1 : i64, tpu.core_type = #tpu.core_type<tc>, window_params = [{transform_indices = @transform_0, window_bounds = array<i64: 1, 16, 16, 128>}, {pipeline_mode = #tpu.pipeline_mode<synchronous>, transform_indices = @transform_1, window_bounds = array<i64: 128, 128>}, {pipeline_mode = #tpu.pipeline_mode<synchronous>, transform_indices = @transform_2, window_bounds = array<i64: 1, 128>}, {pipeline_mode = #tpu.pipeline_mode<synchronous>, transform_indices = @transform_3, window_bounds = array<i64: 1, 128>}, {pipeline_mode = #tpu.pipeline_mode<synchronous>, transform_indices = @transform_4, window_bounds = array<i64: 3, 384, 128>}, {pipeline_mode = #tpu.pipeline_mode<synchronous>, transform_indices = @transform_5, window_bounds = array<i64: 1, 128>}, {pipeline_mode = #tpu.pipeline_mode<synchronous>, transform_indices = @transform_6, window_bounds = array<i64: 1, 128>}, {pipeline_mode = #tpu.pipeline_mode<synchronous>, transform_indices = @transform_7, window_bounds = array<i64: 128, 128>}, {pipeline_mode = #tpu.pipeline_mode<synchronous>, transform_indices = @transform_8, window_bounds = array<i64: 1, 128>}, {pipeline_mode = #tpu.pipeline_mode<synchronous>, transform_indices = @transform_9, window_bounds = array<i64: 1, 128>}, {pipeline_mode = #tpu.pipeline_mode<synchronous>, transform_indices = @transform_10, window_bounds = array<i64: 128, 128>}, {pipeline_mode = #tpu.pipeline_mode<synchronous>, transform_indices = @transform_11, window_bounds = array<i64: 1, 128>}, {pipeline_mode = #tpu.pipeline_mode<synchronous>, transform_indices = @transform_12, window_bounds = array<i64: 1, 128>}, {transform_indices = @transform_13, window_bounds = array<i64: 1, 16, 16, 128>}]} {
    %cst = arith.constant 0.000000e+00 : f32
    %0 = vector.broadcast %cst : f32 to vector<18x32x128xf32>
    %c0 = arith.constant 0 : index
    %c0_0 = arith.constant 0 : index
    %c0_1 = arith.constant 0 : index
    %1 = vector.load %arg15[%c0, %c0_0, %c0_1] : memref<18x32x128xf32, #tpu.memory_space<vmem>>, vector<18x32x128xf32>
    tpu.vector_store %arg15[%c0, %c0_0, %c0_1], %0 {strides = array<i32>} : memref<18x32x128xf32, #tpu.memory_space<vmem>>, vector<18x32x128xf32>,
    %c0_2 = arith.constant 0 : index
    %c0_3 = arith.constant 0 : index
    %c0_4 = arith.constant 0 : index
    %c0_5 = arith.constant 0 : index
    %2 = vector.load %arg1[%c0_2, %c0_3, %c0_4, %c0_5] : memref<1x16x16x128xbf16, #tpu.memory_space<vmem>>, vector<1x16x16x128xbf16>
    %3 = vector.shape_cast %2 : vector<1x16x16x128xbf16> to vector<16x16x128xbf16>
    %4 = vector.shape_cast %3 : vector<16x16x128xbf16> to vector<256x128xbf16>
    %c0_6 = arith.constant 0 : index
    %c0_7 = arith.constant 0 : index
    %5 = vector.load %arg2[%c0_6, %c0_7] : memref<128x128xbf16, #tpu.memory_space<vmem>>, vector<128x128xbf16>
    %cst_8 = arith.constant dense<0.000000e+00> : vector<256x128xf32>
    %6 = tpu.matmul %4, %5, %cst_8 {dimension_numbers = #tpu.dot_dimension_numbers<[1], [0], [0], [1], [0, 0, 1, 1], [], []>} : vector<256x128xbf16>, vector<128x128xbf16>, vector<256x128xf32> -> vector<256x128xf32>
    %c0_9 = arith.constant 0 : index
    %c0_10 = arith.constant 0 : index
    %7 = vector.load %arg3[%c0_9, %c0_10] : memref<1x128xf32, #tpu.memory_space<vmem>>, vector<1x128xf32>
    %8 = vector.broadcast %7 : vector<1x128xf32> to vector<256x128xf32>
    %9 = arith.mulf %6, %8 : vector<256x128xf32>
    %c0_11 = arith.constant 0 : index
    %c0_12 = arith.constant 0 : index
    %10 = vector.load %arg4[%c0_11, %c0_12] : memref<1x128xf32, #tpu.memory_space<vmem>>, vector<1x128xf32>
    %11 = vector.broadcast %10 : vector<1x128xf32> to vector<256x128xf32>
    %12 = arith.addf %9, %11 : vector<256x128xf32>
    %cst_13 = arith.constant 0.000000e+00 : f32
    %cst_14 = arith.constant 6.000000e+00 : f32
    %13 = vector.broadcast %cst_13 : f32 to vector<256x128xf32>
    %14 = arith.maximumf %13, %12 : vector<256x128xf32>
    %15 = vector.broadcast %cst_14 : f32 to vector<256x128xf32>
    %16 = arith.minimumf %15, %14 : vector<256x128xf32>
    %17 = vector.shape_cast %16 : vector<256x128xf32> to vector<16x16x128xf32>
    %c1 = arith.constant 1 : index
    %c8 = arith.constant 8 : index
    %c0_15 = arith.constant 0 : index
    %18 = vector.load %arg15[%c1, %c8, %c0_15] : memref<18x32x128xf32, #tpu.memory_space<vmem>>, vector<16x16x128xf32>
    tpu.vector_store %arg15[%c1, %c8, %c0_15], %17 {strides = array<i32>} : memref<18x32x128xf32, #tpu.memory_space<vmem>>, vector<16x16x128xf32>,
    %cst_16 = arith.constant 0.000000e+00 : f32
    %19 = vector.broadcast %cst_16 : f32 to vector<256x128xf32>
    %c0_17 = arith.constant 0 : index
    %c0_18 = arith.constant 0 : index
    %c0_19 = arith.constant 0 : index
    %20 = vector.load %arg15[%c0_17, %c0_18, %c0_19] : memref<18x32x128xf32, #tpu.memory_space<vmem>>, vector<16x32x128xf32>
    %21 = vector.extract_strided_slice %20 {offsets = [0, 7, 0], sizes = [16, 16, 128], strides = [1, 1, 1]} : vector<16x32x128xf32> to vector<16x16x128xf32>
    %22 = vector.extract_strided_slice %20 {offsets = [0, 8, 0], sizes = [16, 16, 128], strides = [1, 1, 1]} : vector<16x32x128xf32> to vector<16x16x128xf32>
    %23 = vector.extract_strided_slice %20 {offsets = [0, 9, 0], sizes = [16, 16, 128], strides = [1, 1, 1]} : vector<16x32x128xf32> to vector<16x16x128xf32>
    %24 = tpu.concatenate %21, %22, %23 in 2 : vector<16x16x128xf32>, vector<16x16x128xf32>, vector<16x16x128xf32> -> vector<16x16x384xf32>
    %25 = vector.shape_cast %24 : vector<16x16x384xf32> to vector<256x384xf32>
    %26 = arith.truncf %25 : vector<256x384xf32> to vector<256x384xbf16>
    %c0_20 = arith.constant 0 : index
    %c0_21 = arith.constant 0 : index
    %c0_22 = arith.constant 0 : index
    %27 = vector.load %arg5[%c0_20, %c0_21, %c0_22] : memref<3x384x128xbf16, #tpu.memory_space<vmem>>, vector<1x384x128xbf16>
    %28 = vector.shape_cast %27 : vector<1x384x128xbf16> to vector<384x128xbf16>
    %cst_23 = arith.constant dense<0.000000e+00> : vector<256x128xf32>
    %29 = tpu.matmul %26, %28, %cst_23 {dimension_numbers = #tpu.dot_dimension_numbers<[1], [0], [0], [1], [0, 0, 1, 1], [], []>} : vector<256x384xbf16>, vector<384x128xbf16>, vector<256x128xf32> -> vector<256x128xf32>
    %30 = arith.addf %19, %29 : vector<256x128xf32>
    %c1_24 = arith.constant 1 : index
    %c0_25 = arith.constant 0 : index
    %c0_26 = arith.constant 0 : index
    %31 = vector.load %arg15[%c1_24, %c0_25, %c0_26] : memref<18x32x128xf32, #tpu.memory_space<vmem>>, vector<16x32x128xf32>
    %32 = vector.extract_strided_slice %31 {offsets = [0, 7, 0], sizes = [16, 16, 128], strides = [1, 1, 1]} : vector<16x32x128xf32> to vector<16x16x128xf32>
    %33 = vector.extract_strided_slice %31 {offsets = [0, 8, 0], sizes = [16, 16, 128], strides = [1, 1, 1]} : vector<16x32x128xf32> to vector<16x16x128xf32>
    %34 = vector.extract_strided_slice %31 {offsets = [0, 9, 0], sizes = [16, 16, 128], strides = [1, 1, 1]} : vector<16x32x128xf32> to vector<16x16x128xf32>
    %35 = tpu.concatenate %32, %33, %34 in 2 : vector<16x16x128xf32>, vector<16x16x128xf32>, vector<16x16x128xf32> -> vector<16x16x384xf32>
    %36 = vector.shape_cast %35 : vector<16x16x384xf32> to vector<256x384xf32>
    %37 = arith.truncf %36 : vector<256x384xf32> to vector<256x384xbf16>
    %c1_27 = arith.constant 1 : index
    %c0_28 = arith.constant 0 : index
    %c0_29 = arith.constant 0 : index
    %38 = vector.load %arg5[%c1_27, %c0_28, %c0_29] : memref<3x384x128xbf16, #tpu.memory_space<vmem>>, vector<1x384x128xbf16>
    %39 = vector.shape_cast %38 : vector<1x384x128xbf16> to vector<384x128xbf16>
    %cst_30 = arith.constant dense<0.000000e+00> : vector<256x128xf32>
    %40 = tpu.matmul %37, %39, %cst_30 {dimension_numbers = #tpu.dot_dimension_numbers<[1], [0], [0], [1], [0, 0, 1, 1], [], []>} : vector<256x384xbf16>, vector<384x128xbf16>, vector<256x128xf32> -> vector<256x128xf32>
    %41 = arith.addf %30, %40 : vector<256x128xf32>
    %c2 = arith.constant 2 : index
    %c0_31 = arith.constant 0 : index
    %c0_32 = arith.constant 0 : index
    %42 = vector.load %arg15[%c2, %c0_31, %c0_32] : memref<18x32x128xf32, #tpu.memory_space<vmem>>, vector<16x32x128xf32>
    %43 = vector.extract_strided_slice %42 {offsets = [0, 7, 0], sizes = [16, 16, 128], strides = [1, 1, 1]} : vector<16x32x128xf32> to vector<16x16x128xf32>
    %44 = vector.extract_strided_slice %42 {offsets = [0, 8, 0], sizes = [16, 16, 128], strides = [1, 1, 1]} : vector<16x32x128xf32> to vector<16x16x128xf32>
    %45 = vector.extract_strided_slice %42 {offsets = [0, 9, 0], sizes = [16, 16, 128], strides = [1, 1, 1]} : vector<16x32x128xf32> to vector<16x16x128xf32>
    %46 = tpu.concatenate %43, %44, %45 in 2 : vector<16x16x128xf32>, vector<16x16x128xf32>, vector<16x16x128xf32> -> vector<16x16x384xf32>
    %47 = vector.shape_cast %46 : vector<16x16x384xf32> to vector<256x384xf32>
    %48 = arith.truncf %47 : vector<256x384xf32> to vector<256x384xbf16>
    %c2_33 = arith.constant 2 : index
    %c0_34 = arith.constant 0 : index
    %c0_35 = arith.constant 0 : index
    %49 = vector.load %arg5[%c2_33, %c0_34, %c0_35] : memref<3x384x128xbf16, #tpu.memory_space<vmem>>, vector<1x384x128xbf16>
    %50 = vector.shape_cast %49 : vector<1x384x128xbf16> to vector<384x128xbf16>
    %cst_36 = arith.constant dense<0.000000e+00> : vector<256x128xf32>
    %51 = tpu.matmul %48, %50, %cst_36 {dimension_numbers = #tpu.dot_dimension_numbers<[1], [0], [0], [1], [0, 0, 1, 1], [], []>} : vector<256x384xbf16>, vector<384x128xbf16>, vector<256x128xf32> -> vector<256x128xf32>
    %52 = arith.addf %41, %51 : vector<256x128xf32>
    %c0_37 = arith.constant 0 : index
    %c0_38 = arith.constant 0 : index
    %53 = vector.load %arg6[%c0_37, %c0_38] : memref<1x128xf32, #tpu.memory_space<vmem>>, vector<1x128xf32>
    %54 = vector.broadcast %53 : vector<1x128xf32> to vector<256x128xf32>
    %55 = arith.mulf %52, %54 : vector<256x128xf32>
    %c0_39 = arith.constant 0 : index
    %c0_40 = arith.constant 0 : index
    %56 = vector.load %arg7[%c0_39, %c0_40] : memref<1x128xf32, #tpu.memory_space<vmem>>, vector<1x128xf32>
    %57 = vector.broadcast %56 : vector<1x128xf32> to vector<256x128xf32>
    %58 = arith.addf %55, %57 : vector<256x128xf32>
    %cst_41 = arith.constant 0.000000e+00 : f32
    %cst_42 = arith.constant 6.000000e+00 : f32
    %59 = vector.broadcast %cst_41 : f32 to vector<256x128xf32>
    %60 = arith.maximumf %59, %58 : vector<256x128xf32>
    %61 = vector.broadcast %cst_42 : f32 to vector<256x128xf32>
    %62 = arith.minimumf %61, %60 : vector<256x128xf32>
    %63 = arith.truncf %62 : vector<256x128xf32> to vector<256x128xbf16>
    %c0_43 = arith.constant 0 : index
    %c0_44 = arith.constant 0 : index
    %64 = vector.load %arg8[%c0_43, %c0_44] : memref<128x128xbf16, #tpu.memory_space<vmem>>, vector<128x128xbf16>
    %cst_45 = arith.constant dense<0.000000e+00> : vector<256x128xf32>
    %65 = tpu.matmul %63, %64, %cst_45 {dimension_numbers = #tpu.dot_dimension_numbers<[1], [0], [0], [1], [0, 0, 1, 1], [], []>} : vector<256x128xbf16>, vector<128x128xbf16>, vector<256x128xf32> -> vector<256x128xf32>
    %c0_46 = arith.constant 0 : index
    %c0_47 = arith.constant 0 : index
    %66 = vector.load %arg9[%c0_46, %c0_47] : memref<1x128xf32, #tpu.memory_space<vmem>>, vector<1x128xf32>
    %67 = vector.broadcast %66 : vector<1x128xf32> to vector<256x128xf32>
    %68 = arith.mulf %65, %67 : vector<256x128xf32>
    %c0_48 = arith.constant 0 : index
    %c0_49 = arith.constant 0 : index
    %69 = vector.load %arg10[%c0_48, %c0_49] : memref<1x128xf32, #tpu.memory_space<vmem>>, vector<1x128xf32>
    %70 = vector.broadcast %69 : vector<1x128xf32> to vector<256x128xf32>
    %71 = arith.addf %68, %70 : vector<256x128xf32>
    %c0_50 = arith.constant 0 : index
    %c0_51 = arith.constant 0 : index
    %72 = vector.load %arg11[%c0_50, %c0_51] : memref<128x128xbf16, #tpu.memory_space<vmem>>, vector<128x128xbf16>
    %cst_52 = arith.constant dense<0.000000e+00> : vector<256x128xf32>
    %73 = tpu.matmul %4, %72, %cst_52 {dimension_numbers = #tpu.dot_dimension_numbers<[1], [0], [0], [1], [0, 0, 1, 1], [], []>} : vector<256x128xbf16>, vector<128x128xbf16>, vector<256x128xf32> -> vector<256x128xf32>
    %c0_53 = arith.constant 0 : index
    %c0_54 = arith.constant 0 : index
    %74 = vector.load %arg12[%c0_53, %c0_54] : memref<1x128xf32, #tpu.memory_space<vmem>>, vector<1x128xf32>
    %75 = vector.broadcast %74 : vector<1x128xf32> to vector<256x128xf32>
    %76 = arith.mulf %73, %75 : vector<256x128xf32>
    %77 = arith.addf %71, %76 : vector<256x128xf32>
    %c0_55 = arith.constant 0 : index
    %c0_56 = arith.constant 0 : index
    %78 = vector.load %arg13[%c0_55, %c0_56] : memref<1x128xf32, #tpu.memory_space<vmem>>, vector<1x128xf32>
    %79 = vector.broadcast %78 : vector<1x128xf32> to vector<256x128xf32>
    %80 = arith.addf %77, %79 : vector<256x128xf32>
    %81 = vector.shape_cast %80 : vector<256x128xf32> to vector<16x16x128xf32>
    %c0_57 = arith.constant 0 : index
    %c0_58 = arith.constant 0 : index
    %c0_59 = arith.constant 0 : index
    %c0_60 = arith.constant 0 : index
    %82 = vector.load %arg14[%c0_57, %c0_58, %c0_59, %c0_60] : memref<1x16x16x128xf32, #tpu.memory_space<vmem>>, vector<1x16x16x128xf32>
    %83 = vector.shape_cast %82 : vector<1x16x16x128xf32> to vector<16x16x128xf32>
    %84 = vector.shape_cast %81 : vector<16x16x128xf32> to vector<1x16x16x128xf32>
    tpu.vector_store %arg14[%c0_57, %c0_58, %c0_59, %c0_60], %84 {strides = array<i32>} : memref<1x16x16x128xf32, #tpu.memory_space<vmem>>, vector<1x16x16x128xf32>,
    return
  }
  func.func @transform_0(%arg0: i32) -> (i32, i32, i32, i32) {
    %c0_i32 = arith.constant 0 : i32
    %c0_i32_0 = arith.constant 0 : i32
    %c0_i32_1 = arith.constant 0 : i32
    %c0_i32_2 = arith.constant 0 : i32
    return %arg0, %c0_i32, %c0_i32_0, %c0_i32_1 : i32, i32, i32, i32
  }
  func.func @transform_1(%arg0: i32) -> (i32, i32) {
    %c0_i32 = arith.constant 0 : i32
    %c0_i32_0 = arith.constant 0 : i32
    %c0_i32_1 = arith.constant 0 : i32
    return %c0_i32, %c0_i32_0 : i32, i32
  }
  func.func @transform_2(%arg0: i32) -> (i32, i32) {
    %c0_i32 = arith.constant 0 : i32
    %c0_i32_0 = arith.constant 0 : i32
    %c0_i32_1 = arith.constant 0 : i32
    return %c0_i32, %c0_i32_0 : i32, i32
  }
  func.func @transform_3(%arg0: i32) -> (i32, i32) {
    %c0_i32 = arith.constant 0 : i32
    %c0_i32_0 = arith.constant 0 : i32
    %c0_i32_1 = arith.constant 0 : i32
    return %c0_i32, %c0_i32_0 : i32, i32
  }
  func.func @transform_4(%arg0: i32) -> (i32, i32, i32) {
    %c0_i32 = arith.constant 0 : i32
    %c0_i32_0 = arith.constant 0 : i32
    %c0_i32_1 = arith.constant 0 : i32
    %c0_i32_2 = arith.constant 0 : i32
    return %c0_i32, %c0_i32_0, %c0_i32_1 : i32, i32, i32
  }
  func.func @transform_5(%arg0: i32) -> (i32, i32) {
    %c0_i32 = arith.constant 0 : i32
    %c0_i32_0 = arith.constant 0 : i32
    %c0_i32_1 = arith.constant 0 : i32
    return %c0_i32, %c0_i32_0 : i32, i32
  }
  func.func @transform_6(%arg0: i32) -> (i32, i32) {
    %c0_i32 = arith.constant 0 : i32
    %c0_i32_0 = arith.constant 0 : i32
    %c0_i32_1 = arith.constant 0 : i32
    return %c0_i32, %c0_i32_0 : i32, i32
  }
  func.func @transform_7(%arg0: i32) -> (i32, i32) {
    %c0_i32 = arith.constant 0 : i32
    %c0_i32_0 = arith.constant 0 : i32
    %c0_i32_1 = arith.constant 0 : i32
    return %c0_i32, %c0_i32_0 : i32, i32
  }
  func.func @transform_8(%arg0: i32) -> (i32, i32) {
    %c0_i32 = arith.constant 0 : i32
    %c0_i32_0 = arith.constant 0 : i32
    %c0_i32_1 = arith.constant 0 : i32
    return %c0_i32, %c0_i32_0 : i32, i32
  }
  func.func @transform_9(%arg0: i32) -> (i32, i32) {
    %c0_i32 = arith.constant 0 : i32
    %c0_i32_0 = arith.constant 0 : i32
    %c0_i32_1 = arith.constant 0 : i32
    return %c0_i32, %c0_i32_0 : i32, i32
  }
  func.func @transform_10(%arg0: i32) -> (i32, i32) {
    %c0_i32 = arith.constant 0 : i32
    %c0_i32_0 = arith.constant 0 : i32
    %c0_i32_1 = arith.constant 0 : i32
    return %c0_i32, %c0_i32_0 : i32, i32
  }
  func.func @transform_11(%arg0: i32) -> (i32, i32) {
    %c0_i32 = arith.constant 0 : i32
    %c0_i32_0 = arith.constant 0 : i32
    %c0_i32_1 = arith.constant 0 : i32
    return %c0_i32, %c0_i32_0 : i32, i32
  }
  func.func @transform_12(%arg0: i32) -> (i32, i32) {
    %c0_i32 = arith.constant 0 : i32
    %c0_i32_0 = arith.constant 0 : i32
    %c0_i32_1 = arith.constant 0 : i32
    return %c0_i32, %c0_i32_0 : i32, i32
  }
  func.func @transform_13(%arg0: i32) -> (i32, i32, i32, i32) {
    %c0_i32 = arith.constant 0 : i32
    %c0_i32_0 = arith.constant 0 : i32
    %c0_i32_1 = arith.constant 0 : i32
    %c0_i32_2 = arith.constant 0 : i32
    return %arg0, %c0_i32, %c0_i32_0, %c0_i32_1 : i32, i32, i32, i32
  }
}

</mosaic_0001>

<llo_original>
// kernel: inverted_residual_pallas.1
$region0: #{inverted_residual_pallas.1}
  #allocation0 [shape = 'u32[]', space=smem, size = 0x4, offset = 0x4, fixed_abs, tag = 'smem constant byte address 0x4 - core index']
  #allocation1 [shape = 'u32[144,128]{1,0:T(1,128)}', space=vmem, size = 0x12000, scoped, tag = 'internal scratch']
  #allocation2 [shape = 'f32[18,32,128]{2,1,0:T(8,128)}', space=vmem, size = 0x48000, scoped, tag = 'scratch operand']
  %s0 = inlined_call_operand.vmem [shape: bf16[2,16,16,128], index: 0, kind: input, shape index: {}]
  %s1 = inlined_call_operand.vmem [shape: bf16[128,128], index: 1, kind: input, shape index: {}]
  %s2 = inlined_call_operand.vmem [shape: f32[1,128], index: 2, kind: input, shape index: {}]
  %s3 = inlined_call_operand.vmem [shape: f32[1,128], index: 3, kind: input, shape index: {}]
  %s4 = inlined_call_operand.vmem [shape: bf16[3,384,128], index: 4, kind: input, shape index: {}]
  %s5 = inlined_call_operand.vmem [shape: f32[1,128], index: 5, kind: input, shape index: {}]
  %s6 = inlined_call_operand.vmem [shape: f32[1,128], index: 6, kind: input, shape index: {}]
  %s7 = inlined_call_operand.vmem [shape: bf16[128,128], index: 7, kind: input, shape index: {}]
  %s8 = inlined_call_operand.vmem [shape: f32[1,128], index: 8, kind: input, shape index: {}]
  %s9 = inlined_call_operand.vmem [shape: f32[1,128], index: 9, kind: input, shape index: {}]
  %s10 = inlined_call_operand.vmem [shape: bf16[128,128], index: 10, kind: input, shape index: {}]
  %s11 = inlined_call_operand.vmem [shape: f32[1,128], index: 11, kind: input, shape index: {}]
  %s12 = inlined_call_operand.vmem [shape: f32[1,128], index: 12, kind: input, shape index: {}]
  %s13 = inlined_call_operand.vmem [shape: f32[2,16,16,128], index: 13, kind: output, shape index: {}]
  %s14 = sld [smem:[#allocation0]]
  $region85: #{inverted_residual_pallas.1} parent=0
    _
  %s16 = ssub.s32 1, %s14
  %s17 = scalar_select 0, %s16, %s14
  loop: start=0, step=1, limit=4
  $region2: #{inverted_residual_pallas.1} parent=0 // loop_pre_header
    _
  $region3: #{inverted_residual_pallas.1} parent=0 // loop_header
    %s19 = sphi 0, %s23
    %p20 = scmp.ge.s32.totalorder %s19, 4
    %s29 = sphi 0, %s31
    %s32 = sphi 0, %s29
    %s33 = sphi 0, %s32
    %s49 = sphi 0, %s33
    %s53 = sphi 0, %s53
    %s55 = sphi 0, %s53
    %s56 = sphi 0, %s55
    %s70 = sphi 0, %s56
    %s74 = sphi 0, %s74
    %s76 = sphi 0, %s74
    %s77 = sphi 0, %s76
    %s91 = sphi 0, %s77
    %s95 = sphi 0, %s95
    %s97 = sphi 0, %s95
    %s98 = sphi 0, %s97
    %s112 = sphi 0, %s98
    %s116 = sphi 0, %s116
    %s118 = sphi 0, %s116
    %s119 = sphi 0, %s118
    %s133 = sphi 0, %s119
    %s137 = sphi 0, %s137
    %s139 = sphi 0, %s137
    %s140 = sphi 0, %s139
    %s154 = sphi 0, %s140
    %s158 = sphi 0, %s158
    %s160 = sphi 0, %s158
    %s161 = sphi 0, %s160
    %s175 = sphi 0, %s161
    %s179 = sphi 0, %s179
    %s181 = sphi 0, %s179
    %s182 = sphi 0, %s181
    %s196 = sphi 0, %s182
    %s200 = sphi 0, %s200
    %s202 = sphi 0, %s200
    %s203 = sphi 0, %s202
    %s217 = sphi 0, %s203
    %s221 = sphi 0, %s221
    %s223 = sphi 0, %s221
    %s224 = sphi 0, %s223
    %s238 = sphi 0, %s224
    %s242 = sphi 0, %s242
    %s244 = sphi 0, %s242
    %s245 = sphi 0, %s244
    %s259 = sphi 0, %s245
    %s263 = sphi 0, %s263
    %s265 = sphi 0, %s263
    %s266 = sphi 0, %s265
    %s280 = sphi 0, %s266
    %s284 = sphi 0, %s284
    %s286 = sphi 0, %s284
    %s287 = sphi 0, %s286
    %s301 = sphi 0, %s287
    %s307 = sphi 0, %s309
    %s310 = sphi 0, %s307
    %s311 = sphi 0, %s310
    %s327 = sphi 0, %s311
  $region4: #{inverted_residual_pallas.1} parent=0 // loop_header_branch
    %22 = sbr.rel (%p20) target = $region8
  $region5: #{inverted_residual_pallas.1} parent=0 // loop_body
    %s24 = ssub.s32 %s19, 1
    %s25 = ssub.s32 %s19, 2
    %s26 = sadd.s32 %s19, 1
    %s27 = ssub.s32 %s19, %s26
    %p28 = scmp.eq.s32.totalorder %s27, 0
    %s30 = sadd.s32 %s29, 1
    %s31 = scalar_select %p28, %s29, %s30
    %p34 = pneg %p28
    %p35 = scmp.eq.s32.totalorder %s19, 1
    %p36 = por %p34, %p35
    %p37 = scmp.ne.s32.totalorder %s29, %s32
    %p38 = scmp.eq.s32.totalorder %s19, 0
    %p39 = por %p37, %p38
    %p40 = scmp.ne.s32.totalorder %s29, %s32
    %p41 = scmp.eq.s32.totalorder %s24, 1
    %p42 = por %p40, %p41
    %p43 = scmp.ne.s32.totalorder %s32, %s33
    %p44 = scmp.eq.s32.totalorder %s24, 0
    %p45 = por %p43, %p44
    %p46 = scmp.ne.s32.totalorder %s32, %s33
    %p47 = scmp.eq.s32.totalorder %s25, 1
    %p48 = por %p46, %p47
    %p50 = scmp.ne.s32.totalorder %s33, %s49
    %p51 = scmp.eq.s32.totalorder %s25, 0
    %p52 = por %p50, %p51
    %s54 = sadd.s32 %s53, 1
    %p57 = scmp.eq.s32.totalorder %s19, 1
    %p58 = scmp.ne.s32.totalorder %s53, %s55
    %p59 = scmp.eq.s32.totalorder %s19, 0
    %p60 = por %p58, %p59
    %p61 = scmp.ne.s32.totalorder %s53, %s55
    %p62 = scmp.eq.s32.totalorder %s24, 1
    %p63 = por %p61, %p62
    %p64 = scmp.ne.s32.totalorder %s55, %s56
    %p65 = scmp.eq.s32.totalorder %s24, 0
    %p66 = por %p64, %p65
    %p67 = scmp.ne.s32.totalorder %s55, %s56
    %p68 = scmp.eq.s32.totalorder %s25, 1
    %p69 = por %p67, %p68
    %p71 = scmp.ne.s32.totalorder %s56, %s70
    %p72 = scmp.eq.s32.totalorder %s25, 0
    %p73 = por %p71, %p72
    %s75 = sadd.s32 %s74, 1
    %p78 = scmp.eq.s32.totalorder %s19, 1
    %p79 = scmp.ne.s32.totalorder %s74, %s76
    %p80 = scmp.eq.s32.totalorder %s19, 0
    %p81 = por %p79, %p80
    %p82 = scmp.ne.s32.totalorder %s74, %s76
    %p83 = scmp.eq.s32.totalorder %s24, 1
    %p84 = por %p82, %p83
    %p85 = scmp.ne.s32.totalorder %s76, %s77
    %p86 = scmp.eq.s32.totalorder %s24, 0
    %p87 = por %p85, %p86
    %p88 = scmp.ne.s32.totalorder %s76, %s77
    %p89 = scmp.eq.s32.totalorder %s25, 1
    %p90 = por %p88, %p89
    %p92 = scmp.ne.s32.totalorder %s77, %s91
    %p93 = scmp.eq.s32.totalorder %s25, 0
    %p94 = por %p92, %p93
    %s96 = sadd.s32 %s95, 1
    %p99 = scmp.eq.s32.totalorder %s19, 1
    %p100 = scmp.ne.s32.totalorder %s95, %s97
    %p101 = scmp.eq.s32.totalorder %s19, 0
    %p102 = por %p100, %p101
    %p103 = scmp.ne.s32.totalorder %s95, %s97
    %p104 = scmp.eq.s32.totalorder %s24, 1
    %p105 = por %p103, %p104
    %p106 = scmp.ne.s32.totalorder %s97, %s98
    %p107 = scmp.eq.s32.totalorder %s24, 0
    %p108 = por %p106, %p107
    %p109 = scmp.ne.s32.totalorder %s97, %s98
    %p110 = scmp.eq.s32.totalorder %s25, 1
    %p111 = por %p109, %p110
    %p113 = scmp.ne.s32.totalorder %s98, %s112
    %p114 = scmp.eq.s32.totalorder %s25, 0
    %p115 = por %p113, %p114
    %s117 = sadd.s32 %s116, 1
    %p120 = scmp.eq.s32.totalorder %s19, 1
    %p121 = scmp.ne.s32.totalorder %s116, %s118
    %p122 = scmp.eq.s32.totalorder %s19, 0
    %p123 = por %p121, %p122
    %p124 = scmp.ne.s32.totalorder %s116, %s118
    %p125 = scmp.eq.s32.totalorder %s24, 1
    %p126 = por %p124, %p125
    %p127 = scmp.ne.s32.totalorder %s118, %s119
    %p128 = scmp.eq.s32.totalorder %s24, 0
    %p129 = por %p127, %p128
    %p130 = scmp.ne.s32.totalorder %s118, %s119
    %p131 = scmp.eq.s32.totalorder %s25, 1
    %p132 = por %p130, %p131
    %p134 = scmp.ne.s32.totalorder %s119, %s133
    %p135 = scmp.eq.s32.totalorder %s25, 0
    %p136 = por %p134, %p135
    %s138 = sadd.s32 %s137, 1
    %p141 = scmp.eq.s32.totalorder %s19, 1
    %p142 = scmp.ne.s32.totalorder %s137, %s139
    %p143 = scmp.eq.s32.totalorder %s19, 0
    %p144 = por %p142, %p143
    %p145 = scmp.ne.s32.totalorder %s137, %s139
    %p146 = scmp.eq.s32.totalorder %s24, 1
    %p147 = por %p145, %p146
    %p148 = scmp.ne.s32.totalorder %s139, %s140
    %p149 = scmp.eq.s32.totalorder %s24, 0
    %p150 = por %p148, %p149
    %p151 = scmp.ne.s32.totalorder %s139, %s140
    %p152 = scmp.eq.s32.totalorder %s25, 1
    %p153 = por %p151, %p152
    %p155 = scmp.ne.s32.totalorder %s140, %s154
    %p156 = scmp.eq.s32.totalorder %s25, 0
    %p157 = por %p155, %p156
    %s159 = sadd.s32 %s158, 1
    %p162 = scmp.eq.s32.totalorder %s19, 1
    %p163 = scmp.ne.s32.totalorder %s158, %s160
    %p164 = scmp.eq.s32.totalorder %s19, 0
    %p165 = por %p163, %p164
    %p166 = scmp.ne.s32.totalorder %s158, %s160
    %p167 = scmp.eq.s32.totalorder %s24, 1
    %p168 = por %p166, %p167
    %p169 = scmp.ne.s32.totalorder %s160, %s161
    %p170 = scmp.eq.s32.totalorder %s24, 0
    %p171 = por %p169, %p170
    %p172 = scmp.ne.s32.totalorder %s160, %s161
    %p173 = scmp.eq.s32.totalorder %s25, 1
    %p174 = por %p172, %p173
    %p176 = scmp.ne.s32.totalorder %s161, %s175
    %p177 = scmp.eq.s32.totalorder %s25, 0
    %p178 = por %p176, %p177
    %s180 = sadd.s32 %s179, 1
    %p183 = scmp.eq.s32.totalorder %s19, 1
    %p184 = scmp.ne.s32.totalorder %s179, %s181
    %p185 = scmp.eq.s32.totalorder %s19, 0
    %p186 = por %p184, %p185
    %p187 = scmp.ne.s32.totalorder %s179, %s181
    %p188 = scmp.eq.s32.totalorder %s24, 1
    %p189 = por %p187, %p188
    %p190 = scmp.ne.s32.totalorder %s181, %s182
    %p191 = scmp.eq.s32.totalorder %s24, 0
    %p192 = por %p190, %p191
    %p193 = scmp.ne.s32.totalorder %s181, %s182
    %p194 = scmp.eq.s32.totalorder %s25, 1
    %p195 = por %p193, %p194
    %p197 = scmp.ne.s32.totalorder %s182, %s196
    %p198 = scmp.eq.s32.totalorder %s25, 0
    %p199 = por %p197, %p198
    %s201 = sadd.s32 %s200, 1
    %p204 = scmp.eq.s32.totalorder %s19, 1
    %p205 = scmp.ne.s32.totalorder %s200, %s202
    %p206 = scmp.eq.s32.totalorder %s19, 0
    %p207 = por %p205, %p206
    %p208 = scmp.ne.s32.totalorder %s200, %s202
    %p209 = scmp.eq.s32.totalorder %s24, 1
    %p210 = por %p208, %p209
    %p211 = scmp.ne.s32.totalorder %s202, %s203
    %p212 = scmp.eq.s32.totalorder %s24, 0
    %p213 = por %p211, %p212
    %p214 = scmp.ne.s32.totalorder %s202, %s203
    %p215 = scmp.eq.s32.totalorder %s25, 1
    %p216 = por %p214, %p215
    %p218 = scmp.ne.s32.totalorder %s203, %s217
    %p219 = scmp.eq.s32.totalorder %s25, 0
    %p220 = por %p218, %p219
    %s222 = sadd.s32 %s221, 1
    %p225 = scmp.eq.s32.totalorder %s19, 1
    %p226 = scmp.ne.s32.totalorder %s221, %s223
    %p227 = scmp.eq.s32.totalorder %s19, 0
    %p228 = por %p226, %p227
    %p229 = scmp.ne.s32.totalorder %s221, %s223
    %p230 = scmp.eq.s32.totalorder %s24, 1
    %p231 = por %p229, %p230
    %p232 = scmp.ne.s32.totalorder %s223, %s224
    %p233 = scmp.eq.s32.totalorder %s24, 0
    %p234 = por %p232, %p233
    %p235 = scmp.ne.s32.totalorder %s223, %s224
    %p236 = scmp.eq.s32.totalorder %s25, 1
    %p237 = por %p235, %p236
    %p239 = scmp.ne.s32.totalorder %s224, %s238
    %p240 = scmp.eq.s32.totalorder %s25, 0
    %p241 = por %p239, %p240
    %s243 = sadd.s32 %s242, 1
    %p246 = scmp.eq.s32.totalorder %s19, 1
    %p247 = scmp.ne.s32.totalorder %s242, %s244
    %p248 = scmp.eq.s32.totalorder %s19, 0
    %p249 = por %p247, %p248
    %p250 = scmp.ne.s32.totalorder %s242, %s244
    %p251 = scmp.eq.s32.totalorder %s24, 1
    %p252 = por %p250, %p251
    %p253 = scmp.ne.s32.totalorder %s244, %s245
    %p254 = scmp.eq.s32.totalorder %s24, 0
    %p255 = por %p253, %p254
    %p256 = scmp.ne.s32.totalorder %s244, %s245
    %p257 = scmp.eq.s32.totalorder %s25, 1
    %p258 = por %p256, %p257
    %p260 = scmp.ne.s32.totalorder %s245, %s259
    %p261 = scmp.eq.s32.totalorder %s25, 0
    %p262 = por %p260, %p261
    %s264 = sadd.s32 %s263, 1
    %p267 = scmp.eq.s32.totalorder %s19, 1
    %p268 = scmp.ne.s32.totalorder %s263, %s265
    %p269 = scmp.eq.s32.totalorder %s19, 0
    %p270 = por %p268, %p269
    %p271 = scmp.ne.s32.totalorder %s263, %s265
    %p272 = scmp.eq.s32.totalorder %s24, 1
    %p273 = por %p271, %p272
    %p274 = scmp.ne.s32.totalorder %s265, %s266
    %p275 = scmp.eq.s32.totalorder %s24, 0
    %p276 = por %p274, %p275
    %p277 = scmp.ne.s32.totalorder %s265, %s266
    %p278 = scmp.eq.s32.totalorder %s25, 1
    %p279 = por %p277, %p278
    %p281 = scmp.ne.s32.totalorder %s266, %s280
    %p282 = scmp.eq.s32.totalorder %s25, 0
    %p283 = por %p281, %p282
    %s285 = sadd.s32 %s284, 1
    %p288 = scmp.eq.s32.totalorder %s19, 1
    %p289 = scmp.ne.s32.totalorder %s284, %s286
    %p290 = scmp.eq.s32.totalorder %s19, 0
    %p291 = por %p289, %p290
    %p292 = scmp.ne.s32.totalorder %s284, %s286
    %p293 = scmp.eq.s32.totalorder %s24, 1
    %p294 = por %p292, %p293
    %p295 = scmp.ne.s32.totalorder %s286, %s287
    %p296 = scmp.eq.s32.totalorder %s24, 0
    %p297 = por %p295, %p296
    %p298 = scmp.ne.s32.totalorder %s286, %s287
    %p299 = scmp.eq.s32.totalorder %s25, 1
    %p300 = por %p298, %p299
    %p302 = scmp.ne.s32.totalorder %s287, %s301
    %p303 = scmp.eq.s32.totalorder %s25, 0
    %p304 = por %p302, %p303
    %s305 = ssub.s32 %s19, %s26
    %p306 = scmp.eq.s32.totalorder %s305, 0
    %s308 = sadd.s32 %s307, 1
    %s309 = scalar_select %p306, %s307, %s308
    %p312 = pneg %p306
    %p313 = scmp.eq.s32.totalorder %s19, 1
    %p314 = por %p312, %p313
    %p315 = scmp.ne.s32.totalorder %s307, %s310
    %p316 = scmp.eq.s32.totalorder %s19, 0
    %p317 = por %p315, %p316
    %p318 = scmp.ne.s32.totalorder %s307, %s310
    %p319 = scmp.eq.s32.totalorder %s24, 1
    %p320 = por %p318, %p319
    %p321 = scmp.ne.s32.totalorder %s310, %s311
    %p322 = scmp.eq.s32.totalorder %s24, 0
    %p323 = por %p321, %p322
    %p324 = scmp.ne.s32.totalorder %s310, %s311
    %p325 = scmp.eq.s32.totalorder %s25, 1
    %p326 = por %p324, %p325
    %p328 = scmp.ne.s32.totalorder %s311, %s327
    %p329 = scmp.eq.s32.totalorder %s25, 0
    %p330 = por %p328, %p329
    %p331 = scmp.le.s32.totalorder 1, %s19
    %p332 = scmp.lt.s32.totalorder %s19, 3
    %p333 = pnand %p331, %p332
    %p334 = pneg %p333
    // Predicated region
    $region9: #{inverted_residual_pallas.1} parent=5 // pred_check
      _
    $region10: #{inverted_residual_pallas.1} parent=5 // pred_check_branch
      %336 = sbr.rel (%p333) target = $region12
    $region11: #{inverted_residual_pallas.1} parent=5 // pred_region
      %s337 = ssub.s32 %s19, 1
      // Predicated region
      $region13: #{inverted_residual_pallas.1} parent=11 // pred_check
        %p338 = pneg %p66
      $region14: #{inverted_residual_pallas.1} parent=11 // pred_check_branch
        %340 = sbr.rel (%p338) target = $region16
      $region15: #{inverted_residual_pallas.1} parent=11 // pred_region
        _
      $region16: #{inverted_residual_pallas.1} parent=11 // pred_fallthru
        _
      // Predicated region
      $region17: #{inverted_residual_pallas.1} parent=11 // pred_check
        %p341 = pneg %p87
      $region18: #{inverted_residual_pallas.1} parent=11 // pred_check_branch
        %343 = sbr.rel (%p341) target = $region20
      $region19: #{inverted_residual_pallas.1} parent=11 // pred_region
        _
      $region20: #{inverted_residual_pallas.1} parent=11 // pred_fallthru
        _
      // Predicated region
      $region21: #{inverted_residual_pallas.1} parent=11 // pred_check
        %p344 = pneg %p108
      $region22: #{inverted_residual_pallas.1} parent=11 // pred_check_branch
        %346 = sbr.rel (%p344) target = $region24
      $region23: #{inverted_residual_pallas.1} parent=11 // pred_region
        _
      $region24: #{inverted_residual_pallas.1} parent=11 // pred_fallthru
        _
      // Predicated region
      $region25: #{inverted_residual_pallas.1} parent=11 // pred_check
        %p347 = pneg %p129
      $region26: #{inverted_residual_pallas.1} parent=11 // pred_check_branch
        %349 = sbr.rel (%p347) target = $region28
      $region27: #{inverted_residual_pallas.1} parent=11 // pred_region
        _
      $region28: #{inverted_residual_pallas.1} parent=11 // pred_fallthru
        _
      // Predicated region
      $region29: #{inverted_residual_pallas.1} parent=11 // pred_check
        %p350 = pneg %p150
      $region30: #{inverted_residual_pallas.1} parent=11 // pred_check_branch
        %352 = sbr.rel (%p350) target = $region32
      $region31: #{inverted_residual_pallas.1} parent=11 // pred_region
        _
      $region32: #{inverted_residual_pallas.1} parent=11 // pred_fallthru
        _
      // Predicated region
      $region33: #{inverted_residual_pallas.1} parent=11 // pred_check
        %p353 = pneg %p171
      $region34: #{inverted_residual_pallas.1} parent=11 // pred_check_branch
        %355 = sbr.rel (%p353) target = $region36
      $region35: #{inverted_residual_pallas.1} parent=11 // pred_region
        _
      $region36: #{inverted_residual_pallas.1} parent=11 // pred_fallthru
        _
      // Predicated region
      $region37: #{inverted_residual_pallas.1} parent=11 // pred_check
        %p356 = pneg %p192
      $region38: #{inverted_residual_pallas.1} parent=11 // pred_check_branch
        %358 = sbr.rel (%p356) target = $region40
      $region39: #{inverted_residual_pallas.1} parent=11 // pred_region
        _
      $region40: #{inverted_residual_pallas.1} parent=11 // pred_fallthru
        _
      // Predicated region
      $region41: #{inverted_residual_pallas.1} parent=11 // pred_check
        %p359 = pneg %p213
      $region42: #{inverted_residual_pallas.1} parent=11 // pred_check_branch
        %361 = sbr.rel (%p359) target = $region44
      $region43: #{inverted_residual_pallas.1} parent=11 // pred_region
        _
      $region44: #{inverted_residual_pallas.1} parent=11 // pred_fallthru
        _
      // Predicated region
      $region45: #{inverted_residual_pallas.1} parent=11 // pred_check
        %p362 = pneg %p234
      $region46: #{inverted_residual_pallas.1} parent=11 // pred_check_branch
        %364 = sbr.rel (%p362) target = $region48
      $region47: #{inverted_residual_pallas.1} parent=11 // pred_region
        _
      $region48: #{inverted_residual_pallas.1} parent=11 // pred_fallthru
        _
      // Predicated region
      $region49: #{inverted_residual_pallas.1} parent=11 // pred_check
        %p365 = pneg %p255
      $region50: #{inverted_residual_pallas.1} parent=11 // pred_check_branch
        %367 = sbr.rel (%p365) target = $region52
      $region51: #{inverted_residual_pallas.1} parent=11 // pred_region
        _
      $region52: #{inverted_residual_pallas.1} parent=11 // pred_fallthru
        _
      // Predicated region
      $region53: #{inverted_residual_pallas.1} parent=11 // pred_check
        %p368 = pneg %p276
      $region54: #{inverted_residual_pallas.1} parent=11 // pred_check_branch
        %370 = sbr.rel (%p368) target = $region56
      $region55: #{inverted_residual_pallas.1} parent=11 // pred_region
        _
      $region56: #{inverted_residual_pallas.1} parent=11 // pred_fallthru
        _
      // Predicated region
      $region57: #{inverted_residual_pallas.1} parent=11 // pred_check
        %p371 = pneg %p297
      $region58: #{inverted_residual_pallas.1} parent=11 // pred_check_branch
        %373 = sbr.rel (%p371) target = $region60
      $region59: #{inverted_residual_pallas.1} parent=11 // pred_region
        _
      $region60: #{inverted_residual_pallas.1} parent=11 // pred_fallthru
        _
    $region12: #{inverted_residual_pallas.1} parent=5 // pred_fallthru
      _
    %p374 = scmp.lt.s32.totalorder %s19, 2
    // Predicated region
    $region61: #{inverted_residual_pallas.1} parent=5 // pred_check
      %p375 = pneg %p374
    $region62: #{inverted_residual_pallas.1} parent=5 // pred_check_branch
      %377 = sbr.rel (%p375) target = $region64
    $region63: #{inverted_residual_pallas.1} parent=5 // pred_region
      // Predicated region
      $region65: #{inverted_residual_pallas.1} parent=63 // pred_check
        %p378 = pneg %p39
      $region66: #{inverted_residual_pallas.1} parent=63 // pred_check_branch
        %380 = sbr.rel (%p378) target = $region68
      $region67: #{inverted_residual_pallas.1} parent=63 // pred_region
        %p381 = scmp.lt.s32.totalorder %s19, 1
        %s382 = scalar_select %p381, %s19, 1
        %s383 = smul.addr %s382, 32
        %s384 = smul.addr %s383, 4
        %s385 = scalar_lea.vmem %s0, %s384
      $region68: #{inverted_residual_pallas.1} parent=63 // pred_fallthru
        _
    $region64: #{inverted_residual_pallas.1} parent=5 // pred_fallthru
      _
    %p386 = scmp.le.s32.totalorder 1, %s19
    %p387 = scmp.lt.s32.totalorder %s19, 3
    %p388 = pnand %p386, %p387
    %p389 = pneg %p388
    // Predicated region
    $region69: #{inverted_residual_pallas.1} parent=5 // pred_check
      _
    $region70: #{inverted_residual_pallas.1} parent=5 // pred_check_branch
      %391 = sbr.rel (%p388) target = $region72
    $region71: #{inverted_residual_pallas.1} parent=5 // pred_region
      %s392 = ssub.s32 %s19, 1
      %p393 = scmp.lt.s32.totalorder %s24, 1
      %s394 = scalar_select %p393, %s24, 1
      %s395 = smul.addr %s394, 32
      %s396 = smul.addr %s395, 4
      %s397 = scalar_lea.vmem %s0, %s396
      %p398 = pneg %p45
      %p399 = pneg %p42
      %p400 = pneg %p66
      %p401 = pneg %p63
      %p402 = pneg %p87
      %p403 = pneg %p84
      %p404 = pneg %p108
      %p405 = pneg %p105
      %p406 = pneg %p129
      %p407 = pneg %p126
      %p408 = pneg %p150
      %p409 = pneg %p147
      %p410 = pneg %p171
      %p411 = pneg %p168
      %p412 = pneg %p192
      %p413 = pneg %p189
      %p414 = pneg %p213
      %p415 = pneg %p210
      %p416 = pneg %p234
      %p417 = pneg %p231
      %p418 = pneg %p255
      %p419 = pneg %p252
      %p420 = pneg %p276
      %p421 = pneg %p273
      %p422 = pneg %p297
      %p423 = pneg %p294
      %p424 = pneg %p323
      %p425 = pneg %p320
      %p426 = scmp.lt.s32.totalorder %s24, 1
      %s427 = scalar_select %p426, %s24, 1
      %s428 = smul.addr %s427, 32
      %s429 = smul.addr %s428, 8
      %s430 = scalar_lea.vmem %s13, %s429
      %p431 = scmp.lt.s32.totalorder %s24, 1
      %s432 = scalar_select %p431, %s24, 1
      %s433 = smul.addr %s432, 32
      %s434 = smul.addr %s433, 4
      %s435 = scalar_lea.vmem %s0, %s434
      %p436 = scmp.lt.s32.totalorder %s24, 1
      %s437 = scalar_select %p436, %s24, 1
      %s438 = smul.addr %s437, 32
      %s439 = smul.addr %s438, 8
      %s440 = scalar_lea.vmem %s13, %s439
      %442 = vst [vmem:[#allocation2] sm:$0xff] 0.0
      %443 = vst [vmem:[#allocation2 + $0x8] sm:$0xff] 0.0
      %444 = vst [vmem:[#allocation2 + $0x10] sm:$0xff] 0.0
      %445 = vst [vmem:[#allocation2 + $0x18] sm:$0xff] 0.0
      %446 = vst [vmem:[#allocation2 + $0x20] sm:$0xff] 0.0
      %447 = vst [vmem:[#allocation2 + $0x28] sm:$0xff] 0.0
      %448 = vst [vmem:[#allocation2 + $0x30] sm:$0xff] 0.0
      %449 = vst [vmem:[#allocation2 + $0x38] sm:$0xff] 0.0
      %450 = vst [vmem:[#allocation2 + $0x40] sm:$0xff] 0.0
      %451 = vst [vmem:[#allocation2 + $0x48] sm:$0xff] 0.0
      %452 = vst [vmem:[#allocation2 + $0x50] sm:$0xff] 0.0
      %453 = vst [vmem:[#allocation2 + $0x58] sm:$0xff] 0.0
      %454 = vst [vmem:[#allocation2 + $0x60] sm:$0xff] 0.0
      %455 = vst [vmem:[#allocation2 + $0x68] sm:$0xff] 0.0
      %456 = vst [vmem:[#allocation2 + $0x70] sm:$0xff] 0.0
      %457 = vst [vmem:[#allocation2 + $0x78] sm:$0xff] 0.0
      %458 = vst [vmem:[#allocation2 + $0x80] sm:$0xff] 0.0
      %459 = vst [vmem:[#allocation2 + $0x88] sm:$0xff] 0.0
      %460 = vst [vmem:[#allocation2 + $0x90] sm:$0xff] 0.0
      %461 = vst [vmem:[#allocation2 + $0x98] sm:$0xff] 0.0
      %462 = vst [vmem:[#allocation2 + $0xa0] sm:$0xff] 0.0
      %463 = vst [vmem:[#allocation2 + $0xa8] sm:$0xff] 0.0
      %464 = vst [vmem:[#allocation2 + $0xb0] sm:$0xff] 0.0
      %465 = vst [vmem:[#allocation2 + $0xb8] sm:$0xff] 0.0
      %466 = vst [vmem:[#allocation2 + $0xc0] sm:$0xff] 0.0
      %467 = vst [vmem:[#allocation2 + $0xc8] sm:$0xff] 0.0
      %468 = vst [vmem:[#allocation2 + $0xd0] sm:$0xff] 0.0
      %469 = vst [vmem:[#allocation2 + $0xd8] sm:$0xff] 0.0
      %470 = vst [vmem:[#allocation2 + $0xe0] sm:$0xff] 0.0
      %471 = vst [vmem:[#allocation2 + $0xe8] sm:$0xff] 0.0
      %472 = vst [vmem:[#allocation2 + $0xf0] sm:$0xff] 0.0
      %473 = vst [vmem:[#allocation2 + $0xf8] sm:$0xff] 0.0
      %474 = vst [vmem:[#allocation2 + $0x100] sm:$0xff] 0.0
      %475 = vst [vmem:[#allocation2 + $0x108] sm:$0xff] 0.0
      %476 = vst [vmem:[#allocation2 + $0x110] sm:$0xff] 0.0
      %477 = vst [vmem:[#allocation2 + $0x118] sm:$0xff] 0.0
      %478 = vst [vmem:[#allocation2 + $0x120] sm:$0xff] 0.0
      %479 = vst [vmem:[#allocation2 + $0x128] sm:$0xff] 0.0
      %480 = vst [vmem:[#allocation2 + $0x130] sm:$0xff] 0.0
      %481 = vst [vmem:[#allocation2 + $0x138] sm:$0xff] 0.0
      %482 = vst [vmem:[#allocation2 + $0x140] sm:$0xff] 0.0
      %483 = vst [vmem:[#allocation2 + $0x148] sm:$0xff] 0.0
      %484 = vst [vmem:[#allocation2 + $0x150] sm:$0xff] 0.0
      %485 = vst [vmem:[#allocation2 + $0x158] sm:$0xff] 0.0
      %486 = vst [vmem:[#allocation2 + $0x160] sm:$0xff] 0.0
      %487 = vst [vmem:[#allocation2 + $0x168] sm:$0xff] 0.0
      %488 = vst [vmem:[#allocation2 + $0x170] sm:$0xff] 0.0
      %489 = vst [vmem:[#allocation2 + $0x178] sm:$0xff] 0.0
      %490 = vst [vmem:[#allocation2 + $0x180] sm:$0xff] 0.0
      %491 = vst [vmem:[#allocation2 + $0x188] sm:$0xff] 0.0
      %492 = vst [vmem:[#allocation2 + $0x190] sm:$0xff] 0.0
      %493 = vst [vmem:[#allocation2 + $0x198] sm:$0xff] 0.0
      %494 = vst [vmem:[#allocation2 + $0x1a0] sm:$0xff] 0.0
      %495 = vst [vmem:[#allocation2 + $0x1a8] sm:$0xff] 0.0
      %496 = vst [vmem:[#allocation2 + $0x1b0] sm:$0xff] 0.0
      %497 = vst [vmem:[#allocation2 + $0x1b8] sm:$0xff] 0.0
      %498 = vst [vmem:[#allocation2 + $0x1c0] sm:$0xff] 0.0
      %499 = vst [vmem:[#allocation2 + $0x1c8] sm:$0xff] 0.0
      %500 = vst [vmem:[#allocation2 + $0x1d0] sm:$0xff] 0.0
      %501 = vst [vmem:[#allocation2 + $0x1d8] sm:$0xff] 0.0
      %502 = vst [vmem:[#allocation2 + $0x1e0] sm:$0xff] 0.0
      %503 = vst [vmem:[#allocation2 + $0x1e8] sm:$0xff] 0.0
      %504 = vst [vmem:[#allocation2 + $0x1f0] sm:$0xff] 0.0
      %505 = vst [vmem:[#allocation2 + $0x1f8] sm:$0xff] 0.0
      %506 = vst [vmem:[#allocation2 + $0x200] sm:$0xff] 0.0
      %507 = vst [vmem:[#allocation2 + $0x208] sm:$0xff] 0.0
      %508 = vst [vmem:[#allocation2 + $0x210] sm:$0xff] 0.0
      %509 = vst [vmem:[#allocation2 + $0x218] sm:$0xff] 0.0
      %510 = vst [vmem:[#allocation2 + $0x220] sm:$0xff] 0.0
      %511 = vst [vmem:[#allocation2 + $0x228] sm:$0xff] 0.0
      %512 = vst [vmem:[#allocation2 + $0x230] sm:$0xff] 0.0
      %513 = vst [vmem:[#allocation2 + $0x238] sm:$0xff] 0.0
      %v514 = vld [vmem:[%s435] sm:$0xf]
      %v515 = vld [vmem:[%s435 + $0x4] sm:$0xf]
      %v516 = vld [vmem:[%s435 + $0x8] sm:$0xf]
      %v517 = vld [vmem:[%s435 + $0xc] sm:$0xf]
      %v518 = vld [vmem:[%s435 + $0x10] sm:$0xf]
      %v519 = vld [vmem:[%s435 + $0x14] sm:$0xf]
      %v520 = vld [vmem:[%s435 + $0x18] sm:$0xf]
      %v521 = vld [vmem:[%s435 + $0x1c] sm:$0xf]
      %v522 = vld [vmem:[%s435 + $0x20] sm:$0xf]
      %v523 = vld [vmem:[%s435 + $0x24] sm:$0xf]
      %v524 = vld [vmem:[%s435 + $0x28] sm:$0xf]
      %v525 = vld [vmem:[%s435 + $0x2c] sm:$0xf]
      %v526 = vld [vmem:[%s435 + $0x30] sm:$0xf]
      %v527 = vld [vmem:[%s435 + $0x34] sm:$0xf]
      %v528 = vld [vmem:[%s435 + $0x38] sm:$0xf]
      %v529 = vld [vmem:[%s435 + $0x3c] sm:$0xf]
      %v530 = vld [vmem:[%s435 + $0x40] sm:$0xf]
      %v531 = vld [vmem:[%s435 + $0x44] sm:$0xf]
      %v532 = vld [vmem:[%s435 + $0x48] sm:$0xf]
      %v533 = vld [vmem:[%s435 + $0x4c] sm:$0xf]
      %v534 = vld [vmem:[%s435 + $0x50] sm:$0xf]
      %v535 = vld [vmem:[%s435 + $0x54] sm:$0xf]
      %v536 = vld [vmem:[%s435 + $0x58] sm:$0xf]
      %v537 = vld [vmem:[%s435 + $0x5c] sm:$0xf]
      %v538 = vld [vmem:[%s435 + $0x60] sm:$0xf]
      %v539 = vld [vmem:[%s435 + $0x64] sm:$0xf]
      %v540 = vld [vmem:[%s435 + $0x68] sm:$0xf]
      %v541 = vld [vmem:[%s435 + $0x6c] sm:$0xf]
      %v542 = vld [vmem:[%s435 + $0x70] sm:$0xf]
      %v543 = vld [vmem:[%s435 + $0x74] sm:$0xf]
      %v544 = vld [vmem:[%s435 + $0x78] sm:$0xf]
      %v545 = vld [vmem:[%s435 + $0x7c] sm:$0xf]
      %v546 = vld [vmem:[%s1] sm:$0xf]
      %v547 = vld [vmem:[%s1 + $0x4] sm:$0xf]
      %v548 = vld [vmem:[%s1 + $0x8] sm:$0xf]
      %v549 = vld [vmem:[%s1 + $0xc] sm:$0xf]
      %v550 = vld [vmem:[%s1 + $0x10] sm:$0xf]
      %v551 = vld [vmem:[%s1 + $0x14] sm:$0xf]
      %v552 = vld [vmem:[%s1 + $0x18] sm:$0xf]
      %v553 = vld [vmem:[%s1 + $0x1c] sm:$0xf]
      %v554 = vld [vmem:[%s1 + $0x20] sm:$0xf]
      %v555 = vld [vmem:[%s1 + $0x24] sm:$0xf]
      %v556 = vld [vmem:[%s1 + $0x28] sm:$0xf]
      %v557 = vld [vmem:[%s1 + $0x2c] sm:$0xf]
      %v558 = vld [vmem:[%s1 + $0x30] sm:$0xf]
      %v559 = vld [vmem:[%s1 + $0x34] sm:$0xf]
      %v560 = vld [vmem:[%s1 + $0x38] sm:$0xf]
      %v561 = vld [vmem:[%s1 + $0x3c] sm:$0xf]
      %v594 = vunpack.c.l.b16 %v514
      %v595 = vunpack.c.l.b16 %v515
      %v596 = vunpack.c.l.b16 %v516
      %v597 = vunpack.c.l.b16 %v517
      %v598 = vunpack.c.l.b16 %v518
      %v599 = vunpack.c.l.b16 %v519
      %v600 = vunpack.c.l.b16 %v520
      %v601 = vunpack.c.l.b16 %v521
      %v602 = vunpack.c.l.b16 %v522
      %v603 = vunpack.c.l.b16 %v523
      %v604 = vunpack.c.l.b16 %v524
      %v605 = vunpack.c.l.b16 %v525
      %v606 = vunpack.c.l.b16 %v526
      %v607 = vunpack.c.l.b16 %v527
      %v608 = vunpack.c.l.b16 %v528
      %v609 = vunpack.c.l.b16 %v529
      %v610 = vunpack.c.l.b16 %v530
      %v611 = vunpack.c.l.b16 %v531
      %v612 = vunpack.c.l.b16 %v532
      %v613 = vunpack.c.l.b16 %v533
      %v614 = vunpack.c.l.b16 %v534
      %v615 = vunpack.c.l.b16 %v535
      %v616 = vunpack.c.l.b16 %v536
      %v617 = vunpack.c.l.b16 %v537
      %v618 = vunpack.c.l.b16 %v538
      %v619 = vunpack.c.l.b16 %v539
      %v620 = vunpack.c.l.b16 %v540
      %v621 = vunpack.c.l.b16 %v541
      %v622 = vunpack.c.l.b16 %v542
      %v623 = vunpack.c.l.b16 %v543
      %v624 = vunpack.c.l.b16 %v544
      %v625 = vunpack.c.l.b16 %v545
      %v626 = vpack.c.b16 %v595, %v594
      %v627 = vpack.c.b16 %v597, %v596
      %v628 = vpack.c.b16 %v599, %v598
      %v629 = vpack.c.b16 %v601, %v600
      %v630 = vpack.c.b16 %v603, %v602
      %v631 = vpack.c.b16 %v605, %v604
      %v632 = vpack.c.b16 %v607, %v606
      %v633 = vpack.c.b16 %v609, %v608
      %v634 = vpack.c.b16 %v611, %v610
      %v635 = vpack.c.b16 %v613, %v612
      %v636 = vpack.c.b16 %v615, %v614
      %v637 = vpack.c.b16 %v617, %v616
      %v638 = vpack.c.b16 %v619, %v618
      %v639 = vpack.c.b16 %v621, %v620
      %v640 = vpack.c.b16 %v623, %v622
      %v641 = vpack.c.b16 %v625, %v624
      %v674 = vunpack.c.l.b16 %v546
      %v675 = vunpack.c.l.b16 %v547
      %v676 = vunpack.c.l.b16 %v548
      %v677 = vunpack.c.l.b16 %v549
      %v678 = vunpack.c.l.b16 %v550
      %v679 = vunpack.c.l.b16 %v551
      %v680 = vunpack.c.l.b16 %v552
      %v681 = vunpack.c.l.b16 %v553
      %v682 = vunpack.c.l.b16 %v554
      %v683 = vunpack.c.l.b16 %v555
      %v684 = vunpack.c.l.b16 %v556
      %v685 = vunpack.c.l.b16 %v557
      %v686 = vunpack.c.l.b16 %v558
      %v687 = vunpack.c.l.b16 %v559
      %v688 = vunpack.c.l.b16 %v560
      %v689 = vunpack.c.l.b16 %v561
      %v690 = vpack.c.b16 %v675, %v674
      %v691 = vpack.c.b16 %v677, %v676
      %v692 = vpack.c.b16 %v679, %v678
      %v693 = vpack.c.b16 %v681, %v680
      %v694 = vpack.c.b16 %v683, %v682
      %v695 = vpack.c.b16 %v685, %v684
      %v696 = vpack.c.b16 %v687, %v686
      %v697 = vpack.c.b16 %v689, %v688
      %706 = vmatprep.subr.bf16.mxu0 0
      %707 = vmatpush1.bf16.msra.mxu0 %v690
      %708 = vmatprep.subr.bf16.mxu0 0
      %709 = vmatpush1.bf16.msra.mxu0 %v691
      %710 = vmatprep.subr.bf16.mxu0 0
      %711 = vmatpush1.bf16.msra.mxu0 %v692
      %712 = vmatprep.subr.bf16.mxu0 0
      %713 = vmatpush1.bf16.msra.mxu0 %v693
      %714 = vmatprep.subr.bf16.mxu0 0
      %715 = vmatpush1.bf16.msra.mxu0 %v694
      %716 = vmatprep.subr.bf16.mxu0 0
      %717 = vmatpush1.bf16.msra.mxu0 %v695
      %718 = vmatprep.subr.bf16.mxu0 0
      %719 = vmatpush1.bf16.msra.mxu0 %v696
      %720 = vmatprep.subr.bf16.mxu0 0
      %721 = vmatpush1.bf16.msra.mxu0 %v697
      %722 = vmatprep.subr.bf16.mxu0 0
      %723 = vmatpush1.bf16.msra.mxu0 0
      %724 = vmatprep.subr.bf16.mxu0 0
      %725 = vmatpush1.bf16.msra.mxu0 0
      %726 = vmatprep.subr.bf16.mxu0 0
      %727 = vmatpush1.bf16.msra.mxu0 0
      %728 = vmatprep.subr.bf16.mxu0 0
      %729 = vmatpush1.bf16.msra.mxu0 0
      %730 = vmatprep.subr.bf16.mxu0 0
      %731 = vmatpush1.bf16.msra.mxu0 0
      %732 = vmatprep.subr.bf16.mxu0 0
      %733 = vmatpush1.bf16.msra.mxu0 0
      %734 = vmatprep.subr.bf16.mxu0 0
      %735 = vmatpush1.bf16.msra.mxu0 0
      %736 = vmatprep.subr.bf16.mxu0 0
      %737 = vmatpush1.bf16.msra.mxu0 0
      %738 = vmatprep.mubr.bf16.mxu0 0
      %739 = vmatmul.mubr.bf16.gmra.mrb[0].mxu0 %v626
      %v740 = vpop.f32.mrb[0].mxu0
      %v741 = vadd.f32 0.0, %v740
      %v742 = vpop.f32.mrb[0].mxu0
      %v743 = vpop.f32.mrb[0].mxu0
      %v744 = vadd.f32 0.0, %v743
      %v745 = vpop.f32.mrb[0].mxu0
      %746 = vmatprep.mubr.bf16.mxu0 0
      %747 = vmatmul.mubr.bf16.gmra.mrb[0].mxu0 %v627
      %v748 = vpop.f32.mrb[0].mxu0
      %v749 = vadd.f32 0.0, %v748
      %v750 = vpop.f32.mrb[0].mxu0
      %v751 = vpop.f32.mrb[0].mxu0
      %v752 = vadd.f32 0.0, %v751
      %v753 = vpop.f32.mrb[0].mxu0
      %754 = vmatprep.mubr.bf16.mxu0 0
      %755 = vmatmul.mubr.bf16.gmra.mrb[0].mxu0 %v628
      %v756 = vpop.f32.mrb[0].mxu0
      %v757 = vadd.f32 0.0, %v756
      %v758 = vpop.f32.mrb[0].mxu0
      %v759 = vpop.f32.mrb[0].mxu0
      %v760 = vadd.f32 0.0, %v759
      %v761 = vpop.f32.mrb[0].mxu0
      %762 = vmatprep.mubr.bf16.mxu0 0
      %763 = vmatmul.mubr.bf16.gmra.mrb[0].mxu0 %v629
      %v764 = vpop.f32.mrb[0].mxu0
      %v765 = vadd.f32 0.0, %v764
      %v766 = vpop.f32.mrb[0].mxu0
      %v767 = vpop.f32.mrb[0].mxu0
      %v768 = vadd.f32 0.0, %v767
      %v769 = vpop.f32.mrb[0].mxu0
      %770 = vmatprep.mubr.bf16.mxu0 0
      %771 = vmatmul.mubr.bf16.gmra.mrb[0].mxu0 %v630
      %v772 = vpop.f32.mrb[0].mxu0
      %v773 = vadd.f32 0.0, %v772
      %v774 = vpop.f32.mrb[0].mxu0
      %v775 = vpop.f32.mrb[0].mxu0
      %v776 = vadd.f32 0.0, %v775
      %v777 = vpop.f32.mrb[0].mxu0
      %778 = vmatprep.mubr.bf16.mxu0 0
      %779 = vmatmul.mubr.bf16.gmra.mrb[0].mxu0 %v631
      %v780 = vpop.f32.mrb[0].mxu0
      %v781 = vadd.f32 0.0, %v780
      %v782 = vpop.f32.mrb[0].mxu0
      %v783 = vpop.f32.mrb[0].mxu0
      %v784 = vadd.f32 0.0, %v783
      %v785 = vpop.f32.mrb[0].mxu0
      %786 = vmatprep.mubr.bf16.mxu0 0
      %787 = vmatmul.mubr.bf16.gmra.mrb[0].mxu0 %v632
      %v788 = vpop.f32.mrb[0].mxu0
      %v789 = vadd.f32 0.0, %v788
      %v790 = vpop.f32.mrb[0].mxu0
      %v791 = vpop.f32.mrb[0].mxu0
      %v792 = vadd.f32 0.0, %v791
      %v793 = vpop.f32.mrb[0].mxu0
      %794 = vmatprep.mubr.bf16.mxu0 0
      %795 = vmatmul.mubr.bf16.gmra.mrb[0].mxu0 %v633
      %v796 = vpop.f32.mrb[0].mxu0
      %v797 = vadd.f32 0.0, %v796
      %v798 = vpop.f32.mrb[0].mxu0
      %v799 = vpop.f32.mrb[0].mxu0
      %v800 = vadd.f32 0.0, %v799
      %v801 = vpop.f32.mrb[0].mxu0
      %802 = vmatprep.mubr.bf16.mxu0 0
      %803 = vmatmul.mubr.bf16.gmra.mrb[0].mxu0 %v634
      %v804 = vpop.f32.mrb[0].mxu0
      %v805 = vadd.f32 0.0, %v804
      %v806 = vpop.f32.mrb[0].mxu0
      %v807 = vpop.f32.mrb[0].mxu0
      %v808 = vadd.f32 0.0, %v807
      %v809 = vpop.f32.mrb[0].mxu0
      %810 = vmatprep.mubr.bf16.mxu0 0
      %811 = vmatmul.mubr.bf16.gmra.mrb[0].mxu0 %v635
      %v812 = vpop.f32.mrb[0].mxu0
      %v813 = vadd.f32 0.0, %v812
      %v814 = vpop.f32.mrb[0].mxu0
      %v815 = vpop.f32.mrb[0].mxu0
      %v816 = vadd.f32 0.0, %v815
      %v817 = vpop.f32.mrb[0].mxu0
      %818 = vmatprep.mubr.bf16.mxu0 0
      %819 = vmatmul.mubr.bf16.gmra.mrb[0].mxu0 %v636
      %v820 = vpop.f32.mrb[0].mxu0
      %v821 = vadd.f32 0.0, %v820
      %v822 = vpop.f32.mrb[0].mxu0
      %v823 = vpop.f32.mrb[0].mxu0
      %v824 = vadd.f32 0.0, %v823
      %v825 = vpop.f32.mrb[0].mxu0
      %826 = vmatprep.mubr.bf16.mxu0 0
      %827 = vmatmul.mubr.bf16.gmra.mrb[0].mxu0 %v637
      %v828 = vpop.f32.mrb[0].mxu0
      %v829 = vadd.f32 0.0, %v828
      %v830 = vpop.f32.mrb[0].mxu0
      %v831 = vpop.f32.mrb[0].mxu0
      %v832 = vadd.f32 0.0, %v831
      %v833 = vpop.f32.mrb[0].mxu0
      %834 = vmatprep.mubr.bf16.mxu0 0
      %835 = vmatmul.mubr.bf16.gmra.mrb[0].mxu0 %v638
      %v836 = vpop.f32.mrb[0].mxu0
      %v837 = vadd.f32 0.0, %v836
      %v838 = vpop.f32.mrb[0].mxu0
      %v839 = vpop.f32.mrb[0].mxu0
      %v840 = vadd.f32 0.0, %v839
      %v841 = vpop.f32.mrb[0].mxu0
      %842 = vmatprep.mubr.bf16.mxu0 0
      %843 = vmatmul.mubr.bf16.gmra.mrb[0].mxu0 %v639
      %v844 = vpop.f32.mrb[0].mxu0
      %v845 = vadd.f32 0.0, %v844
      %v846 = vpop.f32.mrb[0].mxu0
      %v847 = vpop.f32.mrb[0].mxu0
      %v848 = vadd.f32 0.0, %v847
      %v849 = vpop.f32.mrb[0].mxu0
      %850 = vmatprep.mubr.bf16.mxu0 0
      %851 = vmatmul.mubr.bf16.gmra.mrb[0].mxu0 %v640
      %v852 = vpop.f32.mrb[0].mxu0
      %v853 = vadd.f32 0.0, %v852
      %v854 = vpop.f32.mrb[0].mxu0
      %v855 = vpop.f32.mrb[0].mxu0
      %v856 = vadd.f32 0.0, %v855
      %v857 = vpop.f32.mrb[0].mxu0
      %858 = vmatprep.mubr.bf16.mxu0 0
      %859 = vmatmul.mubr.bf16.gmra.mrb[0].mxu0 %v641
      %v860 = vpop.f32.mrb[0].mxu0
      %v861 = vadd.f32 0.0, %v860
      %v862 = vpop.f32.mrb[0].mxu0
      %v863 = vpop.f32.mrb[0].mxu0
      %v864 = vadd.f32 0.0, %v863
      %v865 = vpop.f32.mrb[0].mxu0
      %866 = vdwg.mxu0
      %v867 = vld [vmem:[%s2] sm:$0x1]
      %v869 = vlaneseq
      %v870 = vshrl.u32 %v869, 7
      %v871 = vsub.s32 0, %v870
      %v872 = vrot.slane %v867, %v871
      %v874 = vmul.f32 %v741, %v872
      %v875 = vmul.f32 %v744, %v872
      %v876 = vmul.f32 %v749, %v872
      %v877 = vmul.f32 %v752, %v872
      %v878 = vmul.f32 %v757, %v872
      %v879 = vmul.f32 %v760, %v872
      %v880 = vmul.f32 %v765, %v872
      %v881 = vmul.f32 %v768, %v872
      %v882 = vmul.f32 %v773, %v872
      %v883 = vmul.f32 %v776, %v872
      %v884 = vmul.f32 %v781, %v872
      %v885 = vmul.f32 %v784, %v872
      %v886 = vmul.f32 %v789, %v872
      %v887 = vmul.f32 %v792, %v872
      %v888 = vmul.f32 %v797, %v872
      %v889 = vmul.f32 %v800, %v872
      %v890 = vmul.f32 %v805, %v872
      %v891 = vmul.f32 %v808, %v872
      %v892 = vmul.f32 %v813, %v872
      %v893 = vmul.f32 %v816, %v872
      %v894 = vmul.f32 %v821, %v872
      %v895 = vmul.f32 %v824, %v872
      %v896 = vmul.f32 %v829, %v872
      %v897 = vmul.f32 %v832, %v872
      %v898 = vmul.f32 %v837, %v872
      %v899 = vmul.f32 %v840, %v872
      %v900 = vmul.f32 %v845, %v872
      %v901 = vmul.f32 %v848, %v872
      %v902 = vmul.f32 %v853, %v872
      %v903 = vmul.f32 %v856, %v872
      %v904 = vmul.f32 %v861, %v872
      %v905 = vmul.f32 %v864, %v872
      %v906 = vld [vmem:[%s3] sm:$0x1]
      %v908 = vlaneseq
      %v909 = vshrl.u32 %v908, 7
      %v910 = vsub.s32 0, %v909
      %v911 = vrot.slane %v906, %v910
      %v913 = vadd.f32 %v874, %v911
      %v914 = vadd.f32 %v875, %v911
      %v915 = vadd.f32 %v876, %v911
      %v916 = vadd.f32 %v877, %v911
      %v917 = vadd.f32 %v878, %v911
      %v918 = vadd.f32 %v879, %v911
      %v919 = vadd.f32 %v880, %v911
      %v920 = vadd.f32 %v881, %v911
      %v921 = vadd.f32 %v882, %v911
      %v922 = vadd.f32 %v883, %v911
      %v923 = vadd.f32 %v884, %v911
      %v924 = vadd.f32 %v885, %v911
      %v925 = vadd.f32 %v886, %v911
      %v926 = vadd.f32 %v887, %v911
      %v927 = vadd.f32 %v888, %v911
      %v928 = vadd.f32 %v889, %v911
      %v929 = vadd.f32 %v890, %v911
      %v930 = vadd.f32 %v891, %v911
      %v931 = vadd.f32 %v892, %v911
      %v932 = vadd.f32 %v893, %v911
      %v933 = vadd.f32 %v894, %v911
      %v934 = vadd.f32 %v895, %v911
      %v935 = vadd.f32 %v896, %v911
      %v936 = vadd.f32 %v897, %v911
      %v937 = vadd.f32 %v898, %v911
      %v938 = vadd.f32 %v899, %v911
      %v939 = vadd.f32 %v900, %v911
      %v940 = vadd.f32 %v901, %v911
      %v941 = vadd.f32 %v902, %v911
      %v942 = vadd.f32 %v903, %v911
      %v943 = vadd.f32 %v904, %v911
      %v944 = vadd.f32 %v905, %v911
      %v945 = vmax.f32 %v913, 0.0
      %v946 = vmax.f32 %v914, 0.0
      %v947 = vmax.f32 %v915, 0.0
      %v948 = vmax.f32 %v916, 0.0
      %v949 = vmax.f32 %v917, 0.0
      %v950 = vmax.f32 %v918, 0.0
      %v951 = vmax.f32 %v919, 0.0
      %v952 = vmax.f32 %v920, 0.0
      %v953 = vmax.f32 %v921, 0.0
      %v954 = vmax.f32 %v922, 0.0
      %v955 = vmax.f32 %v923, 0.0
      %v956 = vmax.f32 %v924, 0.0
      %v957 = vmax.f32 %v925, 0.0
      %v958 = vmax.f32 %v926, 0.0
      %v959 = vmax.f32 %v927, 0.0
      %v960 = vmax.f32 %v928, 0.0
      %v961 = vmax.f32 %v929, 0.0
      %v962 = vmax.f32 %v930, 0.0
      %v963 = vmax.f32 %v931, 0.0
      %v964 = vmax.f32 %v932, 0.0
      %v965 = vmax.f32 %v933, 0.0
      %v966 = vmax.f32 %v934, 0.0
      %v967 = vmax.f32 %v935, 0.0
      %v968 = vmax.f32 %v936, 0.0
      %v969 = vmax.f32 %v937, 0.0
      %v970 = vmax.f32 %v938, 0.0
      %v971 = vmax.f32 %v939, 0.0
      %v972 = vmax.f32 %v940, 0.0
      %v973 = vmax.f32 %v941, 0.0
      %v974 = vmax.f32 %v942, 0.0
      %v975 = vmax.f32 %v943, 0.0
      %v976 = vmax.f32 %v944, 0.0
      %v977 = vmin.f32 %v945, 6.0
      %v978 = vmin.f32 %v946, 6.0
      %v979 = vmin.f32 %v947, 6.0
      %v980 = vmin.f32 %v948, 6.0
      %v981 = vmin.f32 %v949, 6.0
      %v982 = vmin.f32 %v950, 6.0
      %v983 = vmin.f32 %v951, 6.0
      %v984 = vmin.f32 %v952, 6.0
      %v985 = vmin.f32 %v953, 6.0
      %v986 = vmin.f32 %v954, 6.0
      %v987 = vmin.f32 %v955, 6.0
      %v988 = vmin.f32 %v956, 6.0
      %v989 = vmin.f32 %v957, 6.0
      %v990 = vmin.f32 %v958, 6.0
      %v991 = vmin.f32 %v959, 6.0
      %v992 = vmin.f32 %v960, 6.0
      %v993 = vmin.f32 %v961, 6.0
      %v994 = vmin.f32 %v962, 6.0
      %v995 = vmin.f32 %v963, 6.0
      %v996 = vmin.f32 %v964, 6.0
      %v997 = vmin.f32 %v965, 6.0
      %v998 = vmin.f32 %v966, 6.0
      %v999 = vmin.f32 %v967, 6.0
      %v1000 = vmin.f32 %v968, 6.0
      %v1001 = vmin.f32 %v969, 6.0
      %v1002 = vmin.f32 %v970, 6.0
      %v1003 = vmin.f32 %v971, 6.0
      %v1004 = vmin.f32 %v972, 6.0
      %v1005 = vmin.f32 %v973, 6.0
      %v1006 = vmin.f32 %v974, 6.0
      %v1007 = vmin.f32 %v975, 6.0
      %v1008 = vmin.f32 %v976, 6.0
      %s1009 = scalar_lea.vmem [#allocation2], 32
      %1010 = vst [vmem:[%s1009 + $0x8] sm:$0xff] %v977
      %1011 = vst [vmem:[%s1009 + $0x10] sm:$0xff] %v978
      %1012 = vst [vmem:[%s1009 + $0x28] sm:$0xff] %v979
      %1013 = vst [vmem:[%s1009 + $0x30] sm:$0xff] %v980
      %1014 = vst [vmem:[%s1009 + $0x48] sm:$0xff] %v981
      %1015 = vst [vmem:[%s1009 + $0x50] sm:$0xff] %v982
      %1016 = vst [vmem:[%s1009 + $0x68] sm:$0xff] %v983
      %1017 = vst [vmem:[%s1009 + $0x70] sm:$0xff] %v984
      %1018 = vst [vmem:[%s1009 + $0x88] sm:$0xff] %v985
      %1019 = vst [vmem:[%s1009 + $0x90] sm:$0xff] %v986
      %1020 = vst [vmem:[%s1009 + $0xa8] sm:$0xff] %v987
      %1021 = vst [vmem:[%s1009 + $0xb0] sm:$0xff] %v988
      %1022 = vst [vmem:[%s1009 + $0xc8] sm:$0xff] %v989
      %1023 = vst [vmem:[%s1009 + $0xd0] sm:$0xff] %v990
      %1024 = vst [vmem:[%s1009 + $0xe8] sm:$0xff] %v991
      %1025 = vst [vmem:[%s1009 + $0xf0] sm:$0xff] %v992
      %1026 = vst [vmem:[%s1009 + $0x108] sm:$0xff] %v993
      %1027 = vst [vmem:[%s1009 + $0x110] sm:$0xff] %v994
      %1028 = vst [vmem:[%s1009 + $0x128] sm:$0xff] %v995
      %1029 = vst [vmem:[%s1009 + $0x130] sm:$0xff] %v996
      %1030 = vst [vmem:[%s1009 + $0x148] sm:$0xff] %v997
      %1031 = vst [vmem:[%s1009 + $0x150] sm:$0xff] %v998
      %1032 = vst [vmem:[%s1009 + $0x168] sm:$0xff] %v999
      %1033 = vst [vmem:[%s1009 + $0x170] sm:$0xff] %v1000
      %1034 = vst [vmem:[%s1009 + $0x188] sm:$0xff] %v1001
      %1035 = vst [vmem:[%s1009 + $0x190] sm:$0xff] %v1002
      %1036 = vst [vmem:[%s1009 + $0x1a8] sm:$0xff] %v1003
      %1037 = vst [vmem:[%s1009 + $0x1b0] sm:$0xff] %v1004
      %1038 = vst [vmem:[%s1009 + $0x1c8] sm:$0xff] %v1005
      %1039 = vst [vmem:[%s1009 + $0x1d0] sm:$0xff] %v1006
      %1040 = vst [vmem:[%s1009 + $0x1e8] sm:$0xff] %v1007
      %1041 = vst [vmem:[%s1009 + $0x1f0] sm:$0xff] %v1008
      %v1042 = vld [vmem:[#allocation2] sm:$0xff]
      %v1043 = vld [vmem:[#allocation2 + $0x8] sm:$0xff]
      %v1044 = vld [vmem:[#allocation2 + $0x10] sm:$0xff]
      %v1045 = vld [vmem:[#allocation2 + $0x18] sm:$0xff]
      %v1046 = vld [vmem:[#allocation2 + $0x20] sm:$0xff]
      %v1047 = vld [vmem:[#allocation2 + $0x28] sm:$0xff]
      %v1048 = vld [vmem:[#allocation2 + $0x30] sm:$0xff]
      %v1049 = vld [vmem:[#allocation2 + $0x38] sm:$0xff]
      %v1050 = vld [vmem:[#allocation2 + $0x40] sm:$0xff]
      %v1051 = vld [vmem:[#allocation2 + $0x48] sm:$0xff]
      %v1052 = vld [vmem:[#allocation2 + $0x50] sm:$0xff]
      %v1053 = vld [vmem:[#allocation2 + $0x58] sm:$0xff]
      %v1054 = vld [vmem:[#allocation2 + $0x60] sm:$0xff]
      %v1055 = vld [vmem:[#allocation2 + $0x68] sm:$0xff]
      %v1056 = vld [vmem:[#allocation2 + $0x70] sm:$0xff]
      %v1057 = vld [vmem:[#allocation2 + $0x78] sm:$0xff]
      %v1058 = vld [vmem:[#allocation2 + $0x80] sm:$0xff]
      %v1059 = vld [vmem:[#allocation2 + $0x88] sm:$0xff]
      %v1060 = vld [vmem:[#allocation2 + $0x90] sm:$0xff]
      %v1061 = vld [vmem:[#allocation2 + $0x98] sm:$0xff]
      %v1062 = vld [vmem:[#allocation2 + $0xa0] sm:$0xff]
      %v1063 = vld [vmem:[#allocation2 + $0xa8] sm:$0xff]
      %v1064 = vld [vmem:[#allocation2 + $0xb0] sm:$0xff]
      %v1065 = vld [vmem:[#allocation2 + $0xb8] sm:$0xff]
      %v1066 = vld [vmem:[#allocation2 + $0xc0] sm:$0xff]
      %v1067 = vld [vmem:[#allocation2 + $0xc8] sm:$0xff]
      %v1068 = vld [vmem:[#allocation2 + $0xd0] sm:$0xff]
      %v1069 = vld [vmem:[#allocation2 + $0xd8] sm:$0xff]
      %v1070 = vld [vmem:[#allocation2 + $0xe0] sm:$0xff]
      %v1071 = vld [vmem:[#allocation2 + $0xe8] sm:$0xff]
      %v1072 = vld [vmem:[#allocation2 + $0xf0] sm:$0xff]
      %v1073 = vld [vmem:[#allocation2 + $0xf8] sm:$0xff]
      %v1074 = vld [vmem:[#allocation2 + $0x100] sm:$0xff]
      %v1075 = vld [vmem:[#allocation2 + $0x108] sm:$0xff]
      %v1076 = vld [vmem:[#allocation2 + $0x110] sm:$0xff]
      %v1077 = vld [vmem:[#allocation2 + $0x118] sm:$0xff]
      %v1078 = vld [vmem:[#allocation2 + $0x120] sm:$0xff]
      %v1079 = vld [vmem:[#allocation2 + $0x128] sm:$0xff]
      %v1080 = vld [vmem:[#allocation2 + $0x130] sm:$0xff]
      %v1081 = vld [vmem:[#allocation2 + $0x138] sm:$0xff]
      %v1082 = vld [vmem:[#allocation2 + $0x140] sm:$0xff]
      %v1083 = vld [vmem:[#allocation2 + $0x148] sm:$0xff]
      %v1084 = vld [vmem:[#allocation2 + $0x150] sm:$0xff]
      %v1085 = vld [vmem:[#allocation2 + $0x158] sm:$0xff]
      %v1086 = vld [vmem:[#allocation2 + $0x160] sm:$0xff]
      %v1087 = vld [vmem:[#allocation2 + $0x168] sm:$0xff]
      %v1088 = vld [vmem:[#allocation2 + $0x170] sm:$0xff]
      %v1089 = vld [vmem:[#allocation2 + $0x178] sm:$0xff]
      %v1090 = vld [vmem:[#allocation2 + $0x180] sm:$0xff]
      %v1091 = vld [vmem:[#allocation2 + $0x188] sm:$0xff]
      %v1092 = vld [vmem:[#allocation2 + $0x190] sm:$0xff]
      %v1093 = vld [vmem:[#allocation2 + $0x198] sm:$0xff]
      %v1094 = vld [vmem:[#allocation2 + $0x1a0] sm:$0xff]
      %v1095 = vld [vmem:[#allocation2 + $0x1a8] sm:$0xff]
      %v1096 = vld [vmem:[#allocation2 + $0x1b0] sm:$0xff]
      %v1097 = vld [vmem:[#allocation2 + $0x1b8] sm:$0xff]
      %v1098 = vld [vmem:[#allocation2 + $0x1c0] sm:$0xff]
      %v1099 = vld [vmem:[#allocation2 + $0x1c8] sm:$0xff]
      %v1100 = vld [vmem:[#allocation2 + $0x1d0] sm:$0xff]
      %v1101 = vld [vmem:[#allocation2 + $0x1d8] sm:$0xff]
      %v1102 = vld [vmem:[#allocation2 + $0x1e0] sm:$0xff]
      %v1103 = vld [vmem:[#allocation2 + $0x1e8] sm:$0xff]
      %v1104 = vld [vmem:[#allocation2 + $0x1f0] sm:$0xff]
      %v1105 = vld [vmem:[#allocation2 + $0x1f8] sm:$0xff]
      %vm1138 = vcmask 1046528
      %v1139 = vrot.slane %v1043, 1
      %v1140 = vrot.slane %v1044, 1
      %v1141 = vsel %vm1138, %v1139, %v1140
      %v1142 = vrot.slane %v1047, 1
      %v1143 = vrot.slane %v1048, 1
      %v1144 = vsel %vm1138, %v1142, %v1143
      %v1145 = vrot.slane %v1051, 1
      %v1146 = vrot.slane %v1052, 1
      %v1147 = vsel %vm1138, %v1145, %v1146
      %v1148 = vrot.slane %v1055, 1
      %v1149 = vrot.slane %v1056, 1
      %v1150 = vsel %vm1138, %v1148, %v1149
      %v1151 = vrot.slane %v1059, 1
      %v1152 = vrot.slane %v1060, 1
      %v1153 = vsel %vm1138, %v1151, %v1152
      %v1154 = vrot.slane %v1063, 1
      %v1155 = vrot.slane %v1064, 1
      %v1156 = vsel %vm1138, %v1154, %v1155
      %v1157 = vrot.slane %v1067, 1
      %v1158 = vrot.slane %v1068, 1
      %v1159 = vsel %vm1138, %v1157, %v1158
      %v1160 = vrot.slane %v1071, 1
      %v1161 = vrot.slane %v1072, 1
      %v1162 = vsel %vm1138, %v1160, %v1161
      %v1163 = vrot.slane %v1075, 1
      %v1164 = vrot.slane %v1076, 1
      %v1165 = vsel %vm1138, %v1163, %v1164
      %v1166 = vrot.slane %v1079, 1
      %v1167 = vrot.slane %v1080, 1
      %v1168 = vsel %vm1138, %v1166, %v1167
      %v1169 = vrot.slane %v1083, 1
      %v1170 = vrot.slane %v1084, 1
      %v1171 = vsel %vm1138, %v1169, %v1170
      %v1172 = vrot.slane %v1087, 1
      %v1173 = vrot.slane %v1088, 1
      %v1174 = vsel %vm1138, %v1172, %v1173
      %v1175 = vrot.slane %v1091, 1
      %v1176 = vrot.slane %v1092, 1
      %v1177 = vsel %vm1138, %v1175, %v1176
      %v1178 = vrot.slane %v1095, 1
      %v1179 = vrot.slane %v1096, 1
      %v1180 = vsel %vm1138, %v1178, %v1179
      %v1181 = vrot.slane %v1099, 1
      %v1182 = vrot.slane %v1100, 1
      %v1183 = vsel %vm1138, %v1181, %v1182
      %v1184 = vrot.slane %v1103, 1
      %v1185 = vrot.slane %v1104, 1
      %v1186 = vsel %vm1138, %v1184, %v1185
      %vm1203 = vcmask 1045504
      %v1204 = vrot.slane %v1043, 2
      %v1205 = vrot.slane %v1044, 2
      %v1206 = vsel %vm1203, %v1204, %v1205
      %v1207 = vrot.slane %v1045, 2
      %v1208 = vsel %vm1203, %v1205, %v1207
      %v1209 = vrot.slane %v1047, 2
      %v1210 = vrot.slane %v1048, 2
      %v1211 = vsel %vm1203, %v1209, %v1210
      %v1212 = vrot.slane %v1049, 2
      %v1213 = vsel %vm1203, %v1210, %v1212
      %v1214 = vrot.slane %v1051, 2
      %v1215 = vrot.slane %v1052, 2
      %v1216 = vsel %vm1203, %v1214, %v1215
      %v1217 = vrot.slane %v1053, 2
      %v1218 = vsel %vm1203, %v1215, %v1217
      %v1219 = vrot.slane %v1055, 2
      %v1220 = vrot.slane %v1056, 2
      %v1221 = vsel %vm1203, %v1219, %v1220
      %v1222 = vrot.slane %v1057, 2
      %v1223 = vsel %vm1203, %v1220, %v1222
      %v1224 = vrot.slane %v1059, 2
      %v1225 = vrot.slane %v1060, 2
      %v1226 = vsel %vm1203, %v1224, %v1225
      %v1227 = vrot.slane %v1061, 2
      %v1228 = vsel %vm1203, %v1225, %v1227
      %v1229 = vrot.slane %v1063, 2
      %v1230 = vrot.slane %v1064, 2
      %v1231 = vsel %vm1203, %v1229, %v1230
      %v1232 = vrot.slane %v1065, 2
      %v1233 = vsel %vm1203, %v1230, %v1232
      %v1234 = vrot.slane %v1067, 2
      %v1235 = vrot.slane %v1068, 2
      %v1236 = vsel %vm1203, %v1234, %v1235
      %v1237 = vrot.slane %v1069, 2
      %v1238 = vsel %vm1203, %v1235, %v1237
      %v1239 = vrot.slane %v1071, 2
      %v1240 = vrot.slane %v1072, 2
      %v1241 = vsel %vm1203, %v1239, %v1240
      %v1242 = vrot.slane %v1073, 2
      %v1243 = vsel %vm1203, %v1240, %v1242
      %v1244 = vrot.slane %v1075, 2
      %v1245 = vrot.slane %v1076, 2
      %v1246 = vsel %vm1203, %v1244, %v1245
      %v1247 = vrot.slane %v1077, 2
      %v1248 = vsel %vm1203, %v1245, %v1247
      %v1249 = vrot.slane %v1079, 2
      %v1250 = vrot.slane %v1080, 2
      %v1251 = vsel %vm1203, %v1249, %v1250
      %v1252 = vrot.slane %v1081, 2
      %v1253 = vsel %vm1203, %v1250, %v1252
      %v1254 = vrot.slane %v1083, 2
      %v1255 = vrot.slane %v1084, 2
      %v1256 = vsel %vm1203, %v1254, %v1255
      %v1257 = vrot.slane %v1085, 2
      %v1258 = vsel %vm1203, %v1255, %v1257
      %v1259 = vrot.slane %v1087, 2
      %v1260 = vrot.slane %v1088, 2
      %v1261 = vsel %vm1203, %v1259, %v1260
      %v1262 = vrot.slane %v1089, 2
      %v1263 = vsel %vm1203, %v1260, %v1262
      %v1264 = vrot.slane %v1091, 2
      %v1265 = vrot.slane %v1092, 2
      %v1266 = vsel %vm1203, %v1264, %v1265
      %v1267 = vrot.slane %v1093, 2
      %v1268 = vsel %vm1203, %v1265, %v1267
      %v1269 = vrot.slane %v1095, 2
      %v1270 = vrot.slane %v1096, 2
      %v1271 = vsel %vm1203, %v1269, %v1270
      %v1272 = vrot.slane %v1097, 2
      %v1273 = vsel %vm1203, %v1270, %v1272
      %v1274 = vrot.slane %v1099, 2
      %v1275 = vrot.slane %v1100, 2
      %v1276 = vsel %vm1203, %v1274, %v1275
      %v1277 = vrot.slane %v1101, 2
      %v1278 = vsel %vm1203, %v1275, %v1277
      %v1279 = vrot.slane %v1103, 2
      %v1280 = vrot.slane %v1104, 2
      %v1281 = vsel %vm1203, %v1279, %v1280
      %v1282 = vrot.slane %v1105, 2
      %v1283 = vsel %vm1203, %v1280, %v1282
      %vm1300 = vcmask 1040384
      %v1301 = vrot.slane %v1042, 7
      %v1302 = vrot.slane %v1043, 7
      %v1303 = vsel %vm1300, %v1301, %v1302
      %v1304 = vrot.slane %v1139, 7
      %v1305 = vrot.slane %v1141, 7
      %v1306 = vsel %vm1300, %v1304, %v1305
      %v1307 = vrot.slane %v1204, 7
      %v1308 = vrot.slane %v1206, 7
      %v1309 = vsel %vm1300, %v1307, %v1308
      %v1310 = vrot.slane %v1044, 7
      %v1311 = vsel %vm1300, %v1302, %v1310
      %v1312 = vrot.slane %v1140, 7
      %v1313 = vsel %vm1300, %v1305, %v1312
      %v1314 = vrot.slane %v1208, 7
      %v1315 = vsel %vm1300, %v1308, %v1314
      %v1316 = vrot.slane %v1046, 7
      %v1317 = vrot.slane %v1047, 7
      %v1318 = vsel %vm1300, %v1316, %v1317
      %v1319 = vrot.slane %v1142, 7
      %v1320 = vrot.slane %v1144, 7
      %v1321 = vsel %vm1300, %v1319, %v1320
      %v1322 = vrot.slane %v1209, 7
      %v1323 = vrot.slane %v1211, 7
      %v1324 = vsel %vm1300, %v1322, %v1323
      %v1325 = vrot.slane %v1048, 7
      %v1326 = vsel %vm1300, %v1317, %v1325
      %v1327 = vrot.slane %v1143, 7
      %v1328 = vsel %vm1300, %v1320, %v1327
      %v1329 = vrot.slane %v1213, 7
      %v1330 = vsel %vm1300, %v1323, %v1329
      %v1331 = vrot.slane %v1050, 7
      %v1332 = vrot.slane %v1051, 7
      %v1333 = vsel %vm1300, %v1331, %v1332
      %v1334 = vrot.slane %v1145, 7
      %v1335 = vrot.slane %v1147, 7
      %v1336 = vsel %vm1300, %v1334, %v1335
      %v1337 = vrot.slane %v1214, 7
      %v1338 = vrot.slane %v1216, 7
      %v1339 = vsel %vm1300, %v1337, %v1338
      %v1340 = vrot.slane %v1052, 7
      %v1341 = vsel %vm1300, %v1332, %v1340
      %v1342 = vrot.slane %v1146, 7
      %v1343 = vsel %vm1300, %v1335, %v1342
      %v1344 = vrot.slane %v1218, 7
      %v1345 = vsel %vm1300, %v1338, %v1344
      %v1346 = vrot.slane %v1054, 7
      %v1347 = vrot.slane %v1055, 7
      %v1348 = vsel %vm1300, %v1346, %v1347
      %v1349 = vrot.slane %v1148, 7
      %v1350 = vrot.slane %v1150, 7
      %v1351 = vsel %vm1300, %v1349, %v1350
      %v1352 = vrot.slane %v1219, 7
      %v1353 = vrot.slane %v1221, 7
      %v1354 = vsel %vm1300, %v1352, %v1353
      %v1355 = vrot.slane %v1056, 7
      %v1356 = vsel %vm1300, %v1347, %v1355
      %v1357 = vrot.slane %v1149, 7
      %v1358 = vsel %vm1300, %v1350, %v1357
      %v1359 = vrot.slane %v1223, 7
      %v1360 = vsel %vm1300, %v1353, %v1359
      %v1361 = vrot.slane %v1058, 7
      %v1362 = vrot.slane %v1059, 7
      %v1363 = vsel %vm1300, %v1361, %v1362
      %v1364 = vrot.slane %v1151, 7
      %v1365 = vrot.slane %v1153, 7
      %v1366 = vsel %vm1300, %v1364, %v1365
      %v1367 = vrot.slane %v1224, 7
      %v1368 = vrot.slane %v1226, 7
      %v1369 = vsel %vm1300, %v1367, %v1368
      %v1370 = vrot.slane %v1060, 7
      %v1371 = vsel %vm1300, %v1362, %v1370
      %v1372 = vrot.slane %v1152, 7
      %v1373 = vsel %vm1300, %v1365, %v1372
      %v1374 = vrot.slane %v1228, 7
      %v1375 = vsel %vm1300, %v1368, %v1374
      %v1376 = vrot.slane %v1062, 7
      %v1377 = vrot.slane %v1063, 7
      %v1378 = vsel %vm1300, %v1376, %v1377
      %v1379 = vrot.slane %v1154, 7
      %v1380 = vrot.slane %v1156, 7
      %v1381 = vsel %vm1300, %v1379, %v1380
      %v1382 = vrot.slane %v1229, 7
      %v1383 = vrot.slane %v1231, 7
      %v1384 = vsel %vm1300, %v1382, %v1383
      %v1385 = vrot.slane %v1064, 7
      %v1386 = vsel %vm1300, %v1377, %v1385
      %v1387 = vrot.slane %v1155, 7
      %v1388 = vsel %vm1300, %v1380, %v1387
      %v1389 = vrot.slane %v1233, 7
      %v1390 = vsel %vm1300, %v1383, %v1389
      %v1391 = vrot.slane %v1066, 7
      %v1392 = vrot.slane %v1067, 7
      %v1393 = vsel %vm1300, %v1391, %v1392
      %v1394 = vrot.slane %v1157, 7
      %v1395 = vrot.slane %v1159, 7
      %v1396 = vsel %vm1300, %v1394, %v1395
      %v1397 = vrot.slane %v1234, 7
      %v1398 = vrot.slane %v1236, 7
      %v1399 = vsel %vm1300, %v1397, %v1398
      %v1400 = vrot.slane %v1068, 7
      %v1401 = vsel %vm1300, %v1392, %v1400
      %v1402 = vrot.slane %v1158, 7
      %v1403 = vsel %vm1300, %v1395, %v1402
      %v1404 = vrot.slane %v1238, 7
      %v1405 = vsel %vm1300, %v1398, %v1404
      %v1406 = vrot.slane %v1070, 7
      %v1407 = vrot.slane %v1071, 7
      %v1408 = vsel %vm1300, %v1406, %v1407
      %v1409 = vrot.slane %v1160, 7
      %v1410 = vrot.slane %v1162, 7
      %v1411 = vsel %vm1300, %v1409, %v1410
      %v1412 = vrot.slane %v1239, 7
      %v1413 = vrot.slane %v1241, 7
      %v1414 = vsel %vm1300, %v1412, %v1413
      %v1415 = vrot.slane %v1072, 7
      %v1416 = vsel %vm1300, %v1407, %v1415
      %v1417 = vrot.slane %v1161, 7
      %v1418 = vsel %vm1300, %v1410, %v1417
      %v1419 = vrot.slane %v1243, 7
      %v1420 = vsel %vm1300, %v1413, %v1419
      %v1421 = vrot.slane %v1074, 7
      %v1422 = vrot.slane %v1075, 7
      %v1423 = vsel %vm1300, %v1421, %v1422
      %v1424 = vrot.slane %v1163, 7
      %v1425 = vrot.slane %v1165, 7
      %v1426 = vsel %vm1300, %v1424, %v1425
      %v1427 = vrot.slane %v1244, 7
      %v1428 = vrot.slane %v1246, 7
      %v1429 = vsel %vm1300, %v1427, %v1428
      %v1430 = vrot.slane %v1076, 7
      %v1431 = vsel %vm1300, %v1422, %v1430
      %v1432 = vrot.slane %v1164, 7
      %v1433 = vsel %vm1300, %v1425, %v1432
      %v1434 = vrot.slane %v1248, 7
      %v1435 = vsel %vm1300, %v1428, %v1434
      %v1436 = vrot.slane %v1078, 7
      %v1437 = vrot.slane %v1079, 7
      %v1438 = vsel %vm1300, %v1436, %v1437
      %v1439 = vrot.slane %v1166, 7
      %v1440 = vrot.slane %v1168, 7
      %v1441 = vsel %vm1300, %v1439, %v1440
      %v1442 = vrot.slane %v1249, 7
      %v1443 = vrot.slane %v1251, 7
      %v1444 = vsel %vm1300, %v1442, %v1443
      %v1445 = vrot.slane %v1080, 7
      %v1446 = vsel %vm1300, %v1437, %v1445
      %v1447 = vrot.slane %v1167, 7
      %v1448 = vsel %vm1300, %v1440, %v1447
      %v1449 = vrot.slane %v1253, 7
      %v1450 = vsel %vm1300, %v1443, %v1449
      %v1451 = vrot.slane %v1082, 7
      %v1452 = vrot.slane %v1083, 7
      %v1453 = vsel %vm1300, %v1451, %v1452
      %v1454 = vrot.slane %v1169, 7
      %v1455 = vrot.slane %v1171, 7
      %v1456 = vsel %vm1300, %v1454, %v1455
      %v1457 = vrot.slane %v1254, 7
      %v1458 = vrot.slane %v1256, 7
      %v1459 = vsel %vm1300, %v1457, %v1458
      %v1460 = vrot.slane %v1084, 7
      %v1461 = vsel %vm1300, %v1452, %v1460
      %v1462 = vrot.slane %v1170, 7
      %v1463 = vsel %vm1300, %v1455, %v1462
      %v1464 = vrot.slane %v1258, 7
      %v1465 = vsel %vm1300, %v1458, %v1464
      %v1466 = vrot.slane %v1086, 7
      %v1467 = vrot.slane %v1087, 7
      %v1468 = vsel %vm1300, %v1466, %v1467
      %v1469 = vrot.slane %v1172, 7
      %v1470 = vrot.slane %v1174, 7
      %v1471 = vsel %vm1300, %v1469, %v1470
      %v1472 = vrot.slane %v1259, 7
      %v1473 = vrot.slane %v1261, 7
      %v1474 = vsel %vm1300, %v1472, %v1473
      %v1475 = vrot.slane %v1088, 7
      %v1476 = vsel %vm1300, %v1467, %v1475
      %v1477 = vrot.slane %v1173, 7
      %v1478 = vsel %vm1300, %v1470, %v1477
      %v1479 = vrot.slane %v1263, 7
      %v1480 = vsel %vm1300, %v1473, %v1479
      %v1481 = vrot.slane %v1090, 7
      %v1482 = vrot.slane %v1091, 7
      %v1483 = vsel %vm1300, %v1481, %v1482
      %v1484 = vrot.slane %v1175, 7
      %v1485 = vrot.slane %v1177, 7
      %v1486 = vsel %vm1300, %v1484, %v1485
      %v1487 = vrot.slane %v1264, 7
      %v1488 = vrot.slane %v1266, 7
      %v1489 = vsel %vm1300, %v1487, %v1488
      %v1490 = vrot.slane %v1092, 7
      %v1491 = vsel %vm1300, %v1482, %v1490
      %v1492 = vrot.slane %v1176, 7
      %v1493 = vsel %vm1300, %v1485, %v1492
      %v1494 = vrot.slane %v1268, 7
      %v1495 = vsel %vm1300, %v1488, %v1494
      %v1496 = vrot.slane %v1094, 7
      %v1497 = vrot.slane %v1095, 7
      %v1498 = vsel %vm1300, %v1496, %v1497
      %v1499 = vrot.slane %v1178, 7
      %v1500 = vrot.slane %v1180, 7
      %v1501 = vsel %vm1300, %v1499, %v1500
      %v1502 = vrot.slane %v1269, 7
      %v1503 = vrot.slane %v1271, 7
      %v1504 = vsel %vm1300, %v1502, %v1503
      %v1505 = vrot.slane %v1096, 7
      %v1506 = vsel %vm1300, %v1497, %v1505
      %v1507 = vrot.slane %v1179, 7
      %v1508 = vsel %vm1300, %v1500, %v1507
      %v1509 = vrot.slane %v1273, 7
      %v1510 = vsel %vm1300, %v1503, %v1509
      %v1511 = vrot.slane %v1098, 7
      %v1512 = vrot.slane %v1099, 7
      %v1513 = vsel %vm1300, %v1511, %v1512
      %v1514 = vrot.slane %v1181, 7
      %v1515 = vrot.slane %v1183, 7
      %v1516 = vsel %vm1300, %v1514, %v1515
      %v1517 = vrot.slane %v1274, 7
      %v1518 = vrot.slane %v1276, 7
      %v1519 = vsel %vm1300, %v1517, %v1518
      %v1520 = vrot.slane %v1100, 7
      %v1521 = vsel %vm1300, %v1512, %v1520
      %v1522 = vrot.slane %v1182, 7
      %v1523 = vsel %vm1300, %v1515, %v1522
      %v1524 = vrot.slane %v1278, 7
      %v1525 = vsel %vm1300, %v1518, %v1524
      %v1526 = vrot.slane %v1102, 7
      %v1527 = vrot.slane %v1103, 7
      %v1528 = vsel %vm1300, %v1526, %v1527
      %v1529 = vrot.slane %v1184, 7
      %v1530 = vrot.slane %v1186, 7
      %v1531 = vsel %vm1300, %v1529, %v1530
      %v1532 = vrot.slane %v1279, 7
      %v1533 = vrot.slane %v1281, 7
      %v1534 = vsel %vm1300, %v1532, %v1533
      %v1535 = vrot.slane %v1104, 7
      %v1536 = vsel %vm1300, %v1527, %v1535
      %v1537 = vrot.slane %v1185, 7
      %v1538 = vsel %vm1300, %v1530, %v1537
      %v1539 = vrot.slane %v1283, 7
      %v1540 = vsel %vm1300, %v1533, %v1539
      %v1637 = vpack.c.bf16 %v1311, %v1303
      %v1638 = vpack.c.bf16 %v1313, %v1306
      %v1639 = vpack.c.bf16 %v1315, %v1309
      %v1640 = vpack.c.bf16 %v1326, %v1318
      %v1641 = vpack.c.bf16 %v1328, %v1321
      %v1642 = vpack.c.bf16 %v1330, %v1324
      %v1643 = vpack.c.bf16 %v1341, %v1333
      %v1644 = vpack.c.bf16 %v1343, %v1336
      %v1645 = vpack.c.bf16 %v1345, %v1339
      %v1646 = vpack.c.bf16 %v1356, %v1348
      %v1647 = vpack.c.bf16 %v1358, %v1351
      %v1648 = vpack.c.bf16 %v1360, %v1354
      %v1649 = vpack.c.bf16 %v1371, %v1363
      %v1650 = vpack.c.bf16 %v1373, %v1366
      %v1651 = vpack.c.bf16 %v1375, %v1369
      %v1652 = vpack.c.bf16 %v1386, %v1378
      %v1653 = vpack.c.bf16 %v1388, %v1381
      %v1654 = vpack.c.bf16 %v1390, %v1384
      %v1655 = vpack.c.bf16 %v1401, %v1393
      %v1656 = vpack.c.bf16 %v1403, %v1396
      %v1657 = vpack.c.bf16 %v1405, %v1399
      %v1658 = vpack.c.bf16 %v1416, %v1408
      %v1659 = vpack.c.bf16 %v1418, %v1411
      %v1660 = vpack.c.bf16 %v1420, %v1414
      %v1661 = vpack.c.bf16 %v1431, %v1423
      %v1662 = vpack.c.bf16 %v1433, %v1426
      %v1663 = vpack.c.bf16 %v1435, %v1429
      %v1664 = vpack.c.bf16 %v1446, %v1438
      %v1665 = vpack.c.bf16 %v1448, %v1441
      %v1666 = vpack.c.bf16 %v1450, %v1444
      %v1667 = vpack.c.bf16 %v1461, %v1453
      %v1668 = vpack.c.bf16 %v1463, %v1456
      %v1669 = vpack.c.bf16 %v1465, %v1459
      %v1670 = vpack.c.bf16 %v1476, %v1468
      %v1671 = vpack.c.bf16 %v1478, %v1471
      %v1672 = vpack.c.bf16 %v1480, %v1474
      %v1673 = vpack.c.bf16 %v1491, %v1483
      %v1674 = vpack.c.bf16 %v1493, %v1486
      %v1675 = vpack.c.bf16 %v1495, %v1489
      %v1676 = vpack.c.bf16 %v1506, %v1498
      %v1677 = vpack.c.bf16 %v1508, %v1501
      %v1678 = vpack.c.bf16 %v1510, %v1504
      %v1679 = vpack.c.bf16 %v1521, %v1513
      %v1680 = vpack.c.bf16 %v1523, %v1516
      %v1681 = vpack.c.bf16 %v1525, %v1519
      %v1682 = vpack.c.bf16 %v1536, %v1528
      %v1683 = vpack.c.bf16 %v1538, %v1531
      %v1684 = vpack.c.bf16 %v1540, %v1534
      %v1685 = vld [vmem:[%s4] sm:$0xf]
      %v1686 = vld [vmem:[%s4 + $0x4] sm:$0xf]
      %v1687 = vld [vmem:[%s4 + $0x8] sm:$0xf]
      %v1688 = vld [vmem:[%s4 + $0xc] sm:$0xf]
      %v1689 = vld [vmem:[%s4 + $0x10] sm:$0xf]
      %v1690 = vld [vmem:[%s4 + $0x14] sm:$0xf]
      %v1691 = vld [vmem:[%s4 + $0x18] sm:$0xf]
      %v1692 = vld [vmem:[%s4 + $0x1c] sm:$0xf]
      %v1693 = vld [vmem:[%s4 + $0x20] sm:$0xf]
      %v1694 = vld [vmem:[%s4 + $0x24] sm:$0xf]
      %v1695 = vld [vmem:[%s4 + $0x28] sm:$0xf]
      %v1696 = vld [vmem:[%s4 + $0x2c] sm:$0xf]
      %v1697 = vld [vmem:[%s4 + $0x30] sm:$0xf]
      %v1698 = vld [vmem:[%s4 + $0x34] sm:$0xf]
      %v1699 = vld [vmem:[%s4 + $0x38] sm:$0xf]
      %v1700 = vld [vmem:[%s4 + $0x3c] sm:$0xf]
      %v1701 = vld [vmem:[%s4 + $0x40] sm:$0xf]
      %v1702 = vld [vmem:[%s4 + $0x44] sm:$0xf]
      %v1703 = vld [vmem:[%s4 + $0x48] sm:$0xf]
      %v1704 = vld [vmem:[%s4 + $0x4c] sm:$0xf]
      %v1705 = vld [vmem:[%s4 + $0x50] sm:$0xf]
      %v1706 = vld [vmem:[%s4 + $0x54] sm:$0xf]
      %v1707 = vld [vmem:[%s4 + $0x58] sm:$0xf]
      %v1708 = vld [vmem:[%s4 + $0x5c] sm:$0xf]
      %v1709 = vld [vmem:[%s4 + $0x60] sm:$0xf]
      %v1710 = vld [vmem:[%s4 + $0x64] sm:$0xf]
      %v1711 = vld [vmem:[%s4 + $0x68] sm:$0xf]
      %v1712 = vld [vmem:[%s4 + $0x6c] sm:$0xf]
      %v1713 = vld [vmem:[%s4 + $0x70] sm:$0xf]
      %v1714 = vld [vmem:[%s4 + $0x74] sm:$0xf]
      %v1715 = vld [vmem:[%s4 + $0x78] sm:$0xf]
      %v1716 = vld [vmem:[%s4 + $0x7c] sm:$0xf]
      %v1717 = vld [vmem:[%s4 + $0x80] sm:$0xf]
      %v1718 = vld [vmem:[%s4 + $0x84] sm:$0xf]
      %v1719 = vld [vmem:[%s4 + $0x88] sm:$0xf]
      %v1720 = vld [vmem:[%s4 + $0x8c] sm:$0xf]
      %v1721 = vld [vmem:[%s4 + $0x90] sm:$0xf]
      %v1722 = vld [vmem:[%s4 + $0x94] sm:$0xf]
      %v1723 = vld [vmem:[%s4 + $0x98] sm:$0xf]
      %v1724 = vld [vmem:[%s4 + $0x9c] sm:$0xf]
      %v1725 = vld [vmem:[%s4 + $0xa0] sm:$0xf]
      %v1726 = vld [vmem:[%s4 + $0xa4] sm:$0xf]
      %v1727 = vld [vmem:[%s4 + $0xa8] sm:$0xf]
      %v1728 = vld [vmem:[%s4 + $0xac] sm:$0xf]
      %v1729 = vld [vmem:[%s4 + $0xb0] sm:$0xf]
      %v1730 = vld [vmem:[%s4 + $0xb4] sm:$0xf]
      %v1731 = vld [vmem:[%s4 + $0xb8] sm:$0xf]
      %v1732 = vld [vmem:[%s4 + $0xbc] sm:$0xf]
      %v1733 = vld [vmem:[%s1009] sm:$0xff]
      %v1734 = vld [vmem:[%s1009 + $0x8] sm:$0xff]
      %v1735 = vld [vmem:[%s1009 + $0x10] sm:$0xff]
      %v1736 = vld [vmem:[%s1009 + $0x18] sm:$0xff]
      %v1737 = vld [vmem:[%s1009 + $0x20] sm:$0xff]
      %v1738 = vld [vmem:[%s1009 + $0x28] sm:$0xff]
      %v1739 = vld [vmem:[%s1009 + $0x30] sm:$0xff]
      %v1740 = vld [vmem:[%s1009 + $0x38] sm:$0xff]
      %v1741 = vld [vmem:[%s1009 + $0x40] sm:$0xff]
      %v1742 = vld [vmem:[%s1009 + $0x48] sm:$0xff]
      %v1743 = vld [vmem:[%s1009 + $0x50] sm:$0xff]
      %v1744 = vld [vmem:[%s1009 + $0x58] sm:$0xff]
      %v1745 = vld [vmem:[%s1009 + $0x60] sm:$0xff]
      %v1746 = vld [vmem:[%s1009 + $0x68] sm:$0xff]
      %v1747 = vld [vmem:[%s1009 + $0x70] sm:$0xff]
      %v1748 = vld [vmem:[%s1009 + $0x78] sm:$0xff]
      %v1749 = vld [vmem:[%s1009 + $0x80] sm:$0xff]
      %v1750 = vld [vmem:[%s1009 + $0x88] sm:$0xff]
      %v1751 = vld [vmem:[%s1009 + $0x90] sm:$0xff]
      %v1752 = vld [vmem:[%s1009 + $0x98] sm:$0xff]
      %v1753 = vld [vmem:[%s1009 + $0xa0] sm:$0xff]
      %v1754 = vld [vmem:[%s1009 + $0xa8] sm:$0xff]
      %v1755 = vld [vmem:[%s1009 + $0xb0] sm:$0xff]
      %v1756 = vld [vmem:[%s1009 + $0xb8] sm:$0xff]
      %v1757 = vld [vmem:[%s1009 + $0xc0] sm:$0xff]
      %v1758 = vld [vmem:[%s1009 + $0xc8] sm:$0xff]
      %v1759 = vld [vmem:[%s1009 + $0xd0] sm:$0xff]
      %v1760 = vld [vmem:[%s1009 + $0xd8] sm:$0xff]
      %v1761 = vld [vmem:[%s1009 + $0xe0] sm:$0xff]
      %v1762 = vld [vmem:[%s1009 + $0xe8] sm:$0xff]
      %v1763 = vld [vmem:[%s1009 + $0xf0] sm:$0xff]
      %v1764 = vld [vmem:[%s1009 + $0xf8] sm:$0xff]
      %v1765 = vld [vmem:[%s1009 + $0x100] sm:$0xff]
      %v1766 = vld [vmem:[%s1009 + $0x108] sm:$0xff]
      %v1767 = vld [vmem:[%s1009 + $0x110] sm:$0xff]
      %v1768 = vld [vmem:[%s1009 + $0x118] sm:$0xff]
      %v1769 = vld [vmem:[%s1009 + $0x120] sm:$0xff]
      %v1770 = vld [vmem:[%s1009 + $0x128] sm:$0xff]
      %v1771 = vld [vmem:[%s1009 + $0x130] sm:$0xff]
      %v1772 = vld [vmem:[%s1009 + $0x138] sm:$0xff]
      %v1773 = vld [vmem:[%s1009 + $0x140] sm:$0xff]
      %v1774 = vld [vmem:[%s1009 + $0x148] sm:$0xff]
      %v1775 = vld [vmem:[%s1009 + $0x150] sm:$0xff]
      %v1776 = vld [vmem:[%s1009 + $0x158] sm:$0xff]
      %v1777 = vld [vmem:[%s1009 + $0x160] sm:$0xff]
      %v1778 = vld [vmem:[%s1009 + $0x168] sm:$0xff]
      %v1779 = vld [vmem:[%s1009 + $0x170] sm:$0xff]
      %v1780 = vld [vmem:[%s1009 + $0x178] sm:$0xff]
      %v1781 = vld [vmem:[%s1009 + $0x180] sm:$0xff]
      %v1782 = vld [vmem:[%s1009 + $0x188] sm:$0xff]
      %v1783 = vld [vmem:[%s1009 + $0x190] sm:$0xff]
      %v1784 = vld [vmem:[%s1009 + $0x198] sm:$0xff]
      %v1785 = vld [vmem:[%s1009 + $0x1a0] sm:$0xff]
      %v1786 = vld [vmem:[%s1009 + $0x1a8] sm:$0xff]
      %v1787 = vld [vmem:[%s1009 + $0x1b0] sm:$0xff]
      %v1788 = vld [vmem:[%s1009 + $0x1b8] sm:$0xff]
      %v1789 = vld [vmem:[%s1009 + $0x1c0] sm:$0xff]
      %v1790 = vld [vmem:[%s1009 + $0x1c8] sm:$0xff]
      %v1791 = vld [vmem:[%s1009 + $0x1d0] sm:$0xff]
      %v1792 = vld [vmem:[%s1009 + $0x1d8] sm:$0xff]
      %v1793 = vld [vmem:[%s1009 + $0x1e0] sm:$0xff]
      %v1794 = vld [vmem:[%s1009 + $0x1e8] sm:$0xff]
      %v1795 = vld [vmem:[%s1009 + $0x1f0] sm:$0xff]
      %v1796 = vld [vmem:[%s1009 + $0x1f8] sm:$0xff]
      %v1829 = vrot.slane %v1734, 1
      %v1830 = vrot.slane %v1735, 1
      %v1831 = vsel %vm1138, %v1829, %v1830
      %v1832 = vrot.slane %v1738, 1
      %v1833 = vrot.slane %v1739, 1
      %v1834 = vsel %vm1138, %v1832, %v1833
      %v1835 = vrot.slane %v1742, 1
      %v1836 = vrot.slane %v1743, 1
      %v1837 = vsel %vm1138, %v1835, %v1836
      %v1838 = vrot.slane %v1746, 1
      %v1839 = vrot.slane %v1747, 1
      %v1840 = vsel %vm1138, %v1838, %v1839
      %v1841 = vrot.slane %v1750, 1
      %v1842 = vrot.slane %v1751, 1
      %v1843 = vsel %vm1138, %v1841, %v1842
      %v1844 = vrot.slane %v1754, 1
      %v1845 = vrot.slane %v1755, 1
      %v1846 = vsel %vm1138, %v1844, %v1845
      %v1847 = vrot.slane %v1758, 1
      %v1848 = vrot.slane %v1759, 1
      %v1849 = vsel %vm1138, %v1847, %v1848
      %v1850 = vrot.slane %v1762, 1
      %v1851 = vrot.slane %v1763, 1
      %v1852 = vsel %vm1138, %v1850, %v1851
      %v1853 = vrot.slane %v1766, 1
      %v1854 = vrot.slane %v1767, 1
      %v1855 = vsel %vm1138, %v1853, %v1854
      %v1856 = vrot.slane %v1770, 1
      %v1857 = vrot.slane %v1771, 1
      %v1858 = vsel %vm1138, %v1856, %v1857
      %v1859 = vrot.slane %v1774, 1
      %v1860 = vrot.slane %v1775, 1
      %v1861 = vsel %vm1138, %v1859, %v1860
      %v1862 = vrot.slane %v1778, 1
      %v1863 = vrot.slane %v1779, 1
      %v1864 = vsel %vm1138, %v1862, %v1863
      %v1865 = vrot.slane %v1782, 1
      %v1866 = vrot.slane %v1783, 1
      %v1867 = vsel %vm1138, %v1865, %v1866
      %v1868 = vrot.slane %v1786, 1
      %v1869 = vrot.slane %v1787, 1
      %v1870 = vsel %vm1138, %v1868, %v1869
      %v1871 = vrot.slane %v1790, 1
      %v1872 = vrot.slane %v1791, 1
      %v1873 = vsel %vm1138, %v1871, %v1872
      %v1874 = vrot.slane %v1794, 1
      %v1875 = vrot.slane %v1795, 1
      %v1876 = vsel %vm1138, %v1874, %v1875
      %v1893 = vrot.slane %v1734, 2
      %v1894 = vrot.slane %v1735, 2
      %v1895 = vsel %vm1203, %v1893, %v1894
      %v1896 = vrot.slane %v1736, 2
      %v1897 = vsel %vm1203, %v1894, %v1896
      %v1898 = vrot.slane %v1738, 2
      %v1899 = vrot.slane %v1739, 2
      %v1900 = vsel %vm1203, %v1898, %v1899
      %v1901 = vrot.slane %v1740, 2
      %v1902 = vsel %vm1203, %v1899, %v1901
      %v1903 = vrot.slane %v1742, 2
      %v1904 = vrot.slane %v1743, 2
      %v1905 = vsel %vm1203, %v1903, %v1904
      %v1906 = vrot.slane %v1744, 2
      %v1907 = vsel %vm1203, %v1904, %v1906
      %v1908 = vrot.slane %v1746, 2
      %v1909 = vrot.slane %v1747, 2
      %v1910 = vsel %vm1203, %v1908, %v1909
      %v1911 = vrot.slane %v1748, 2
      %v1912 = vsel %vm1203, %v1909, %v1911
      %v1913 = vrot.slane %v1750, 2
      %v1914 = vrot.slane %v1751, 2
      %v1915 = vsel %vm1203, %v1913, %v1914
      %v1916 = vrot.slane %v1752, 2
      %v1917 = vsel %vm1203, %v1914, %v1916
      %v1918 = vrot.slane %v1754, 2
      %v1919 = vrot.slane %v1755, 2
      %v1920 = vsel %vm1203, %v1918, %v1919
      %v1921 = vrot.slane %v1756, 2
      %v1922 = vsel %vm1203, %v1919, %v1921
      %v1923 = vrot.slane %v1758, 2
      %v1924 = vrot.slane %v1759, 2
      %v1925 = vsel %vm1203, %v1923, %v1924
      %v1926 = vrot.slane %v1760, 2
      %v1927 = vsel %vm1203, %v1924, %v1926
      %v1928 = vrot.slane %v1762, 2
      %v1929 = vrot.slane %v1763, 2
      %v1930 = vsel %vm1203, %v1928, %v1929
      %v1931 = vrot.slane %v1764, 2
      %v1932 = vsel %vm1203, %v1929, %v1931
      %v1933 = vrot.slane %v1766, 2
      %v1934 = vrot.slane %v1767, 2
      %v1935 = vsel %vm1203, %v1933, %v1934
      %v1936 = vrot.slane %v1768, 2
      %v1937 = vsel %vm1203, %v1934, %v1936
      %v1938 = vrot.slane %v1770, 2
      %v1939 = vrot.slane %v1771, 2
      %v1940 = vsel %vm1203, %v1938, %v1939
      %v1941 = vrot.slane %v1772, 2
      %v1942 = vsel %vm1203, %v1939, %v1941
      %v1943 = vrot.slane %v1774, 2
      %v1944 = vrot.slane %v1775, 2
      %v1945 = vsel %vm1203, %v1943, %v1944
      %v1946 = vrot.slane %v1776, 2
      %v1947 = vsel %vm1203, %v1944, %v1946
      %v1948 = vrot.slane %v1778, 2
      %v1949 = vrot.slane %v1779, 2
      %v1950 = vsel %vm1203, %v1948, %v1949
      %v1951 = vrot.slane %v1780, 2
      %v1952 = vsel %vm1203, %v1949, %v1951
      %v1953 = vrot.slane %v1782, 2
      %v1954 = vrot.slane %v1783, 2
      %v1955 = vsel %vm1203, %v1953, %v1954
      %v1956 = vrot.slane %v1784, 2
      %v1957 = vsel %vm1203, %v1954, %v1956
      %v1958 = vrot.slane %v1786, 2
      %v1959 = vrot.slane %v1787, 2
      %v1960 = vsel %vm1203, %v1958, %v1959
      %v1961 = vrot.slane %v1788, 2
      %v1962 = vsel %vm1203, %v1959, %v1961
      %v1963 = vrot.slane %v1790, 2
      %v1964 = vrot.slane %v1791, 2
      %v1965 = vsel %vm1203, %v1963, %v1964
      %v1966 = vrot.slane %v1792, 2
      %v1967 = vsel %vm1203, %v1964, %v1966
      %v1968 = vrot.slane %v1794, 2
      %v1969 = vrot.slane %v1795, 2
      %v1970 = vsel %vm1203, %v1968, %v1969
      %v1971 = vrot.slane %v1796, 2
      %v1972 = vsel %vm1203, %v1969, %v1971
      %v1989 = vrot.slane %v1733, 7
      %v1990 = vrot.slane %v1734, 7
      %v1991 = vsel %vm1300, %v1989, %v1990
      %v1992 = vrot.slane %v1829, 7
      %v1993 = vrot.slane %v1831, 7
      %v1994 = vsel %vm1300, %v1992, %v1993
      %v1995 = vrot.slane %v1893, 7
      %v1996 = vrot.slane %v1895, 7
      %v1997 = vsel %vm1300, %v1995, %v1996
      %v1998 = vrot.slane %v1735, 7
      %v1999 = vsel %vm1300, %v1990, %v1998
      %v2000 = vrot.slane %v1830, 7
      %v2001 = vsel %vm1300, %v1993, %v2000
      %v2002 = vrot.slane %v1897, 7
      %v2003 = vsel %vm1300, %v1996, %v2002
      %v2004 = vrot.slane %v1737, 7
      %v2005 = vrot.slane %v1738, 7
      %v2006 = vsel %vm1300, %v2004, %v2005
      %v2007 = vrot.slane %v1832, 7
      %v2008 = vrot.slane %v1834, 7
      %v2009 = vsel %vm1300, %v2007, %v2008
      %v2010 = vrot.slane %v1898, 7
      %v2011 = vrot.slane %v1900, 7
      %v2012 = vsel %vm1300, %v2010, %v2011
      %v2013 = vrot.slane %v1739, 7
      %v2014 = vsel %vm1300, %v2005, %v2013
      %v2015 = vrot.slane %v1833, 7
      %v2016 = vsel %vm1300, %v2008, %v2015
      %v2017 = vrot.slane %v1902, 7
      %v2018 = vsel %vm1300, %v2011, %v2017
      %v2019 = vrot.slane %v1741, 7
      %v2020 = vrot.slane %v1742, 7
      %v2021 = vsel %vm1300, %v2019, %v2020
      %v2022 = vrot.slane %v1835, 7
      %v2023 = vrot.slane %v1837, 7
      %v2024 = vsel %vm1300, %v2022, %v2023
      %v2025 = vrot.slane %v1903, 7
      %v2026 = vrot.slane %v1905, 7
      %v2027 = vsel %vm1300, %v2025, %v2026
      %v2028 = vrot.slane %v1743, 7
      %v2029 = vsel %vm1300, %v2020, %v2028
      %v2030 = vrot.slane %v1836, 7
      %v2031 = vsel %vm1300, %v2023, %v2030
      %v2032 = vrot.slane %v1907, 7
      %v2033 = vsel %vm1300, %v2026, %v2032
      %v2034 = vrot.slane %v1745, 7
      %v2035 = vrot.slane %v1746, 7
      %v2036 = vsel %vm1300, %v2034, %v2035
      %v2037 = vrot.slane %v1838, 7
      %v2038 = vrot.slane %v1840, 7
      %v2039 = vsel %vm1300, %v2037, %v2038
      %v2040 = vrot.slane %v1908, 7
      %v2041 = vrot.slane %v1910, 7
      %v2042 = vsel %vm1300, %v2040, %v2041
      %v2043 = vrot.slane %v1747, 7
      %v2044 = vsel %vm1300, %v2035, %v2043
      %v2045 = vrot.slane %v1839, 7
      %v2046 = vsel %vm1300, %v2038, %v2045
      %v2047 = vrot.slane %v1912, 7
      %v2048 = vsel %vm1300, %v2041, %v2047
      %v2049 = vrot.slane %v1749, 7
      %v2050 = vrot.slane %v1750, 7
      %v2051 = vsel %vm1300, %v2049, %v2050
      %v2052 = vrot.slane %v1841, 7
      %v2053 = vrot.slane %v1843, 7
      %v2054 = vsel %vm1300, %v2052, %v2053
      %v2055 = vrot.slane %v1913, 7
      %v2056 = vrot.slane %v1915, 7
      %v2057 = vsel %vm1300, %v2055, %v2056
      %v2058 = vrot.slane %v1751, 7
      %v2059 = vsel %vm1300, %v2050, %v2058
      %v2060 = vrot.slane %v1842, 7
      %v2061 = vsel %vm1300, %v2053, %v2060
      %v2062 = vrot.slane %v1917, 7
      %v2063 = vsel %vm1300, %v2056, %v2062
      %v2064 = vrot.slane %v1753, 7
      %v2065 = vrot.slane %v1754, 7
      %v2066 = vsel %vm1300, %v2064, %v2065
      %v2067 = vrot.slane %v1844, 7
      %v2068 = vrot.slane %v1846, 7
      %v2069 = vsel %vm1300, %v2067, %v2068
      %v2070 = vrot.slane %v1918, 7
      %v2071 = vrot.slane %v1920, 7
      %v2072 = vsel %vm1300, %v2070, %v2071
      %v2073 = vrot.slane %v1755, 7
      %v2074 = vsel %vm1300, %v2065, %v2073
      %v2075 = vrot.slane %v1845, 7
      %v2076 = vsel %vm1300, %v2068, %v2075
      %v2077 = vrot.slane %v1922, 7
      %v2078 = vsel %vm1300, %v2071, %v2077
      %v2079 = vrot.slane %v1757, 7
      %v2080 = vrot.slane %v1758, 7
      %v2081 = vsel %vm1300, %v2079, %v2080
      %v2082 = vrot.slane %v1847, 7
      %v2083 = vrot.slane %v1849, 7
      %v2084 = vsel %vm1300, %v2082, %v2083
      %v2085 = vrot.slane %v1923, 7
      %v2086 = vrot.slane %v1925, 7
      %v2087 = vsel %vm1300, %v2085, %v2086
      %v2088 = vrot.slane %v1759, 7
      %v2089 = vsel %vm1300, %v2080, %v2088
      %v2090 = vrot.slane %v1848, 7
      %v2091 = vsel %vm1300, %v2083, %v2090
      %v2092 = vrot.slane %v1927, 7
      %v2093 = vsel %vm1300, %v2086, %v2092
      %v2094 = vrot.slane %v1761, 7
      %v2095 = vrot.slane %v1762, 7
      %v2096 = vsel %vm1300, %v2094, %v2095
      %v2097 = vrot.slane %v1850, 7
      %v2098 = vrot.slane %v1852, 7
      %v2099 = vsel %vm1300, %v2097, %v2098
      %v2100 = vrot.slane %v1928, 7
      %v2101 = vrot.slane %v1930, 7
      %v2102 = vsel %vm1300, %v2100, %v2101
      %v2103 = vrot.slane %v1763, 7
      %v2104 = vsel %vm1300, %v2095, %v2103
      %v2105 = vrot.slane %v1851, 7
      %v2106 = vsel %vm1300, %v2098, %v2105
      %v2107 = vrot.slane %v1932, 7
      %v2108 = vsel %vm1300, %v2101, %v2107
      %v2109 = vrot.slane %v1765, 7
      %v2110 = vrot.slane %v1766, 7
      %v2111 = vsel %vm1300, %v2109, %v2110
      %v2112 = vrot.slane %v1853, 7
      %v2113 = vrot.slane %v1855, 7
      %v2114 = vsel %vm1300, %v2112, %v2113
      %v2115 = vrot.slane %v1933, 7
      %v2116 = vrot.slane %v1935, 7
      %v2117 = vsel %vm1300, %v2115, %v2116
      %v2118 = vrot.slane %v1767, 7
      %v2119 = vsel %vm1300, %v2110, %v2118
      %v2120 = vrot.slane %v1854, 7
      %v2121 = vsel %vm1300, %v2113, %v2120
      %v2122 = vrot.slane %v1937, 7
      %v2123 = vsel %vm1300, %v2116, %v2122
      %v2124 = vrot.slane %v1769, 7
      %v2125 = vrot.slane %v1770, 7
      %v2126 = vsel %vm1300, %v2124, %v2125
      %v2127 = vrot.slane %v1856, 7
      %v2128 = vrot.slane %v1858, 7
      %v2129 = vsel %vm1300, %v2127, %v2128
      %v2130 = vrot.slane %v1938, 7
      %v2131 = vrot.slane %v1940, 7
      %v2132 = vsel %vm1300, %v2130, %v2131
      %v2133 = vrot.slane %v1771, 7
      %v2134 = vsel %vm1300, %v2125, %v2133
      %v2135 = vrot.slane %v1857, 7
      %v2136 = vsel %vm1300, %v2128, %v2135
      %v2137 = vrot.slane %v1942, 7
      %v2138 = vsel %vm1300, %v2131, %v2137
      %v2139 = vrot.slane %v1773, 7
      %v2140 = vrot.slane %v1774, 7
      %v2141 = vsel %vm1300, %v2139, %v2140
      %v2142 = vrot.slane %v1859, 7
      %v2143 = vrot.slane %v1861, 7
      %v2144 = vsel %vm1300, %v2142, %v2143
      %v2145 = vrot.slane %v1943, 7
      %v2146 = vrot.slane %v1945, 7
      %v2147 = vsel %vm1300, %v2145, %v2146
      %v2148 = vrot.slane %v1775, 7
      %v2149 = vsel %vm1300, %v2140, %v2148
      %v2150 = vrot.slane %v1860, 7
      %v2151 = vsel %vm1300, %v2143, %v2150
      %v2152 = vrot.slane %v1947, 7
      %v2153 = vsel %vm1300, %v2146, %v2152
      %v2154 = vrot.slane %v1777, 7
      %v2155 = vrot.slane %v1778, 7
      %v2156 = vsel %vm1300, %v2154, %v2155
      %v2157 = vrot.slane %v1862, 7
      %v2158 = vrot.slane %v1864, 7
      %v2159 = vsel %vm1300, %v2157, %v2158
      %v2160 = vrot.slane %v1948, 7
      %v2161 = vrot.slane %v1950, 7
      %v2162 = vsel %vm1300, %v2160, %v2161
      %v2163 = vrot.slane %v1779, 7
      %v2164 = vsel %vm1300, %v2155, %v2163
      %v2165 = vrot.slane %v1863, 7
      %v2166 = vsel %vm1300, %v2158, %v2165
      %v2167 = vrot.slane %v1952, 7
      %v2168 = vsel %vm1300, %v2161, %v2167
      %v2169 = vrot.slane %v1781, 7
      %v2170 = vrot.slane %v1782, 7
      %v2171 = vsel %vm1300, %v2169, %v2170
      %v2172 = vrot.slane %v1865, 7
      %v2173 = vrot.slane %v1867, 7
      %v2174 = vsel %vm1300, %v2172, %v2173
      %v2175 = vrot.slane %v1953, 7
      %v2176 = vrot.slane %v1955, 7
      %v2177 = vsel %vm1300, %v2175, %v2176
      %v2178 = vrot.slane %v1783, 7
      %v2179 = vsel %vm1300, %v2170, %v2178
      %v2180 = vrot.slane %v1866, 7
      %v2181 = vsel %vm1300, %v2173, %v2180
      %v2182 = vrot.slane %v1957, 7
      %v2183 = vsel %vm1300, %v2176, %v2182
      %v2184 = vrot.slane %v1785, 7
      %v2185 = vrot.slane %v1786, 7
      %v2186 = vsel %vm1300, %v2184, %v2185
      %v2187 = vrot.slane %v1868, 7
      %v2188 = vrot.slane %v1870, 7
      %v2189 = vsel %vm1300, %v2187, %v2188
      %v2190 = vrot.slane %v1958, 7
      %v2191 = vrot.slane %v1960, 7
      %v2192 = vsel %vm1300, %v2190, %v2191
      %v2193 = vrot.slane %v1787, 7
      %v2194 = vsel %vm1300, %v2185, %v2193
      %v2195 = vrot.slane %v1869, 7
      %v2196 = vsel %vm1300, %v2188, %v2195
      %v2197 = vrot.slane %v1962, 7
      %v2198 = vsel %vm1300, %v2191, %v2197
      %v2199 = vrot.slane %v1789, 7
      %v2200 = vrot.slane %v1790, 7
      %v2201 = vsel %vm1300, %v2199, %v2200
      %v2202 = vrot.slane %v1871, 7
      %v2203 = vrot.slane %v1873, 7
      %v2204 = vsel %vm1300, %v2202, %v2203
      %v2205 = vrot.slane %v1963, 7
      %v2206 = vrot.slane %v1965, 7
      %v2207 = vsel %vm1300, %v2205, %v2206
      %v2208 = vrot.slane %v1791, 7
      %v2209 = vsel %vm1300, %v2200, %v2208
      %v2210 = vrot.slane %v1872, 7
      %v2211 = vsel %vm1300, %v2203, %v2210
      %v2212 = vrot.slane %v1967, 7
      %v2213 = vsel %vm1300, %v2206, %v2212
      %v2214 = vrot.slane %v1793, 7
      %v2215 = vrot.slane %v1794, 7
      %v2216 = vsel %vm1300, %v2214, %v2215
      %v2217 = vrot.slane %v1874, 7
      %v2218 = vrot.slane %v1876, 7
      %v2219 = vsel %vm1300, %v2217, %v2218
      %v2220 = vrot.slane %v1968, 7
      %v2221 = vrot.slane %v1970, 7
      %v2222 = vsel %vm1300, %v2220, %v2221
      %v2223 = vrot.slane %v1795, 7
      %v2224 = vsel %vm1300, %v2215, %v2223
      %v2225 = vrot.slane %v1875, 7
      %v2226 = vsel %vm1300, %v2218, %v2225
      %v2227 = vrot.slane %v1972, 7
      %v2228 = vsel %vm1300, %v2221, %v2227
      %v2325 = vpack.c.bf16 %v1999, %v1991
      %v2326 = vpack.c.bf16 %v2001, %v1994
      %v2327 = vpack.c.bf16 %v2003, %v1997
      %v2328 = vpack.c.bf16 %v2014, %v2006
      %v2329 = vpack.c.bf16 %v2016, %v2009
      %v2330 = vpack.c.bf16 %v2018, %v2012
      %v2331 = vpack.c.bf16 %v2029, %v2021
      %v2332 = vpack.c.bf16 %v2031, %v2024
      %v2333 = vpack.c.bf16 %v2033, %v2027
      %v2334 = vpack.c.bf16 %v2044, %v2036
      %v2335 = vpack.c.bf16 %v2046, %v2039
      %v2336 = vpack.c.bf16 %v2048, %v2042
      %v2337 = vpack.c.bf16 %v2059, %v2051
      %v2338 = vpack.c.bf16 %v2061, %v2054
      %v2339 = vpack.c.bf16 %v2063, %v2057
      %v2340 = vpack.c.bf16 %v2074, %v2066
      %v2341 = vpack.c.bf16 %v2076, %v2069
      %v2342 = vpack.c.bf16 %v2078, %v2072
      %v2343 = vpack.c.bf16 %v2089, %v2081
      %v2344 = vpack.c.bf16 %v2091, %v2084
      %v2345 = vpack.c.bf16 %v2093, %v2087
      %v2346 = vpack.c.bf16 %v2104, %v2096
      %v2347 = vpack.c.bf16 %v2106, %v2099
      %v2348 = vpack.c.bf16 %v2108, %v2102
      %v2349 = vpack.c.bf16 %v2119, %v2111
      %v2350 = vpack.c.bf16 %v2121, %v2114
      %v2351 = vpack.c.bf16 %v2123, %v2117
      %v2352 = vpack.c.bf16 %v2134, %v2126
      %v2353 = vpack.c.bf16 %v2136, %v2129
      %v2354 = vpack.c.bf16 %v2138, %v2132
      %v2355 = vpack.c.bf16 %v2149, %v2141
      %v2356 = vpack.c.bf16 %v2151, %v2144
      %v2357 = vpack.c.bf16 %v2153, %v2147
      %v2358 = vpack.c.bf16 %v2164, %v2156
      %v2359 = vpack.c.bf16 %v2166, %v2159
      %v2360 = vpack.c.bf16 %v2168, %v2162
      %v2361 = vpack.c.bf16 %v2179, %v2171
      %v2362 = vpack.c.bf16 %v2181, %v2174
      %v2363 = vpack.c.bf16 %v2183, %v2177
      %v2364 = vpack.c.bf16 %v2194, %v2186
      %v2365 = vpack.c.bf16 %v2196, %v2189
      %v2366 = vpack.c.bf16 %v2198, %v2192
      %v2367 = vpack.c.bf16 %v2209, %v2201
      %v2368 = vpack.c.bf16 %v2211, %v2204
      %v2369 = vpack.c.bf16 %v2213, %v2207
      %v2370 = vpack.c.bf16 %v2224, %v2216
      %v2371 = vpack.c.bf16 %v2226, %v2219
      %v2372 = vpack.c.bf16 %v2228, %v2222
      %s2373 = scalar_lea.vmem %s4, 192
      %v2374 = vld [vmem:[%s2373] sm:$0xf]
      %v2375 = vld [vmem:[%s2373 + $0x4] sm:$0xf]
      %v2376 = vld [vmem:[%s2373 + $0x8] sm:$0xf]
      %v2377 = vld [vmem:[%s2373 + $0xc] sm:$0xf]
      %v2378 = vld [vmem:[%s2373 + $0x10] sm:$0xf]
      %v2379 = vld [vmem:[%s2373 + $0x14] sm:$0xf]
      %v2380 = vld [vmem:[%s2373 + $0x18] sm:$0xf]
      %v2381 = vld [vmem:[%s2373 + $0x1c] sm:$0xf]
      %v2382 = vld [vmem:[%s2373 + $0x20] sm:$0xf]
      %v2383 = vld [vmem:[%s2373 + $0x24] sm:$0xf]
      %v2384 = vld [vmem:[%s2373 + $0x28] sm:$0xf]
      %v2385 = vld [vmem:[%s2373 + $0x2c] sm:$0xf]
      %v2386 = vld [vmem:[%s2373 + $0x30] sm:$0xf]
      %v2387 = vld [vmem:[%s2373 + $0x34] sm:$0xf]
      %v2388 = vld [vmem:[%s2373 + $0x38] sm:$0xf]
      %v2389 = vld [vmem:[%s2373 + $0x3c] sm:$0xf]
      %v2390 = vld [vmem:[%s2373 + $0x40] sm:$0xf]
      %v2391 = vld [vmem:[%s2373 + $0x44] sm:$0xf]
      %v2392 = vld [vmem:[%s2373 + $0x48] sm:$0xf]
      %v2393 = vld [vmem:[%s2373 + $0x4c] sm:$0xf]
      %v2394 = vld [vmem:[%s2373 + $0x50] sm:$0xf]
      %v2395 = vld [vmem:[%s2373 + $0x54] sm:$0xf]
      %v2396 = vld [vmem:[%s2373 + $0x58] sm:$0xf]
      %v2397 = vld [vmem:[%s2373 + $0x5c] sm:$0xf]
      %v2398 = vld [vmem:[%s2373 + $0x60] sm:$0xf]
      %v2399 = vld [vmem:[%s2373 + $0x64] sm:$0xf]
      %v2400 = vld [vmem:[%s2373 + $0x68] sm:$0xf]
      %v2401 = vld [vmem:[%s2373 + $0x6c] sm:$0xf]
      %v2402 = vld [vmem:[%s2373 + $0x70] sm:$0xf]
      %v2403 = vld [vmem:[%s2373 + $0x74] sm:$0xf]
      %v2404 = vld [vmem:[%s2373 + $0x78] sm:$0xf]
      %v2405 = vld [vmem:[%s2373 + $0x7c] sm:$0xf]
      %v2406 = vld [vmem:[%s2373 + $0x80] sm:$0xf]
      %v2407 = vld [vmem:[%s2373 + $0x84] sm:$0xf]
      %v2408 = vld [vmem:[%s2373 + $0x88] sm:$0xf]
      %v2409 = vld [vmem:[%s2373 + $0x8c] sm:$0xf]
      %v2410 = vld [vmem:[%s2373 + $0x90] sm:$0xf]
      %v2411 = vld [vmem:[%s2373 + $0x94] sm:$0xf]
      %v2412 = vld [vmem:[%s2373 + $0x98] sm:$0xf]
      %v2413 = vld [vmem:[%s2373 + $0x9c] sm:$0xf]
      %v2414 = vld [vmem:[%s2373 + $0xa0] sm:$0xf]
      %v2415 = vld [vmem:[%s2373 + $0xa4] sm:$0xf]
      %v2416 = vld [vmem:[%s2373 + $0xa8] sm:$0xf]
      %v2417 = vld [vmem:[%s2373 + $0xac] sm:$0xf]
      %v2418 = vld [vmem:[%s2373 + $0xb0] sm:$0xf]
      %v2419 = vld [vmem:[%s2373 + $0xb4] sm:$0xf]
      %v2420 = vld [vmem:[%s2373 + $0xb8] sm:$0xf]
      %v2421 = vld [vmem:[%s2373 + $0xbc] sm:$0xf]
      %v2470 = vunpack.c.l.b16 %v2374
      %v2471 = vunpack.c.l.b16 %v2375
      %v2472 = vunpack.c.l.b16 %v2376
      %v2473 = vunpack.c.l.b16 %v2377
      %v2474 = vunpack.c.l.b16 %v2378
      %v2475 = vunpack.c.l.b16 %v2379
      %v2476 = vunpack.c.l.b16 %v2380
      %v2477 = vunpack.c.l.b16 %v2381
      %v2478 = vunpack.c.l.b16 %v2382
      %v2479 = vunpack.c.l.b16 %v2383
      %v2480 = vunpack.c.l.b16 %v2384
      %v2481 = vunpack.c.l.b16 %v2385
      %v2482 = vunpack.c.l.b16 %v2386
      %v2483 = vunpack.c.l.b16 %v2387
      %v2484 = vunpack.c.l.b16 %v2388
      %v2485 = vunpack.c.l.b16 %v2389
      %v2486 = vunpack.c.l.b16 %v2390
      %v2487 = vunpack.c.l.b16 %v2391
      %v2488 = vunpack.c.l.b16 %v2392
      %v2489 = vunpack.c.l.b16 %v2393
      %v2490 = vunpack.c.l.b16 %v2394
      %v2491 = vunpack.c.l.b16 %v2395
      %v2492 = vunpack.c.l.b16 %v2396
      %v2493 = vunpack.c.l.b16 %v2397
      %v2494 = vunpack.c.l.b16 %v2398
      %v2495 = vunpack.c.l.b16 %v2399
      %v2496 = vunpack.c.l.b16 %v2400
      %v2497 = vunpack.c.l.b16 %v2401
      %v2498 = vunpack.c.l.b16 %v2402
      %v2499 = vunpack.c.l.b16 %v2403
      %v2500 = vunpack.c.l.b16 %v2404
      %v2501 = vunpack.c.l.b16 %v2405
      %v2502 = vunpack.c.l.b16 %v2406
      %v2503 = vunpack.c.l.b16 %v2407
      %v2504 = vunpack.c.l.b16 %v2408
      %v2505 = vunpack.c.l.b16 %v2409
      %v2506 = vunpack.c.l.b16 %v2410
      %v2507 = vunpack.c.l.b16 %v2411
      %v2508 = vunpack.c.l.b16 %v2412
      %v2509 = vunpack.c.l.b16 %v2413
      %v2510 = vunpack.c.l.b16 %v2414
      %v2511 = vunpack.c.l.b16 %v2415
      %v2512 = vunpack.c.l.b16 %v2416
      %v2513 = vunpack.c.l.b16 %v2417
      %v2514 = vunpack.c.l.b16 %v2418
      %v2515 = vunpack.c.l.b16 %v2419
      %v2516 = vunpack.c.l.b16 %v2420
      %v2517 = vunpack.c.l.b16 %v2421
      %v2518 = vpack.c.b16 %v2471, %v2470
      %v2519 = vpack.c.b16 %v2473, %v2472
      %v2520 = vpack.c.b16 %v2475, %v2474
      %v2521 = vpack.c.b16 %v2477, %v2476
      %v2522 = vpack.c.b16 %v2479, %v2478
      %v2523 = vpack.c.b16 %v2481, %v2480
      %v2524 = vpack.c.b16 %v2483, %v2482
      %v2525 = vpack.c.b16 %v2485, %v2484
      %v2526 = vpack.c.b16 %v2487, %v2486
      %v2527 = vpack.c.b16 %v2489, %v2488
      %v2528 = vpack.c.b16 %v2491, %v2490
      %v2529 = vpack.c.b16 %v2493, %v2492
      %v2530 = vpack.c.b16 %v2495, %v2494
      %v2531 = vpack.c.b16 %v2497, %v2496
      %v2532 = vpack.c.b16 %v2499, %v2498
      %v2533 = vpack.c.b16 %v2501, %v2500
      %v2534 = vpack.c.b16 %v2503, %v2502
      %v2535 = vpack.c.b16 %v2505, %v2504
      %v2536 = vpack.c.b16 %v2507, %v2506
      %v2537 = vpack.c.b16 %v2509, %v2508
      %v2538 = vpack.c.b16 %v2511, %v2510
      %v2539 = vpack.c.b16 %v2513, %v2512
      %v2540 = vpack.c.b16 %v2515, %v2514
      %v2541 = vpack.c.b16 %v2517, %v2516
      %2566 = vmatprep.subr.bf16.mxu0 0
      %2567 = vmatpush1.bf16.msra.mxu0 %v2518
      %2568 = vmatprep.subr.bf16.mxu0 0
      %2569 = vmatpush1.bf16.msra.mxu0 %v2519
      %2570 = vmatprep.subr.bf16.mxu0 0
      %2571 = vmatpush1.bf16.msra.mxu0 %v2520
      %2572 = vmatprep.subr.bf16.mxu0 0
      %2573 = vmatpush1.bf16.msra.mxu0 %v2521
      %2574 = vmatprep.subr.bf16.mxu0 0
      %2575 = vmatpush1.bf16.msra.mxu0 %v2522
      %2576 = vmatprep.subr.bf16.mxu0 0
      %2577 = vmatpush1.bf16.msra.mxu0 %v2523
      %2578 = vmatprep.subr.bf16.mxu0 0
      %2579 = vmatpush1.bf16.msra.mxu0 %v2524
      %2580 = vmatprep.subr.bf16.mxu0 0
      %2581 = vmatpush1.bf16.msra.mxu0 %v2525
      %2582 = vmatprep.subr.bf16.mxu0 0
      %2583 = vmatpush1.bf16.msra.mxu0 %v2526
      %2584 = vmatprep.subr.bf16.mxu0 0
      %2585 = vmatpush1.bf16.msra.mxu0 %v2527
      %2586 = vmatprep.subr.bf16.mxu0 0
      %2587 = vmatpush1.bf16.msra.mxu0 %v2528
      %2588 = vmatprep.subr.bf16.mxu0 0
      %2589 = vmatpush1.bf16.msra.mxu0 %v2529
      %2590 = vmatprep.subr.bf16.mxu0 0
      %2591 = vmatpush1.bf16.msra.mxu0 %v2530
      %2592 = vmatprep.subr.bf16.mxu0 0
      %2593 = vmatpush1.bf16.msra.mxu0 %v2531
      %2594 = vmatprep.subr.bf16.mxu0 0
      %2595 = vmatpush1.bf16.msra.mxu0 %v2532
      %2596 = vmatprep.subr.bf16.mxu0 0
      %2597 = vmatpush1.bf16.msra.mxu0 %v2533
      %2598 = vmatprep.mubr.bf16.mxu0 %v2326
      %2599 = vmatmul.mubr.bf16.gmra.mrb[0].mxu0 %v2325
      %v2600 = vpop.f32.mrb[0].mxu0
      %v2601 = vadd.f32 0.0, %v2600
      %v2602 = vpop.f32.mrb[0].mxu0
      %v2603 = vpop.f32.mrb[0].mxu0
      %v2604 = vadd.f32 0.0, %v2603
      %v2605 = vpop.f32.mrb[0].mxu0
      %2606 = vmatprep.mubr.bf16.mxu0 %v2329
      %2607 = vmatmul.mubr.bf16.gmra.mrb[0].mxu0 %v2328
      %v2608 = vpop.f32.mrb[0].mxu0
      %v2609 = vadd.f32 0.0, %v2608
      %v2610 = vpop.f32.mrb[0].mxu0
      %v2611 = vpop.f32.mrb[0].mxu0
      %v2612 = vadd.f32 0.0, %v2611
      %v2613 = vpop.f32.mrb[0].mxu0
      %2614 = vmatprep.mubr.bf16.mxu0 %v2332
      %2615 = vmatmul.mubr.bf16.gmra.mrb[0].mxu0 %v2331
      %v2616 = vpop.f32.mrb[0].mxu0
      %v2617 = vadd.f32 0.0, %v2616
      %v2618 = vpop.f32.mrb[0].mxu0
      %v2619 = vpop.f32.mrb[0].mxu0
      %v2620 = vadd.f32 0.0, %v2619
      %v2621 = vpop.f32.mrb[0].mxu0
      %2622 = vmatprep.mubr.bf16.mxu0 %v2335
      %2623 = vmatmul.mubr.bf16.gmra.mrb[0].mxu0 %v2334
      %v2624 = vpop.f32.mrb[0].mxu0
      %v2625 = vadd.f32 0.0, %v2624
      %v2626 = vpop.f32.mrb[0].mxu0
      %v2627 = vpop.f32.mrb[0].mxu0
      %v2628 = vadd.f32 0.0, %v2627
      %v2629 = vpop.f32.mrb[0].mxu0
      %2630 = vmatprep.mubr.bf16.mxu0 %v2338
      %2631 = vmatmul.mubr.bf16.gmra.mrb[0].mxu0 %v2337
      %v2632 = vpop.f32.mrb[0].mxu0
      %v2633 = vadd.f32 0.0, %v2632
      %v2634 = vpop.f32.mrb[0].mxu0
      %v2635 = vpop.f32.mrb[0].mxu0
      %v2636 = vadd.f32 0.0, %v2635
      %v2637 = vpop.f32.mrb[0].mxu0
      %2638 = vmatprep.mubr.bf16.mxu0 %v2341
      %2639 = vmatmul.mubr.bf16.gmra.mrb[0].mxu0 %v2340
      %v2640 = vpop.f32.mrb[0].mxu0
      %v2641 = vadd.f32 0.0, %v2640
      %v2642 = vpop.f32.mrb[0].mxu0
      %v2643 = vpop.f32.mrb[0].mxu0
      %v2644 = vadd.f32 0.0, %v2643
      %v2645 = vpop.f32.mrb[0].mxu0
      %2646 = vmatprep.mubr.bf16.mxu0 %v2344
      %2647 = vmatmul.mubr.bf16.gmra.mrb[0].mxu0 %v2343
      %v2648 = vpop.f32.mrb[0].mxu0
      %v2649 = vadd.f32 0.0, %v2648
      %v2650 = vpop.f32.mrb[0].mxu0
      %v2651 = vpop.f32.mrb[0].mxu0
      %v2652 = vadd.f32 0.0, %v2651
      %v2653 = vpop.f32.mrb[0].mxu0
      %2654 = vmatprep.mubr.bf16.mxu0 %v2347
      %2655 = vmatmul.mubr.bf16.gmra.mrb[0].mxu0 %v2346
      %v2656 = vpop.f32.mrb[0].mxu0
      %v2657 = vadd.f32 0.0, %v2656
      %v2658 = vpop.f32.mrb[0].mxu0
      %v2659 = vpop.f32.mrb[0].mxu0
      %v2660 = vadd.f32 0.0, %v2659
      %v2661 = vpop.f32.mrb[0].mxu0
      %2662 = vmatprep.mubr.bf16.mxu0 %v2350
      %2663 = vmatmul.mubr.bf16.gmra.mrb[0].mxu0 %v2349
      %v2664 = vpop.f32.mrb[0].mxu0
      %v2665 = vadd.f32 0.0, %v2664
      %v2666 = vpop.f32.mrb[0].mxu0
      %v2667 = vpop.f32.mrb[0].mxu0
      %v2668 = vadd.f32 0.0, %v2667
      %v2669 = vpop.f32.mrb[0].mxu0
      %2670 = vmatprep.mubr.bf16.mxu0 %v2353
      %2671 = vmatmul.mubr.bf16.gmra.mrb[0].mxu0 %v2352
      %v2672 = vpop.f32.mrb[0].mxu0
      %v2673 = vadd.f32 0.0, %v2672
      %v2674 = vpop.f32.mrb[0].mxu0
      %v2675 = vpop.f32.mrb[0].mxu0
      %v2676 = vadd.f32 0.0, %v2675
      %v2677 = vpop.f32.mrb[0].mxu0
      %2678 = vmatprep.mubr.bf16.mxu0 %v2356
      %2679 = vmatmul.mubr.bf16.gmra.mrb[0].mxu0 %v2355
      %v2680 = vpop.f32.mrb[0].mxu0
      %v2681 = vadd.f32 0.0, %v2680
      %v2682 = vpop.f32.mrb[0].mxu0
      %v2683 = vpop.f32.mrb[0].mxu0
      %v2684 = vadd.f32 0.0, %v2683
      %v2685 = vpop.f32.mrb[0].mxu0
      %2686 = vmatprep.mubr.bf16.mxu0 %v2359
      %2687 = vmatmul.mubr.bf16.gmra.mrb[0].mxu0 %v2358
      %v2688 = vpop.f32.mrb[0].mxu0
      %v2689 = vadd.f32 0.0, %v2688
      %v2690 = vpop.f32.mrb[0].mxu0
      %v2691 = vpop.f32.mrb[0].mxu0
      %v2692 = vadd.f32 0.0, %v2691
      %v2693 = vpop.f32.mrb[0].mxu0
      %2694 = vmatprep.mubr.bf16.mxu0 %v2362
      %2695 = vmatmul.mubr.bf16.gmra.mrb[0].mxu0 %v2361
      %v2696 = vpop.f32.mrb[0].mxu0
      %v2697 = vadd.f32 0.0, %v2696
      %v2698 = vpop.f32.mrb[0].mxu0
      %v2699 = vpop.f32.mrb[0].mxu0
      %v2700 = vadd.f32 0.0, %v2699
      %v2701 = vpop.f32.mrb[0].mxu0
      %2702 = vmatprep.mubr.bf16.mxu0 %v2365
      %2703 = vmatmul.mubr.bf16.gmra.mrb[0].mxu0 %v2364
      %v2704 = vpop.f32.mrb[0].mxu0
      %v2705 = vadd.f32 0.0, %v2704
      %v2706 = vpop.f32.mrb[0].mxu0
      %v2707 = vpop.f32.mrb[0].mxu0
      %v2708 = vadd.f32 0.0, %v2707
      %v2709 = vpop.f32.mrb[0].mxu0
      %2710 = vmatprep.mubr.bf16.mxu0 %v2368
      %2711 = vmatmul.mubr.bf16.gmra.mrb[0].mxu0 %v2367
      %v2712 = vpop.f32.mrb[0].mxu0
      %v2713 = vadd.f32 0.0, %v2712
      %v2714 = vpop.f32.mrb[0].mxu0
      %v2715 = vpop.f32.mrb[0].mxu0
      %v2716 = vadd.f32 0.0, %v2715
      %v2717 = vpop.f32.mrb[0].mxu0
      %2718 = vmatprep.mubr.bf16.mxu0 %v2371
      %2719 = vmatmul.mubr.bf16.gmra.mrb[0].mxu0 %v2370
      %v2720 = vpop.f32.mrb[0].mxu0
      %v2721 = vadd.f32 0.0, %v2720
      %v2722 = vpop.f32.mrb[0].mxu0
      %v2723 = vpop.f32.mrb[0].mxu0
      %v2724 = vadd.f32 0.0, %v2723
      %v2725 = vpop.f32.mrb[0].mxu0
      %2726 = vdwg.mxu0
      %2727 = vmatprep.subr.bf16.mxu0 0
      %2728 = vmatpush1.bf16.msra.mxu0 %v2534
      %2729 = vmatprep.subr.bf16.mxu0 0
      %2730 = vmatpush1.bf16.msra.mxu0 %v2535
      %2731 = vmatprep.subr.bf16.mxu0 0
      %2732 = vmatpush1.bf16.msra.mxu0 %v2536
      %2733 = vmatprep.subr.bf16.mxu0 0
      %2734 = vmatpush1.bf16.msra.mxu0 %v2537
      %2735 = vmatprep.subr.bf16.mxu0 0
      %2736 = vmatpush1.bf16.msra.mxu0 %v2538
      %2737 = vmatprep.subr.bf16.mxu0 0
      %2738 = vmatpush1.bf16.msra.mxu0 %v2539
      %2739 = vmatprep.subr.bf16.mxu0 0
      %2740 = vmatpush1.bf16.msra.mxu0 %v2540
      %2741 = vmatprep.subr.bf16.mxu0 0
      %2742 = vmatpush1.bf16.msra.mxu0 %v2541
      %2743 = vmatprep.subr.bf16.mxu0 0
      %2744 = vmatpush1.bf16.msra.mxu0 0
      %2745 = vmatprep.subr.bf16.mxu0 0
      %2746 = vmatpush1.bf16.msra.mxu0 0
      %2747 = vmatprep.subr.bf16.mxu0 0
      %2748 = vmatpush1.bf16.msra.mxu0 0
      %2749 = vmatprep.subr.bf16.mxu0 0
      %2750 = vmatpush1.bf16.msra.mxu0 0
      %2751 = vmatprep.subr.bf16.mxu0 0
      %2752 = vmatpush1.bf16.msra.mxu0 0
      %2753 = vmatprep.subr.bf16.mxu0 0
      %2754 = vmatpush1.bf16.msra.mxu0 0
      %2755 = vmatprep.subr.bf16.mxu0 0
      %2756 = vmatpush1.bf16.msra.mxu0 0
      %2757 = vmatprep.subr.bf16.mxu0 0
      %2758 = vmatpush1.bf16.msra.mxu0 0
      %2759 = vmatprep.mubr.bf16.mxu0 0
      %2760 = vmatmul.mubr.bf16.gmra.mrb[0].mxu0 %v2327
      %v2761 = vpop.f32.mrb[0].mxu0
      %v2762 = vadd.f32 %v2601, %v2761
      %v2763 = vpop.f32.mrb[0].mxu0
      %v2764 = vpop.f32.mrb[0].mxu0
      %v2765 = vadd.f32 %v2604, %v2764
      %v2766 = vpop.f32.mrb[0].mxu0
      %2767 = vmatprep.mubr.bf16.mxu0 0
      %2768 = vmatmul.mubr.bf16.gmra.mrb[0].mxu0 %v2330
      %v2769 = vpop.f32.mrb[0].mxu0
      %v2770 = vadd.f32 %v2609, %v2769
      %v2771 = vpop.f32.mrb[0].mxu0
      %v2772 = vpop.f32.mrb[0].mxu0
      %v2773 = vadd.f32 %v2612, %v2772
      %v2774 = vpop.f32.mrb[0].mxu0
      %2775 = vmatprep.mubr.bf16.mxu0 0
      %2776 = vmatmul.mubr.bf16.gmra.mrb[0].mxu0 %v2333
      %v2777 = vpop.f32.mrb[0].mxu0
      %v2778 = vadd.f32 %v2617, %v2777
      %v2779 = vpop.f32.mrb[0].mxu0
      %v2780 = vpop.f32.mrb[0].mxu0
      %v2781 = vadd.f32 %v2620, %v2780
      %v2782 = vpop.f32.mrb[0].mxu0
      %2783 = vmatprep.mubr.bf16.mxu0 0
      %2784 = vmatmul.mubr.bf16.gmra.mrb[0].mxu0 %v2336
      %v2785 = vpop.f32.mrb[0].mxu0
      %v2786 = vadd.f32 %v2625, %v2785
      %v2787 = vpop.f32.mrb[0].mxu0
      %v2788 = vpop.f32.mrb[0].mxu0
      %v2789 = vadd.f32 %v2628, %v2788
      %v2790 = vpop.f32.mrb[0].mxu0
      %2791 = vmatprep.mubr.bf16.mxu0 0
      %2792 = vmatmul.mubr.bf16.gmra.mrb[0].mxu0 %v2339
      %v2793 = vpop.f32.mrb[0].mxu0
      %v2794 = vadd.f32 %v2633, %v2793
      %v2795 = vpop.f32.mrb[0].mxu0
      %v2796 = vpop.f32.mrb[0].mxu0
      %v2797 = vadd.f32 %v2636, %v2796
      %v2798 = vpop.f32.mrb[0].mxu0
      %2799 = vmatprep.mubr.bf16.mxu0 0
      %2800 = vmatmul.mubr.bf16.gmra.mrb[0].mxu0 %v2342
      %v2801 = vpop.f32.mrb[0].mxu0
      %v2802 = vadd.f32 %v2641, %v2801
      %v2803 = vpop.f32.mrb[0].mxu0
      %v2804 = vpop.f32.mrb[0].mxu0
      %v2805 = vadd.f32 %v2644, %v2804
      %v2806 = vpop.f32.mrb[0].mxu0
      %2807 = vmatprep.mubr.bf16.mxu0 0
      %2808 = vmatmul.mubr.bf16.gmra.mrb[0].mxu0 %v2345
      %v2809 = vpop.f32.mrb[0].mxu0
      %v2810 = vadd.f32 %v2649, %v2809
      %v2811 = vpop.f32.mrb[0].mxu0
      %v2812 = vpop.f32.mrb[0].mxu0
      %v2813 = vadd.f32 %v2652, %v2812
      %v2814 = vpop.f32.mrb[0].mxu0
      %2815 = vmatprep.mubr.bf16.mxu0 0
      %2816 = vmatmul.mubr.bf16.gmra.mrb[0].mxu0 %v2348
      %v2817 = vpop.f32.mrb[0].mxu0
      %v2818 = vadd.f32 %v2657, %v2817
      %v2819 = vpop.f32.mrb[0].mxu0
      %v2820 = vpop.f32.mrb[0].mxu0
      %v2821 = vadd.f32 %v2660, %v2820
      %v2822 = vpop.f32.mrb[0].mxu0
      %2823 = vmatprep.mubr.bf16.mxu0 0
      %2824 = vmatmul.mubr.bf16.gmra.mrb[0].mxu0 %v2351
      %v2825 = vpop.f32.mrb[0].mxu0
      %v2826 = vadd.f32 %v2665, %v2825
      %v2827 = vpop.f32.mrb[0].mxu0
      %v2828 = vpop.f32.mrb[0].mxu0
      %v2829 = vadd.f32 %v2668, %v2828
      %v2830 = vpop.f32.mrb[0].mxu0
      %2831 = vmatprep.mubr.bf16.mxu0 0
      %2832 = vmatmul.mubr.bf16.gmra.mrb[0].mxu0 %v2354
      %v2833 = vpop.f32.mrb[0].mxu0
      %v2834 = vadd.f32 %v2673, %v2833
      %v2835 = vpop.f32.mrb[0].mxu0
      %v2836 = vpop.f32.mrb[0].mxu0
      %v2837 = vadd.f32 %v2676, %v2836
      %v2838 = vpop.f32.mrb[0].mxu0
      %2839 = vmatprep.mubr.bf16.mxu0 0
      %2840 = vmatmul.mubr.bf16.gmra.mrb[0].mxu0 %v2357
      %v2841 = vpop.f32.mrb[0].mxu0
      %v2842 = vadd.f32 %v2681, %v2841
      %v2843 = vpop.f32.mrb[0].mxu0
      %v2844 = vpop.f32.mrb[0].mxu0
      %v2845 = vadd.f32 %v2684, %v2844
      %v2846 = vpop.f32.mrb[0].mxu0
      %2847 = vmatprep.mubr.bf16.mxu0 0
      %2848 = vmatmul.mubr.bf16.gmra.mrb[0].mxu0 %v2360
      %v2849 = vpop.f32.mrb[0].mxu0
      %v2850 = vadd.f32 %v2689, %v2849
      %v2851 = vpop.f32.mrb[0].mxu0
      %v2852 = vpop.f32.mrb[0].mxu0
      %v2853 = vadd.f32 %v2692, %v2852
      %v2854 = vpop.f32.mrb[0].mxu0
      %2855 = vmatprep.mubr.bf16.mxu0 0
      %2856 = vmatmul.mubr.bf16.gmra.mrb[0].mxu0 %v2363
      %v2857 = vpop.f32.mrb[0].mxu0
      %v2858 = vadd.f32 %v2697, %v2857
      %v2859 = vpop.f32.mrb[0].mxu0
      %v2860 = vpop.f32.mrb[0].mxu0
      %v2861 = vadd.f32 %v2700, %v2860
      %v2862 = vpop.f32.mrb[0].mxu0
      %2863 = vmatprep.mubr.bf16.mxu0 0
      %2864 = vmatmul.mubr.bf16.gmra.mrb[0].mxu0 %v2366
      %v2865 = vpop.f32.mrb[0].mxu0
      %v2866 = vadd.f32 %v2705, %v2865
      %v2867 = vpop.f32.mrb[0].mxu0
      %v2868 = vpop.f32.mrb[0].mxu0
      %v2869 = vadd.f32 %v2708, %v2868
      %v2870 = vpop.f32.mrb[0].mxu0
      %2871 = vmatprep.mubr.bf16.mxu0 0
      %2872 = vmatmul.mubr.bf16.gmra.mrb[0].mxu0 %v2369
      %v2873 = vpop.f32.mrb[0].mxu0
      %v2874 = vadd.f32 %v2713, %v2873
      %v2875 = vpop.f32.mrb[0].mxu0
      %v2876 = vpop.f32.mrb[0].mxu0
      %v2877 = vadd.f32 %v2716, %v2876
      %v2878 = vpop.f32.mrb[0].mxu0
      %2879 = vmatprep.mubr.bf16.mxu0 0
      %2880 = vmatmul.mubr.bf16.gmra.mrb[0].mxu0 %v2372
      %v2881 = vpop.f32.mrb[0].mxu0
      %v2882 = vadd.f32 %v2721, %v2881
      %v2883 = vpop.f32.mrb[0].mxu0
      %v2884 = vpop.f32.mrb[0].mxu0
      %v2885 = vadd.f32 %v2724, %v2884
      %v2886 = vpop.f32.mrb[0].mxu0
      %2887 = vdwg.mxu0
      %v2936 = vunpack.c.l.b16 %v1685
      %v2937 = vunpack.c.l.b16 %v1686
      %v2938 = vunpack.c.l.b16 %v1687
      %v2939 = vunpack.c.l.b16 %v1688
      %v2940 = vunpack.c.l.b16 %v1689
      %v2941 = vunpack.c.l.b16 %v1690
      %v2942 = vunpack.c.l.b16 %v1691
      %v2943 = vunpack.c.l.b16 %v1692
      %v2944 = vunpack.c.l.b16 %v1693
      %v2945 = vunpack.c.l.b16 %v1694
      %v2946 = vunpack.c.l.b16 %v1695
      %v2947 = vunpack.c.l.b16 %v1696
      %v2948 = vunpack.c.l.b16 %v1697
      %v2949 = vunpack.c.l.b16 %v1698
      %v2950 = vunpack.c.l.b16 %v1699
      %v2951 = vunpack.c.l.b16 %v1700
      %v2952 = vunpack.c.l.b16 %v1701
      %v2953 = vunpack.c.l.b16 %v1702
      %v2954 = vunpack.c.l.b16 %v1703
      %v2955 = vunpack.c.l.b16 %v1704
      %v2956 = vunpack.c.l.b16 %v1705
      %v2957 = vunpack.c.l.b16 %v1706
      %v2958 = vunpack.c.l.b16 %v1707
      %v2959 = vunpack.c.l.b16 %v1708
      %v2960 = vunpack.c.l.b16 %v1709
      %v2961 = vunpack.c.l.b16 %v1710
      %v2962 = vunpack.c.l.b16 %v1711
      %v2963 = vunpack.c.l.b16 %v1712
      %v2964 = vunpack.c.l.b16 %v1713
      %v2965 = vunpack.c.l.b16 %v1714
      %v2966 = vunpack.c.l.b16 %v1715
      %v2967 = vunpack.c.l.b16 %v1716
      %v2968 = vunpack.c.l.b16 %v1717
      %v2969 = vunpack.c.l.b16 %v1718
      %v2970 = vunpack.c.l.b16 %v1719
      %v2971 = vunpack.c.l.b16 %v1720
      %v2972 = vunpack.c.l.b16 %v1721
      %v2973 = vunpack.c.l.b16 %v1722
      %v2974 = vunpack.c.l.b16 %v1723
      %v2975 = vunpack.c.l.b16 %v1724
      %v2976 = vunpack.c.l.b16 %v1725
      %v2977 = vunpack.c.l.b16 %v1726
      %v2978 = vunpack.c.l.b16 %v1727
      %v2979 = vunpack.c.l.b16 %v1728
      %v2980 = vunpack.c.l.b16 %v1729
      %v2981 = vunpack.c.l.b16 %v1730
      %v2982 = vunpack.c.l.b16 %v1731
      %v2983 = vunpack.c.l.b16 %v1732
      %v2984 = vpack.c.b16 %v2937, %v2936
      %v2985 = vpack.c.b16 %v2939, %v2938
      %v2986 = vpack.c.b16 %v2941, %v2940
      %v2987 = vpack.c.b16 %v2943, %v2942
      %v2988 = vpack.c.b16 %v2945, %v2944
      %v2989 = vpack.c.b16 %v2947, %v2946
      %v2990 = vpack.c.b16 %v2949, %v2948
      %v2991 = vpack.c.b16 %v2951, %v2950
      %v2992 = vpack.c.b16 %v2953, %v2952
      %v2993 = vpack.c.b16 %v2955, %v2954
      %v2994 = vpack.c.b16 %v2957, %v2956
      %v2995 = vpack.c.b16 %v2959, %v2958
      %v2996 = vpack.c.b16 %v2961, %v2960
      %v2997 = vpack.c.b16 %v2963, %v2962
      %v2998 = vpack.c.b16 %v2965, %v2964
      %v2999 = vpack.c.b16 %v2967, %v2966
      %v3000 = vpack.c.b16 %v2969, %v2968
      %v3001 = vpack.c.b16 %v2971, %v2970
      %v3002 = vpack.c.b16 %v2973, %v2972
      %v3003 = vpack.c.b16 %v2975, %v2974
      %v3004 = vpack.c.b16 %v2977, %v2976
      %v3005 = vpack.c.b16 %v2979, %v2978
      %v3006 = vpack.c.b16 %v2981, %v2980
      %v3007 = vpack.c.b16 %v2983, %v2982
      %3032 = vmatprep.subr.bf16.mxu0 0
      %3033 = vmatpush1.bf16.msra.mxu0 %v2984
      %3034 = vmatprep.subr.bf16.mxu0 0
      %3035 = vmatpush1.bf16.msra.mxu0 %v2985
      %3036 = vmatprep.subr.bf16.mxu0 0
      %3037 = vmatpush1.bf16.msra.mxu0 %v2986
      %3038 = vmatprep.subr.bf16.mxu0 0
      %3039 = vmatpush1.bf16.msra.mxu0 %v2987
      %3040 = vmatprep.subr.bf16.mxu0 0
      %3041 = vmatpush1.bf16.msra.mxu0 %v2988
      %3042 = vmatprep.subr.bf16.mxu0 0
      %3043 = vmatpush1.bf16.msra.mxu0 %v2989
      %3044 = vmatprep.subr.bf16.mxu0 0
      %3045 = vmatpush1.bf16.msra.mxu0 %v2990
      %3046 = vmatprep.subr.bf16.mxu0 0
      %3047 = vmatpush1.bf16.msra.mxu0 %v2991
      %3048 = vmatprep.subr.bf16.mxu0 0
      %3049 = vmatpush1.bf16.msra.mxu0 %v2992
      %3050 = vmatprep.subr.bf16.mxu0 0
      %3051 = vmatpush1.bf16.msra.mxu0 %v2993
      %3052 = vmatprep.subr.bf16.mxu0 0
      %3053 = vmatpush1.bf16.msra.mxu0 %v2994
      %3054 = vmatprep.subr.bf16.mxu0 0
      %3055 = vmatpush1.bf16.msra.mxu0 %v2995
      %3056 = vmatprep.subr.bf16.mxu0 0
      %3057 = vmatpush1.bf16.msra.mxu0 %v2996
      %3058 = vmatprep.subr.bf16.mxu0 0
      %3059 = vmatpush1.bf16.msra.mxu0 %v2997
      %3060 = vmatprep.subr.bf16.mxu0 0
      %3061 = vmatpush1.bf16.msra.mxu0 %v2998
      %3062 = vmatprep.subr.bf16.mxu0 0
      %3063 = vmatpush1.bf16.msra.mxu0 %v2999
      %3064 = vmatprep.mubr.bf16.mxu0 %v1638
      %3065 = vmatmul.mubr.bf16.gmra.mrb[0].mxu0 %v1637
      %v3066 = vpop.f32.mrb[0].mxu0
      %v3067 = vadd.f32 %v2762, %v3066
      %v3068 = vpop.f32.mrb[0].mxu0
      %v3069 = vpop.f32.mrb[0].mxu0
      %v3070 = vadd.f32 %v2765, %v3069
      %v3071 = vpop.f32.mrb[0].mxu0
      %3072 = vmatprep.mubr.bf16.mxu0 %v1641
      %3073 = vmatmul.mubr.bf16.gmra.mrb[0].mxu0 %v1640
      %v3074 = vpop.f32.mrb[0].mxu0
      %v3075 = vadd.f32 %v2770, %v3074
      %v3076 = vpop.f32.mrb[0].mxu0
      %v3077 = vpop.f32.mrb[0].mxu0
      %v3078 = vadd.f32 %v2773, %v3077
      %v3079 = vpop.f32.mrb[0].mxu0
      %3080 = vmatprep.mubr.bf16.mxu0 %v1644
      %3081 = vmatmul.mubr.bf16.gmra.mrb[0].mxu0 %v1643
      %v3082 = vpop.f32.mrb[0].mxu0
      %v3083 = vadd.f32 %v2778, %v3082
      %v3084 = vpop.f32.mrb[0].mxu0
      %v3085 = vpop.f32.mrb[0].mxu0
      %v3086 = vadd.f32 %v2781, %v3085
      %v3087 = vpop.f32.mrb[0].mxu0
      %3088 = vmatprep.mubr.bf16.mxu0 %v1647
      %3089 = vmatmul.mubr.bf16.gmra.mrb[0].mxu0 %v1646
      %v3090 = vpop.f32.mrb[0].mxu0
      %v3091 = vadd.f32 %v2786, %v3090
      %v3092 = vpop.f32.mrb[0].mxu0
      %v3093 = vpop.f32.mrb[0].mxu0
      %v3094 = vadd.f32 %v2789, %v3093
      %v3095 = vpop.f32.mrb[0].mxu0
      %3096 = vmatprep.mubr.bf16.mxu0 %v1650
      %3097 = vmatmul.mubr.bf16.gmra.mrb[0].mxu0 %v1649
      %v3098 = vpop.f32.mrb[0].mxu0
      %v3099 = vadd.f32 %v2794, %v3098
      %v3100 = vpop.f32.mrb[0].mxu0
      %v3101 = vpop.f32.mrb[0].mxu0
      %v3102 = vadd.f32 %v2797, %v3101
      %v3103 = vpop.f32.mrb[0].mxu0
      %3104 = vmatprep.mubr.bf16.mxu0 %v1653
      %3105 = vmatmul.mubr.bf16.gmra.mrb[0].mxu0 %v1652
      %v3106 = vpop.f32.mrb[0].mxu0
      %v3107 = vadd.f32 %v2802, %v3106
      %v3108 = vpop.f32.mrb[0].mxu0
      %v3109 = vpop.f32.mrb[0].mxu0
      %v3110 = vadd.f32 %v2805, %v3109
      %v3111 = vpop.f32.mrb[0].mxu0
      %3112 = vmatprep.mubr.bf16.mxu0 %v1656
      %3113 = vmatmul.mubr.bf16.gmra.mrb[0].mxu0 %v1655
      %v3114 = vpop.f32.mrb[0].mxu0
      %v3115 = vadd.f32 %v2810, %v3114
      %v3116 = vpop.f32.mrb[0].mxu0
      %v3117 = vpop.f32.mrb[0].mxu0
      %v3118 = vadd.f32 %v2813, %v3117
      %v3119 = vpop.f32.mrb[0].mxu0
      %3120 = vmatprep.mubr.bf16.mxu0 %v1659
      %3121 = vmatmul.mubr.bf16.gmra.mrb[0].mxu0 %v1658
      %v3122 = vpop.f32.mrb[0].mxu0
      %v3123 = vadd.f32 %v2818, %v3122
      %v3124 = vpop.f32.mrb[0].mxu0
      %v3125 = vpop.f32.mrb[0].mxu0
      %v3126 = vadd.f32 %v2821, %v3125
      %v3127 = vpop.f32.mrb[0].mxu0
      %3128 = vmatprep.mubr.bf16.mxu0 %v1662
      %3129 = vmatmul.mubr.bf16.gmra.mrb[0].mxu0 %v1661
      %v3130 = vpop.f32.mrb[0].mxu0
      %v3131 = vadd.f32 %v2826, %v3130
      %v3132 = vpop.f32.mrb[0].mxu0
      %v3133 = vpop.f32.mrb[0].mxu0
      %v3134 = vadd.f32 %v2829, %v3133
      %v3135 = vpop.f32.mrb[0].mxu0
      %3136 = vmatprep.mubr.bf16.mxu0 %v1665
      %3137 = vmatmul.mubr.bf16.gmra.mrb[0].mxu0 %v1664
      %v3138 = vpop.f32.mrb[0].mxu0
      %v3139 = vadd.f32 %v2834, %v3138
      %v3140 = vpop.f32.mrb[0].mxu0
      %v3141 = vpop.f32.mrb[0].mxu0
      %v3142 = vadd.f32 %v2837, %v3141
      %v3143 = vpop.f32.mrb[0].mxu0
      %3144 = vmatprep.mubr.bf16.mxu0 %v1668
      %3145 = vmatmul.mubr.bf16.gmra.mrb[0].mxu0 %v1667
      %v3146 = vpop.f32.mrb[0].mxu0
      %v3147 = vadd.f32 %v2842, %v3146
      %v3148 = vpop.f32.mrb[0].mxu0
      %v3149 = vpop.f32.mrb[0].mxu0
      %v3150 = vadd.f32 %v2845, %v3149
      %v3151 = vpop.f32.mrb[0].mxu0
      %3152 = vmatprep.mubr.bf16.mxu0 %v1671
      %3153 = vmatmul.mubr.bf16.gmra.mrb[0].mxu0 %v1670
      %v3154 = vpop.f32.mrb[0].mxu0
      %v3155 = vadd.f32 %v2850, %v3154
      %v3156 = vpop.f32.mrb[0].mxu0
      %v3157 = vpop.f32.mrb[0].mxu0
      %v3158 = vadd.f32 %v2853, %v3157
      %v3159 = vpop.f32.mrb[0].mxu0
      %3160 = vmatprep.mubr.bf16.mxu0 %v1674
      %3161 = vmatmul.mubr.bf16.gmra.mrb[0].mxu0 %v1673
      %v3162 = vpop.f32.mrb[0].mxu0
      %v3163 = vadd.f32 %v2858, %v3162
      %v3164 = vpop.f32.mrb[0].mxu0
      %v3165 = vpop.f32.mrb[0].mxu0
      %v3166 = vadd.f32 %v2861, %v3165
      %v3167 = vpop.f32.mrb[0].mxu0
      %3168 = vmatprep.mubr.bf16.mxu0 %v1677
      %3169 = vmatmul.mubr.bf16.gmra.mrb[0].mxu0 %v1676
      %v3170 = vpop.f32.mrb[0].mxu0
      %v3171 = vadd.f32 %v2866, %v3170
      %v3172 = vpop.f32.mrb[0].mxu0
      %v3173 = vpop.f32.mrb[0].mxu0
      %v3174 = vadd.f32 %v2869, %v3173
      %v3175 = vpop.f32.mrb[0].mxu0
      %3176 = vmatprep.mubr.bf16.mxu0 %v1680
      %3177 = vmatmul.mubr.bf16.gmra.mrb[0].mxu0 %v1679
      %v3178 = vpop.f32.mrb[0].mxu0
      %v3179 = vadd.f32 %v2874, %v3178
      %v3180 = vpop.f32.mrb[0].mxu0
      %v3181 = vpop.f32.mrb[0].mxu0
      %v3182 = vadd.f32 %v2877, %v3181
      %v3183 = vpop.f32.mrb[0].mxu0
      %3184 = vmatprep.mubr.bf16.mxu0 %v1683
      %3185 = vmatmul.mubr.bf16.gmra.mrb[0].mxu0 %v1682
      %v3186 = vpop.f32.mrb[0].mxu0
      %v3187 = vadd.f32 %v2882, %v3186
      %v3188 = vpop.f32.mrb[0].mxu0
      %v3189 = vpop.f32.mrb[0].mxu0
      %v3190 = vadd.f32 %v2885, %v3189
      %v3191 = vpop.f32.mrb[0].mxu0
      %3192 = vdwg.mxu0
      %3193 = vmatprep.subr.bf16.mxu0 0
      %3194 = vmatpush1.bf16.msra.mxu0 %v3000
      %3195 = vmatprep.subr.bf16.mxu0 0
      %3196 = vmatpush1.bf16.msra.mxu0 %v3001
      %3197 = vmatprep.subr.bf16.mxu0 0
      %3198 = vmatpush1.bf16.msra.mxu0 %v3002
      %3199 = vmatprep.subr.bf16.mxu0 0
      %3200 = vmatpush1.bf16.msra.mxu0 %v3003
      %3201 = vmatprep.subr.bf16.mxu0 0
      %3202 = vmatpush1.bf16.msra.mxu0 %v3004
      %3203 = vmatprep.subr.bf16.mxu0 0
      %3204 = vmatpush1.bf16.msra.mxu0 %v3005
      %3205 = vmatprep.subr.bf16.mxu0 0
      %3206 = vmatpush1.bf16.msra.mxu0 %v3006
      %3207 = vmatprep.subr.bf16.mxu0 0
      %3208 = vmatpush1.bf16.msra.mxu0 %v3007
      %3209 = vmatprep.subr.bf16.mxu0 0
      %3210 = vmatpush1.bf16.msra.mxu0 0
      %3211 = vmatprep.subr.bf16.mxu0 0
      %3212 = vmatpush1.bf16.msra.mxu0 0
      %3213 = vmatprep.subr.bf16.mxu0 0
      %3214 = vmatpush1.bf16.msra.mxu0 0
      %3215 = vmatprep.subr.bf16.mxu0 0
      %3216 = vmatpush1.bf16.msra.mxu0 0
      %3217 = vmatprep.subr.bf16.mxu0 0
      %3218 = vmatpush1.bf16.msra.mxu0 0
      %3219 = vmatprep.subr.bf16.mxu0 0
      %3220 = vmatpush1.bf16.msra.mxu0 0
      %3221 = vmatprep.subr.bf16.mxu0 0
      %3222 = vmatpush1.bf16.msra.mxu0 0
      %3223 = vmatprep.subr.bf16.mxu0 0
      %3224 = vmatpush1.bf16.msra.mxu0 0
      %3225 = vmatprep.mubr.bf16.mxu0 0
      %3226 = vmatmul.mubr.bf16.gmra.mrb[0].mxu0 %v1639
      %v3227 = vpop.f32.mrb[0].mxu0
      %v3228 = vadd.f32 %v3067, %v3227
      %v3229 = vpop.f32.mrb[0].mxu0
      %v3230 = vpop.f32.mrb[0].mxu0
      %v3231 = vadd.f32 %v3070, %v3230
      %v3232 = vpop.f32.mrb[0].mxu0
      %3233 = vmatprep.mubr.bf16.mxu0 0
      %3234 = vmatmul.mubr.bf16.gmra.mrb[0].mxu0 %v1642
      %v3235 = vpop.f32.mrb[0].mxu0
      %v3236 = vadd.f32 %v3075, %v3235
      %v3237 = vpop.f32.mrb[0].mxu0
      %v3238 = vpop.f32.mrb[0].mxu0
      %v3239 = vadd.f32 %v3078, %v3238
      %v3240 = vpop.f32.mrb[0].mxu0
      %3241 = vmatprep.mubr.bf16.mxu0 0
      %3242 = vmatmul.mubr.bf16.gmra.mrb[0].mxu0 %v1645
      %v3243 = vpop.f32.mrb[0].mxu0
      %v3244 = vadd.f32 %v3083, %v3243
      %v3245 = vpop.f32.mrb[0].mxu0
      %v3246 = vpop.f32.mrb[0].mxu0
      %v3247 = vadd.f32 %v3086, %v3246
      %v3248 = vpop.f32.mrb[0].mxu0
      %3249 = vmatprep.mubr.bf16.mxu0 0
      %3250 = vmatmul.mubr.bf16.gmra.mrb[0].mxu0 %v1648
      %v3251 = vpop.f32.mrb[0].mxu0
      %v3252 = vadd.f32 %v3091, %v3251
      %v3253 = vpop.f32.mrb[0].mxu0
      %v3254 = vpop.f32.mrb[0].mxu0
      %v3255 = vadd.f32 %v3094, %v3254
      %v3256 = vpop.f32.mrb[0].mxu0
      %3257 = vmatprep.mubr.bf16.mxu0 0
      %3258 = vmatmul.mubr.bf16.gmra.mrb[0].mxu0 %v1651
      %v3259 = vpop.f32.mrb[0].mxu0
      %v3260 = vadd.f32 %v3099, %v3259
      %v3261 = vpop.f32.mrb[0].mxu0
      %v3262 = vpop.f32.mrb[0].mxu0
      %v3263 = vadd.f32 %v3102, %v3262
      %v3264 = vpop.f32.mrb[0].mxu0
      %3265 = vmatprep.mubr.bf16.mxu0 0
      %3266 = vmatmul.mubr.bf16.gmra.mrb[0].mxu0 %v1654
      %v3267 = vpop.f32.mrb[0].mxu0
      %v3268 = vadd.f32 %v3107, %v3267
      %v3269 = vpop.f32.mrb[0].mxu0
      %v3270 = vpop.f32.mrb[0].mxu0
      %v3271 = vadd.f32 %v3110, %v3270
      %v3272 = vpop.f32.mrb[0].mxu0
      %3273 = vmatprep.mubr.bf16.mxu0 0
      %3274 = vmatmul.mubr.bf16.gmra.mrb[0].mxu0 %v1657
      %v3275 = vpop.f32.mrb[0].mxu0
      %v3276 = vadd.f32 %v3115, %v3275
      %v3277 = vpop.f32.mrb[0].mxu0
      %v3278 = vpop.f32.mrb[0].mxu0
      %v3279 = vadd.f32 %v3118, %v3278
      %v3280 = vpop.f32.mrb[0].mxu0
      %3281 = vmatprep.mubr.bf16.mxu0 0
      %3282 = vmatmul.mubr.bf16.gmra.mrb[0].mxu0 %v1660
      %v3283 = vpop.f32.mrb[0].mxu0
      %v3284 = vadd.f32 %v3123, %v3283
      %v3285 = vpop.f32.mrb[0].mxu0
      %v3286 = vpop.f32.mrb[0].mxu0
      %v3287 = vadd.f32 %v3126, %v3286
      %v3288 = vpop.f32.mrb[0].mxu0
      %3289 = vmatprep.mubr.bf16.mxu0 0
      %3290 = vmatmul.mubr.bf16.gmra.mrb[0].mxu0 %v1663
      %v3291 = vpop.f32.mrb[0].mxu0
      %v3292 = vadd.f32 %v3131, %v3291
      %v3293 = vpop.f32.mrb[0].mxu0
      %v3294 = vpop.f32.mrb[0].mxu0
      %v3295 = vadd.f32 %v3134, %v3294
      %v3296 = vpop.f32.mrb[0].mxu0
      %3297 = vmatprep.mubr.bf16.mxu0 0
      %3298 = vmatmul.mubr.bf16.gmra.mrb[0].mxu0 %v1666
      %v3299 = vpop.f32.mrb[0].mxu0
      %v3300 = vadd.f32 %v3139, %v3299
      %v3301 = vpop.f32.mrb[0].mxu0
      %v3302 = vpop.f32.mrb[0].mxu0
      %v3303 = vadd.f32 %v3142, %v3302
      %v3304 = vpop.f32.mrb[0].mxu0
      %3305 = vmatprep.mubr.bf16.mxu0 0
      %3306 = vmatmul.mubr.bf16.gmra.mrb[0].mxu0 %v1669
      %v3307 = vpop.f32.mrb[0].mxu0
      %v3308 = vadd.f32 %v3147, %v3307
      %v3309 = vpop.f32.mrb[0].mxu0
      %v3310 = vpop.f32.mrb[0].mxu0
      %v3311 = vadd.f32 %v3150, %v3310
      %v3312 = vpop.f32.mrb[0].mxu0
      %3313 = vmatprep.mubr.bf16.mxu0 0
      %3314 = vmatmul.mubr.bf16.gmra.mrb[0].mxu0 %v1672
      %v3315 = vpop.f32.mrb[0].mxu0
      %v3316 = vadd.f32 %v3155, %v3315
      %v3317 = vpop.f32.mrb[0].mxu0
      %v3318 = vpop.f32.mrb[0].mxu0
      %v3319 = vadd.f32 %v3158, %v3318
      %v3320 = vpop.f32.mrb[0].mxu0
      %3321 = vmatprep.mubr.bf16.mxu0 0
      %3322 = vmatmul.mubr.bf16.gmra.mrb[0].mxu0 %v1675
      %v3323 = vpop.f32.mrb[0].mxu0
      %v3324 = vadd.f32 %v3163, %v3323
      %v3325 = vpop.f32.mrb[0].mxu0
      %v3326 = vpop.f32.mrb[0].mxu0
      %v3327 = vadd.f32 %v3166, %v3326
      %v3328 = vpop.f32.mrb[0].mxu0
      %3329 = vmatprep.mubr.bf16.mxu0 0
      %3330 = vmatmul.mubr.bf16.gmra.mrb[0].mxu0 %v1678
      %v3331 = vpop.f32.mrb[0].mxu0
      %v3332 = vadd.f32 %v3171, %v3331
      %v3333 = vpop.f32.mrb[0].mxu0
      %v3334 = vpop.f32.mrb[0].mxu0
      %v3335 = vadd.f32 %v3174, %v3334
      %v3336 = vpop.f32.mrb[0].mxu0
      %3337 = vmatprep.mubr.bf16.mxu0 0
      %3338 = vmatmul.mubr.bf16.gmra.mrb[0].mxu0 %v1681
      %v3339 = vpop.f32.mrb[0].mxu0
      %v3340 = vadd.f32 %v3179, %v3339
      %v3341 = vpop.f32.mrb[0].mxu0
      %v3342 = vpop.f32.mrb[0].mxu0
      %v3343 = vadd.f32 %v3182, %v3342
      %v3344 = vpop.f32.mrb[0].mxu0
      %3345 = vmatprep.mubr.bf16.mxu0 0
      %3346 = vmatmul.mubr.bf16.gmra.mrb[0].mxu0 %v1684
      %v3347 = vpop.f32.mrb[0].mxu0
      %v3348 = vadd.f32 %v3187, %v3347
      %v3349 = vpop.f32.mrb[0].mxu0
      %v3350 = vpop.f32.mrb[0].mxu0
      %v3351 = vadd.f32 %v3190, %v3350
      %v3352 = vpop.f32.mrb[0].mxu0
      %3353 = vdwg.mxu0
      %s3354 = scalar_lea.vmem [#allocation2], 64
      %v3355 = vld [vmem:[%s3354] sm:$0xff]
      %v3356 = vld [vmem:[%s3354 + $0x8] sm:$0xff]
      %v3357 = vld [vmem:[%s3354 + $0x10] sm:$0xff]
      %v3358 = vld [vmem:[%s3354 + $0x18] sm:$0xff]
      %v3359 = vld [vmem:[%s3354 + $0x20] sm:$0xff]
      %v3360 = vld [vmem:[%s3354 + $0x28] sm:$0xff]
      %v3361 = vld [vmem:[%s3354 + $0x30] sm:$0xff]
      %v3362 = vld [vmem:[%s3354 + $0x38] sm:$0xff]
      %v3363 = vld [vmem:[%s3354 + $0x40] sm:$0xff]
      %v3364 = vld [vmem:[%s3354 + $0x48] sm:$0xff]
      %v3365 = vld [vmem:[%s3354 + $0x50] sm:$0xff]
      %v3366 = vld [vmem:[%s3354 + $0x58] sm:$0xff]
      %v3367 = vld [vmem:[%s3354 + $0x60] sm:$0xff]
      %v3368 = vld [vmem:[%s3354 + $0x68] sm:$0xff]
      %v3369 = vld [vmem:[%s3354 + $0x70] sm:$0xff]
      %v3370 = vld [vmem:[%s3354 + $0x78] sm:$0xff]
      %v3371 = vld [vmem:[%s3354 + $0x80] sm:$0xff]
      %v3372 = vld [vmem:[%s3354 + $0x88] sm:$0xff]
      %v3373 = vld [vmem:[%s3354 + $0x90] sm:$0xff]
      %v3374 = vld [vmem:[%s3354 + $0x98] sm:$0xff]
      %v3375 = vld [vmem:[%s3354 + $0xa0] sm:$0xff]
      %v3376 = vld [vmem:[%s3354 + $0xa8] sm:$0xff]
      %v3377 = vld [vmem:[%s3354 + $0xb0] sm:$0xff]
      %v3378 = vld [vmem:[%s3354 + $0xb8] sm:$0xff]
      %v3379 = vld [vmem:[%s3354 + $0xc0] sm:$0xff]
      %v3380 = vld [vmem:[%s3354 + $0xc8] sm:$0xff]
      %v3381 = vld [vmem:[%s3354 + $0xd0] sm:$0xff]
      %v3382 = vld [vmem:[%s3354 + $0xd8] sm:$0xff]
      %v3383 = vld [vmem:[%s3354 + $0xe0] sm:$0xff]
      %v3384 = vld [vmem:[%s3354 + $0xe8] sm:$0xff]
      %v3385 = vld [vmem:[%s3354 + $0xf0] sm:$0xff]
      %v3386 = vld [vmem:[%s3354 + $0xf8] sm:$0xff]
      %v3387 = vld [vmem:[%s3354 + $0x100] sm:$0xff]
      %v3388 = vld [vmem:[%s3354 + $0x108] sm:$0xff]
      %v3389 = vld [vmem:[%s3354 + $0x110] sm:$0xff]
      %v3390 = vld [vmem:[%s3354 + $0x118] sm:$0xff]
      %v3391 = vld [vmem:[%s3354 + $0x120] sm:$0xff]
      %v3392 = vld [vmem:[%s3354 + $0x128] sm:$0xff]
      %v3393 = vld [vmem:[%s3354 + $0x130] sm:$0xff]
      %v3394 = vld [vmem:[%s3354 + $0x138] sm:$0xff]
      %v3395 = vld [vmem:[%s3354 + $0x140] sm:$0xff]
      %v3396 = vld [vmem:[%s3354 + $0x148] sm:$0xff]
      %v3397 = vld [vmem:[%s3354 + $0x150] sm:$0xff]
      %v3398 = vld [vmem:[%s3354 + $0x158] sm:$0xff]
      %v3399 = vld [vmem:[%s3354 + $0x160] sm:$0xff]
      %v3400 = vld [vmem:[%s3354 + $0x168] sm:$0xff]
      %v3401 = vld [vmem:[%s3354 + $0x170] sm:$0xff]
      %v3402 = vld [vmem:[%s3354 + $0x178] sm:$0xff]
      %v3403 = vld [vmem:[%s3354 + $0x180] sm:$0xff]
      %v3404 = vld [vmem:[%s3354 + $0x188] sm:$0xff]
      %v3405 = vld [vmem:[%s3354 + $0x190] sm:$0xff]
      %v3406 = vld [vmem:[%s3354 + $0x198] sm:$0xff]
      %v3407 = vld [vmem:[%s3354 + $0x1a0] sm:$0xff]
      %v3408 = vld [vmem:[%s3354 + $0x1a8] sm:$0xff]
      %v3409 = vld [vmem:[%s3354 + $0x1b0] sm:$0xff]
      %v3410 = vld [vmem:[%s3354 + $0x1b8] sm:$0xff]
      %v3411 = vld [vmem:[%s3354 + $0x1c0] sm:$0xff]
      %v3412 = vld [vmem:[%s3354 + $0x1c8] sm:$0xff]
      %v3413 = vld [vmem:[%s3354 + $0x1d0] sm:$0xff]
      %v3414 = vld [vmem:[%s3354 + $0x1d8] sm:$0xff]
      %v3415 = vld [vmem:[%s3354 + $0x1e0] sm:$0xff]
      %v3416 = vld [vmem:[%s3354 + $0x1e8] sm:$0xff]
      %v3417 = vld [vmem:[%s3354 + $0x1f0] sm:$0xff]
      %v3418 = vld [vmem:[%s3354 + $0x1f8] sm:$0xff]
      %v3451 = vrot.slane %v3356, 1
      %v3452 = vrot.slane %v3357, 1
      %v3453 = vsel %vm1138, %v3451, %v3452
      %v3454 = vrot.slane %v3360, 1
      %v3455 = vrot.slane %v3361, 1
      %v3456 = vsel %vm1138, %v3454, %v3455
      %v3457 = vrot.slane %v3364, 1
      %v3458 = vrot.slane %v3365, 1
      %v3459 = vsel %vm1138, %v3457, %v3458
      %v3460 = vrot.slane %v3368, 1
      %v3461 = vrot.slane %v3369, 1
      %v3462 = vsel %vm1138, %v3460, %v3461
      %v3463 = vrot.slane %v3372, 1
      %v3464 = vrot.slane %v3373, 1
      %v3465 = vsel %vm1138, %v3463, %v3464
      %v3466 = vrot.slane %v3376, 1
      %v3467 = vrot.slane %v3377, 1
      %v3468 = vsel %vm1138, %v3466, %v3467
      %v3469 = vrot.slane %v3380, 1
      %v3470 = vrot.slane %v3381, 1
      %v3471 = vsel %vm1138, %v3469, %v3470
      %v3472 = vrot.slane %v3384, 1
      %v3473 = vrot.slane %v3385, 1
      %v3474 = vsel %vm1138, %v3472, %v3473
      %v3475 = vrot.slane %v3388, 1
      %v3476 = vrot.slane %v3389, 1
      %v3477 = vsel %vm1138, %v3475, %v3476
      %v3478 = vrot.slane %v3392, 1
      %v3479 = vrot.slane %v3393, 1
      %v3480 = vsel %vm1138, %v3478, %v3479
      %v3481 = vrot.slane %v3396, 1
      %v3482 = vrot.slane %v3397, 1
      %v3483 = vsel %vm1138, %v3481, %v3482
      %v3484 = vrot.slane %v3400, 1
      %v3485 = vrot.slane %v3401, 1
      %v3486 = vsel %vm1138, %v3484, %v3485
      %v3487 = vrot.slane %v3404, 1
      %v3488 = vrot.slane %v3405, 1
      %v3489 = vsel %vm1138, %v3487, %v3488
      %v3490 = vrot.slane %v3408, 1
      %v3491 = vrot.slane %v3409, 1
      %v3492 = vsel %vm1138, %v3490, %v3491
      %v3493 = vrot.slane %v3412, 1
      %v3494 = vrot.slane %v3413, 1
      %v3495 = vsel %vm1138, %v3493, %v3494
      %v3496 = vrot.slane %v3416, 1
      %v3497 = vrot.slane %v3417, 1
      %v3498 = vsel %vm1138, %v3496, %v3497
      %v3515 = vrot.slane %v3356, 2
      %v3516 = vrot.slane %v3357, 2
      %v3517 = vsel %vm1203, %v3515, %v3516
      %v3518 = vrot.slane %v3358, 2
      %v3519 = vsel %vm1203, %v3516, %v3518
      %v3520 = vrot.slane %v3360, 2
      %v3521 = vrot.slane %v3361, 2
      %v3522 = vsel %vm1203, %v3520, %v3521
      %v3523 = vrot.slane %v3362, 2
      %v3524 = vsel %vm1203, %v3521, %v3523
      %v3525 = vrot.slane %v3364, 2
      %v3526 = vrot.slane %v3365, 2
      %v3527 = vsel %vm1203, %v3525, %v3526
      %v3528 = vrot.slane %v3366, 2
      %v3529 = vsel %vm1203, %v3526, %v3528
      %v3530 = vrot.slane %v3368, 2
      %v3531 = vrot.slane %v3369, 2
      %v3532 = vsel %vm1203, %v3530, %v3531
      %v3533 = vrot.slane %v3370, 2
      %v3534 = vsel %vm1203, %v3531, %v3533
      %v3535 = vrot.slane %v3372, 2
      %v3536 = vrot.slane %v3373, 2
      %v3537 = vsel %vm1203, %v3535, %v3536
      %v3538 = vrot.slane %v3374, 2
      %v3539 = vsel %vm1203, %v3536, %v3538
      %v3540 = vrot.slane %v3376, 2
      %v3541 = vrot.slane %v3377, 2
      %v3542 = vsel %vm1203, %v3540, %v3541
      %v3543 = vrot.slane %v3378, 2
      %v3544 = vsel %vm1203, %v3541, %v3543
      %v3545 = vrot.slane %v3380, 2
      %v3546 = vrot.slane %v3381, 2
      %v3547 = vsel %vm1203, %v3545, %v3546
      %v3548 = vrot.slane %v3382, 2
      %v3549 = vsel %vm1203, %v3546, %v3548
      %v3550 = vrot.slane %v3384, 2
      %v3551 = vrot.slane %v3385, 2
      %v3552 = vsel %vm1203, %v3550, %v3551
      %v3553 = vrot.slane %v3386, 2
      %v3554 = vsel %vm1203, %v3551, %v3553
      %v3555 = vrot.slane %v3388, 2
      %v3556 = vrot.slane %v3389, 2
      %v3557 = vsel %vm1203, %v3555, %v3556
      %v3558 = vrot.slane %v3390, 2
      %v3559 = vsel %vm1203, %v3556, %v3558
      %v3560 = vrot.slane %v3392, 2
      %v3561 = vrot.slane %v3393, 2
      %v3562 = vsel %vm1203, %v3560, %v3561
      %v3563 = vrot.slane %v3394, 2
      %v3564 = vsel %vm1203, %v3561, %v3563
      %v3565 = vrot.slane %v3396, 2
      %v3566 = vrot.slane %v3397, 2
      %v3567 = vsel %vm1203, %v3565, %v3566
      %v3568 = vrot.slane %v3398, 2
      %v3569 = vsel %vm1203, %v3566, %v3568
      %v3570 = vrot.slane %v3400, 2
      %v3571 = vrot.slane %v3401, 2
      %v3572 = vsel %vm1203, %v3570, %v3571
      %v3573 = vrot.slane %v3402, 2
      %v3574 = vsel %vm1203, %v3571, %v3573
      %v3575 = vrot.slane %v3404, 2
      %v3576 = vrot.slane %v3405, 2
      %v3577 = vsel %vm1203, %v3575, %v3576
      %v3578 = vrot.slane %v3406, 2
      %v3579 = vsel %vm1203, %v3576, %v3578
      %v3580 = vrot.slane %v3408, 2
      %v3581 = vrot.slane %v3409, 2
      %v3582 = vsel %vm1203, %v3580, %v3581
      %v3583 = vrot.slane %v3410, 2
      %v3584 = vsel %vm1203, %v3581, %v3583
      %v3585 = vrot.slane %v3412, 2
      %v3586 = vrot.slane %v3413, 2
      %v3587 = vsel %vm1203, %v3585, %v3586
      %v3588 = vrot.slane %v3414, 2
      %v3589 = vsel %vm1203, %v3586, %v3588
      %v3590 = vrot.slane %v3416, 2
      %v3591 = vrot.slane %v3417, 2
      %v3592 = vsel %vm1203, %v3590, %v3591
      %v3593 = vrot.slane %v3418, 2
      %v3594 = vsel %vm1203, %v3591, %v3593
      %v3611 = vrot.slane %v3355, 7
      %v3612 = vrot.slane %v3356, 7
      %v3613 = vsel %vm1300, %v3611, %v3612
      %v3614 = vrot.slane %v3451, 7
      %v3615 = vrot.slane %v3453, 7
      %v3616 = vsel %vm1300, %v3614, %v3615
      %v3617 = vrot.slane %v3515, 7
      %v3618 = vrot.slane %v3517, 7
      %v3619 = vsel %vm1300, %v3617, %v3618
      %v3620 = vrot.slane %v3357, 7
      %v3621 = vsel %vm1300, %v3612, %v3620
      %v3622 = vrot.slane %v3452, 7
      %v3623 = vsel %vm1300, %v3615, %v3622
      %v3624 = vrot.slane %v3519, 7
      %v3625 = vsel %vm1300, %v3618, %v3624
      %v3626 = vrot.slane %v3359, 7
      %v3627 = vrot.slane %v3360, 7
      %v3628 = vsel %vm1300, %v3626, %v3627
      %v3629 = vrot.slane %v3454, 7
      %v3630 = vrot.slane %v3456, 7
      %v3631 = vsel %vm1300, %v3629, %v3630
      %v3632 = vrot.slane %v3520, 7
      %v3633 = vrot.slane %v3522, 7
      %v3634 = vsel %vm1300, %v3632, %v3633
      %v3635 = vrot.slane %v3361, 7
      %v3636 = vsel %vm1300, %v3627, %v3635
      %v3637 = vrot.slane %v3455, 7
      %v3638 = vsel %vm1300, %v3630, %v3637
      %v3639 = vrot.slane %v3524, 7
      %v3640 = vsel %vm1300, %v3633, %v3639
      %v3641 = vrot.slane %v3363, 7
      %v3642 = vrot.slane %v3364, 7
      %v3643 = vsel %vm1300, %v3641, %v3642
      %v3644 = vrot.slane %v3457, 7
      %v3645 = vrot.slane %v3459, 7
      %v3646 = vsel %vm1300, %v3644, %v3645
      %v3647 = vrot.slane %v3525, 7
      %v3648 = vrot.slane %v3527, 7
      %v3649 = vsel %vm1300, %v3647, %v3648
      %v3650 = vrot.slane %v3365, 7
      %v3651 = vsel %vm1300, %v3642, %v3650
      %v3652 = vrot.slane %v3458, 7
      %v3653 = vsel %vm1300, %v3645, %v3652
      %v3654 = vrot.slane %v3529, 7
      %v3655 = vsel %vm1300, %v3648, %v3654
      %v3656 = vrot.slane %v3367, 7
      %v3657 = vrot.slane %v3368, 7
      %v3658 = vsel %vm1300, %v3656, %v3657
      %v3659 = vrot.slane %v3460, 7
      %v3660 = vrot.slane %v3462, 7
      %v3661 = vsel %vm1300, %v3659, %v3660
      %v3662 = vrot.slane %v3530, 7
      %v3663 = vrot.slane %v3532, 7
      %v3664 = vsel %vm1300, %v3662, %v3663
      %v3665 = vrot.slane %v3369, 7
      %v3666 = vsel %vm1300, %v3657, %v3665
      %v3667 = vrot.slane %v3461, 7
      %v3668 = vsel %vm1300, %v3660, %v3667
      %v3669 = vrot.slane %v3534, 7
      %v3670 = vsel %vm1300, %v3663, %v3669
      %v3671 = vrot.slane %v3371, 7
      %v3672 = vrot.slane %v3372, 7
      %v3673 = vsel %vm1300, %v3671, %v3672
      %v3674 = vrot.slane %v3463, 7
      %v3675 = vrot.slane %v3465, 7
      %v3676 = vsel %vm1300, %v3674, %v3675
      %v3677 = vrot.slane %v3535, 7
      %v3678 = vrot.slane %v3537, 7
      %v3679 = vsel %vm1300, %v3677, %v3678
      %v3680 = vrot.slane %v3373, 7
      %v3681 = vsel %vm1300, %v3672, %v3680
      %v3682 = vrot.slane %v3464, 7
      %v3683 = vsel %vm1300, %v3675, %v3682
      %v3684 = vrot.slane %v3539, 7
      %v3685 = vsel %vm1300, %v3678, %v3684
      %v3686 = vrot.slane %v3375, 7
      %v3687 = vrot.slane %v3376, 7
      %v3688 = vsel %vm1300, %v3686, %v3687
      %v3689 = vrot.slane %v3466, 7
      %v3690 = vrot.slane %v3468, 7
      %v3691 = vsel %vm1300, %v3689, %v3690
      %v3692 = vrot.slane %v3540, 7
      %v3693 = vrot.slane %v3542, 7
      %v3694 = vsel %vm1300, %v3692, %v3693
      %v3695 = vrot.slane %v3377, 7
      %v3696 = vsel %vm1300, %v3687, %v3695
      %v3697 = vrot.slane %v3467, 7
      %v3698 = vsel %vm1300, %v3690, %v3697
      %v3699 = vrot.slane %v3544, 7
      %v3700 = vsel %vm1300, %v3693, %v3699
      %v3701 = vrot.slane %v3379, 7
      %v3702 = vrot.slane %v3380, 7
      %v3703 = vsel %vm1300, %v3701, %v3702
      %v3704 = vrot.slane %v3469, 7
      %v3705 = vrot.slane %v3471, 7
      %v3706 = vsel %vm1300, %v3704, %v3705
      %v3707 = vrot.slane %v3545, 7
      %v3708 = vrot.slane %v3547, 7
      %v3709 = vsel %vm1300, %v3707, %v3708
      %v3710 = vrot.slane %v3381, 7
      %v3711 = vsel %vm1300, %v3702, %v3710
      %v3712 = vrot.slane %v3470, 7
      %v3713 = vsel %vm1300, %v3705, %v3712
      %v3714 = vrot.slane %v3549, 7
      %v3715 = vsel %vm1300, %v3708, %v3714
      %v3716 = vrot.slane %v3383, 7
      %v3717 = vrot.slane %v3384, 7
      %v3718 = vsel %vm1300, %v3716, %v3717
      %v3719 = vrot.slane %v3472, 7
      %v3720 = vrot.slane %v3474, 7
      %v3721 = vsel %vm1300, %v3719, %v3720
      %v3722 = vrot.slane %v3550, 7
      %v3723 = vrot.slane %v3552, 7
      %v3724 = vsel %vm1300, %v3722, %v3723
      %v3725 = vrot.slane %v3385, 7
      %v3726 = vsel %vm1300, %v3717, %v3725
      %v3727 = vrot.slane %v3473, 7
      %v3728 = vsel %vm1300, %v3720, %v3727
      %v3729 = vrot.slane %v3554, 7
      %v3730 = vsel %vm1300, %v3723, %v3729
      %v3731 = vrot.slane %v3387, 7
      %v3732 = vrot.slane %v3388, 7
      %v3733 = vsel %vm1300, %v3731, %v3732
      %v3734 = vrot.slane %v3475, 7
      %v3735 = vrot.slane %v3477, 7
      %v3736 = vsel %vm1300, %v3734, %v3735
      %v3737 = vrot.slane %v3555, 7
      %v3738 = vrot.slane %v3557, 7
      %v3739 = vsel %vm1300, %v3737, %v3738
      %v3740 = vrot.slane %v3389, 7
      %v3741 = vsel %vm1300, %v3732, %v3740
      %v3742 = vrot.slane %v3476, 7
      %v3743 = vsel %vm1300, %v3735, %v3742
      %v3744 = vrot.slane %v3559, 7
      %v3745 = vsel %vm1300, %v3738, %v3744
      %v3746 = vrot.slane %v3391, 7
      %v3747 = vrot.slane %v3392, 7
      %v3748 = vsel %vm1300, %v3746, %v3747
      %v3749 = vrot.slane %v3478, 7
      %v3750 = vrot.slane %v3480, 7
      %v3751 = vsel %vm1300, %v3749, %v3750
      %v3752 = vrot.slane %v3560, 7
      %v3753 = vrot.slane %v3562, 7
      %v3754 = vsel %vm1300, %v3752, %v3753
      %v3755 = vrot.slane %v3393, 7
      %v3756 = vsel %vm1300, %v3747, %v3755
      %v3757 = vrot.slane %v3479, 7
      %v3758 = vsel %vm1300, %v3750, %v3757
      %v3759 = vrot.slane %v3564, 7
      %v3760 = vsel %vm1300, %v3753, %v3759
      %v3761 = vrot.slane %v3395, 7
      %v3762 = vrot.slane %v3396, 7
      %v3763 = vsel %vm1300, %v3761, %v3762
      %v3764 = vrot.slane %v3481, 7
      %v3765 = vrot.slane %v3483, 7
      %v3766 = vsel %vm1300, %v3764, %v3765
      %v3767 = vrot.slane %v3565, 7
      %v3768 = vrot.slane %v3567, 7
      %v3769 = vsel %vm1300, %v3767, %v3768
      %v3770 = vrot.slane %v3397, 7
      %v3771 = vsel %vm1300, %v3762, %v3770
      %v3772 = vrot.slane %v3482, 7
      %v3773 = vsel %vm1300, %v3765, %v3772
      %v3774 = vrot.slane %v3569, 7
      %v3775 = vsel %vm1300, %v3768, %v3774
      %v3776 = vrot.slane %v3399, 7
      %v3777 = vrot.slane %v3400, 7
      %v3778 = vsel %vm1300, %v3776, %v3777
      %v3779 = vrot.slane %v3484, 7
      %v3780 = vrot.slane %v3486, 7
      %v3781 = vsel %vm1300, %v3779, %v3780
      %v3782 = vrot.slane %v3570, 7
      %v3783 = vrot.slane %v3572, 7
      %v3784 = vsel %vm1300, %v3782, %v3783
      %v3785 = vrot.slane %v3401, 7
      %v3786 = vsel %vm1300, %v3777, %v3785
      %v3787 = vrot.slane %v3485, 7
      %v3788 = vsel %vm1300, %v3780, %v3787
      %v3789 = vrot.slane %v3574, 7
      %v3790 = vsel %vm1300, %v3783, %v3789
      %v3791 = vrot.slane %v3403, 7
      %v3792 = vrot.slane %v3404, 7
      %v3793 = vsel %vm1300, %v3791, %v3792
      %v3794 = vrot.slane %v3487, 7
      %v3795 = vrot.slane %v3489, 7
      %v3796 = vsel %vm1300, %v3794, %v3795
      %v3797 = vrot.slane %v3575, 7
      %v3798 = vrot.slane %v3577, 7
      %v3799 = vsel %vm1300, %v3797, %v3798
      %v3800 = vrot.slane %v3405, 7
      %v3801 = vsel %vm1300, %v3792, %v3800
      %v3802 = vrot.slane %v3488, 7
      %v3803 = vsel %vm1300, %v3795, %v3802
      %v3804 = vrot.slane %v3579, 7
      %v3805 = vsel %vm1300, %v3798, %v3804
      %v3806 = vrot.slane %v3407, 7
      %v3807 = vrot.slane %v3408, 7
      %v3808 = vsel %vm1300, %v3806, %v3807
      %v3809 = vrot.slane %v3490, 7
      %v3810 = vrot.slane %v3492, 7
      %v3811 = vsel %vm1300, %v3809, %v3810
      %v3812 = vrot.slane %v3580, 7
      %v3813 = vrot.slane %v3582, 7
      %v3814 = vsel %vm1300, %v3812, %v3813
      %v3815 = vrot.slane %v3409, 7
      %v3816 = vsel %vm1300, %v3807, %v3815
      %v3817 = vrot.slane %v3491, 7
      %v3818 = vsel %vm1300, %v3810, %v3817
      %v3819 = vrot.slane %v3584, 7
      %v3820 = vsel %vm1300, %v3813, %v3819
      %v3821 = vrot.slane %v3411, 7
      %v3822 = vrot.slane %v3412, 7
      %v3823 = vsel %vm1300, %v3821, %v3822
      %v3824 = vrot.slane %v3493, 7
      %v3825 = vrot.slane %v3495, 7
      %v3826 = vsel %vm1300, %v3824, %v3825
      %v3827 = vrot.slane %v3585, 7
      %v3828 = vrot.slane %v3587, 7
      %v3829 = vsel %vm1300, %v3827, %v3828
      %v3830 = vrot.slane %v3413, 7
      %v3831 = vsel %vm1300, %v3822, %v3830
      %v3832 = vrot.slane %v3494, 7
      %v3833 = vsel %vm1300, %v3825, %v3832
      %v3834 = vrot.slane %v3589, 7
      %v3835 = vsel %vm1300, %v3828, %v3834
      %v3836 = vrot.slane %v3415, 7
      %v3837 = vrot.slane %v3416, 7
      %v3838 = vsel %vm1300, %v3836, %v3837
      %v3839 = vrot.slane %v3496, 7
      %v3840 = vrot.slane %v3498, 7
      %v3841 = vsel %vm1300, %v3839, %v3840
      %v3842 = vrot.slane %v3590, 7
      %v3843 = vrot.slane %v3592, 7
      %v3844 = vsel %vm1300, %v3842, %v3843
      %v3845 = vrot.slane %v3417, 7
      %v3846 = vsel %vm1300, %v3837, %v3845
      %v3847 = vrot.slane %v3497, 7
      %v3848 = vsel %vm1300, %v3840, %v3847
      %v3849 = vrot.slane %v3594, 7
      %v3850 = vsel %vm1300, %v3843, %v3849
      %v3947 = vpack.c.bf16 %v3621, %v3613
      %v3948 = vpack.c.bf16 %v3623, %v3616
      %v3949 = vpack.c.bf16 %v3625, %v3619
      %v3950 = vpack.c.bf16 %v3636, %v3628
      %v3951 = vpack.c.bf16 %v3638, %v3631
      %v3952 = vpack.c.bf16 %v3640, %v3634
      %v3953 = vpack.c.bf16 %v3651, %v3643
      %v3954 = vpack.c.bf16 %v3653, %v3646
      %v3955 = vpack.c.bf16 %v3655, %v3649
      %v3956 = vpack.c.bf16 %v3666, %v3658
      %v3957 = vpack.c.bf16 %v3668, %v3661
      %v3958 = vpack.c.bf16 %v3670, %v3664
      %v3959 = vpack.c.bf16 %v3681, %v3673
      %v3960 = vpack.c.bf16 %v3683, %v3676
      %v3961 = vpack.c.bf16 %v3685, %v3679
      %v3962 = vpack.c.bf16 %v3696, %v3688
      %v3963 = vpack.c.bf16 %v3698, %v3691
      %v3964 = vpack.c.bf16 %v3700, %v3694
      %v3965 = vpack.c.bf16 %v3711, %v3703
      %v3966 = vpack.c.bf16 %v3713, %v3706
      %v3967 = vpack.c.bf16 %v3715, %v3709
      %v3968 = vpack.c.bf16 %v3726, %v3718
      %v3969 = vpack.c.bf16 %v3728, %v3721
      %v3970 = vpack.c.bf16 %v3730, %v3724
      %v3971 = vpack.c.bf16 %v3741, %v3733
      %v3972 = vpack.c.bf16 %v3743, %v3736
      %v3973 = vpack.c.bf16 %v3745, %v3739
      %v3974 = vpack.c.bf16 %v3756, %v3748
      %v3975 = vpack.c.bf16 %v3758, %v3751
      %v3976 = vpack.c.bf16 %v3760, %v3754
      %v3977 = vpack.c.bf16 %v3771, %v3763
      %v3978 = vpack.c.bf16 %v3773, %v3766
      %v3979 = vpack.c.bf16 %v3775, %v3769
      %v3980 = vpack.c.bf16 %v3786, %v3778
      %v3981 = vpack.c.bf16 %v3788, %v3781
      %v3982 = vpack.c.bf16 %v3790, %v3784
      %v3983 = vpack.c.bf16 %v3801, %v3793
      %v3984 = vpack.c.bf16 %v3803, %v3796
      %v3985 = vpack.c.bf16 %v3805, %v3799
      %v3986 = vpack.c.bf16 %v3816, %v3808
      %v3987 = vpack.c.bf16 %v3818, %v3811
      %v3988 = vpack.c.bf16 %v3820, %v3814
      %v3989 = vpack.c.bf16 %v3831, %v3823
      %v3990 = vpack.c.bf16 %v3833, %v3826
      %v3991 = vpack.c.bf16 %v3835, %v3829
      %v3992 = vpack.c.bf16 %v3846, %v3838
      %v3993 = vpack.c.bf16 %v3848, %v3841
      %v3994 = vpack.c.bf16 %v3850, %v3844
      %s3995 = scalar_lea.vmem %s4, 384
      %v3996 = vld [vmem:[%s3995] sm:$0xf]
      %v3997 = vld [vmem:[%s3995 + $0x4] sm:$0xf]
      %v3998 = vld [vmem:[%s3995 + $0x8] sm:$0xf]
      %v3999 = vld [vmem:[%s3995 + $0xc] sm:$0xf]
      %v4000 = vld [vmem:[%s3995 + $0x10] sm:$0xf]
      %v4001 = vld [vmem:[%s3995 + $0x14] sm:$0xf]
      %v4002 = vld [vmem:[%s3995 + $0x18] sm:$0xf]
      %v4003 = vld [vmem:[%s3995 + $0x1c] sm:$0xf]
      %v4004 = vld [vmem:[%s3995 + $0x20] sm:$0xf]
      %v4005 = vld [vmem:[%s3995 + $0x24] sm:$0xf]
      %v4006 = vld [vmem:[%s3995 + $0x28] sm:$0xf]
      %v4007 = vld [vmem:[%s3995 + $0x2c] sm:$0xf]
      %v4008 = vld [vmem:[%s3995 + $0x30] sm:$0xf]
      %v4009 = vld [vmem:[%s3995 + $0x34] sm:$0xf]
      %v4010 = vld [vmem:[%s3995 + $0x38] sm:$0xf]
      %v4011 = vld [vmem:[%s3995 + $0x3c] sm:$0xf]
      %v4012 = vld [vmem:[%s3995 + $0x40] sm:$0xf]
      %v4013 = vld [vmem:[%s3995 + $0x44] sm:$0xf]
      %v4014 = vld [vmem:[%s3995 + $0x48] sm:$0xf]
      %v4015 = vld [vmem:[%s3995 + $0x4c] sm:$0xf]
      %v4016 = vld [vmem:[%s3995 + $0x50] sm:$0xf]
      %v4017 = vld [vmem:[%s3995 + $0x54] sm:$0xf]
      %v4018 = vld [vmem:[%s3995 + $0x58] sm:$0xf]
      %v4019 = vld [vmem:[%s3995 + $0x5c] sm:$0xf]
      %v4020 = vld [vmem:[%s3995 + $0x60] sm:$0xf]
      %v4021 = vld [vmem:[%s3995 + $0x64] sm:$0xf]
      %v4022 = vld [vmem:[%s3995 + $0x68] sm:$0xf]
      %v4023 = vld [vmem:[%s3995 + $0x6c] sm:$0xf]
      %v4024 = vld [vmem:[%s3995 + $0x70] sm:$0xf]
      %v4025 = vld [vmem:[%s3995 + $0x74] sm:$0xf]
      %v4026 = vld [vmem:[%s3995 + $0x78] sm:$0xf]
      %v4027 = vld [vmem:[%s3995 + $0x7c] sm:$0xf]
      %v4028 = vld [vmem:[%s3995 + $0x80] sm:$0xf]
      %v4029 = vld [vmem:[%s3995 + $0x84] sm:$0xf]
      %v4030 = vld [vmem:[%s3995 + $0x88] sm:$0xf]
      %v4031 = vld [vmem:[%s3995 + $0x8c] sm:$0xf]
      %v4032 = vld [vmem:[%s3995 + $0x90] sm:$0xf]
      %v4033 = vld [vmem:[%s3995 + $0x94] sm:$0xf]
      %v4034 = vld [vmem:[%s3995 + $0x98] sm:$0xf]
      %v4035 = vld [vmem:[%s3995 + $0x9c] sm:$0xf]
      %v4036 = vld [vmem:[%s3995 + $0xa0] sm:$0xf]
      %v4037 = vld [vmem:[%s3995 + $0xa4] sm:$0xf]
      %v4038 = vld [vmem:[%s3995 + $0xa8] sm:$0xf]
      %v4039 = vld [vmem:[%s3995 + $0xac] sm:$0xf]
      %v4040 = vld [vmem:[%s3995 + $0xb0] sm:$0xf]
      %v4041 = vld [vmem:[%s3995 + $0xb4] sm:$0xf]
      %v4042 = vld [vmem:[%s3995 + $0xb8] sm:$0xf]
      %v4043 = vld [vmem:[%s3995 + $0xbc] sm:$0xf]
      %v4092 = vunpack.c.l.b16 %v3996
      %v4093 = vunpack.c.l.b16 %v3997
      %v4094 = vunpack.c.l.b16 %v3998
      %v4095 = vunpack.c.l.b16 %v3999
      %v4096 = vunpack.c.l.b16 %v4000
      %v4097 = vunpack.c.l.b16 %v4001
      %v4098 = vunpack.c.l.b16 %v4002
      %v4099 = vunpack.c.l.b16 %v4003
      %v4100 = vunpack.c.l.b16 %v4004
      %v4101 = vunpack.c.l.b16 %v4005
      %v4102 = vunpack.c.l.b16 %v4006
      %v4103 = vunpack.c.l.b16 %v4007
      %v4104 = vunpack.c.l.b16 %v4008
      %v4105 = vunpack.c.l.b16 %v4009
      %v4106 = vunpack.c.l.b16 %v4010
      %v4107 = vunpack.c.l.b16 %v4011
      %v4108 = vunpack.c.l.b16 %v4012
      %v4109 = vunpack.c.l.b16 %v4013
      %v4110 = vunpack.c.l.b16 %v4014
      %v4111 = vunpack.c.l.b16 %v4015
      %v4112 = vunpack.c.l.b16 %v4016
      %v4113 = vunpack.c.l.b16 %v4017
      %v4114 = vunpack.c.l.b16 %v4018
      %v4115 = vunpack.c.l.b16 %v4019
      %v4116 = vunpack.c.l.b16 %v4020
      %v4117 = vunpack.c.l.b16 %v4021
      %v4118 = vunpack.c.l.b16 %v4022
      %v4119 = vunpack.c.l.b16 %v4023
      %v4120 = vunpack.c.l.b16 %v4024
      %v4121 = vunpack.c.l.b16 %v4025
      %v4122 = vunpack.c.l.b16 %v4026
      %v4123 = vunpack.c.l.b16 %v4027
      %v4124 = vunpack.c.l.b16 %v4028
      %v4125 = vunpack.c.l.b16 %v4029
      %v4126 = vunpack.c.l.b16 %v4030
      %v4127 = vunpack.c.l.b16 %v4031
      %v4128 = vunpack.c.l.b16 %v4032
      %v4129 = vunpack.c.l.b16 %v4033
      %v4130 = vunpack.c.l.b16 %v4034
      %v4131 = vunpack.c.l.b16 %v4035
      %v4132 = vunpack.c.l.b16 %v4036
      %v4133 = vunpack.c.l.b16 %v4037
      %v4134 = vunpack.c.l.b16 %v4038
      %v4135 = vunpack.c.l.b16 %v4039
      %v4136 = vunpack.c.l.b16 %v4040
      %v4137 = vunpack.c.l.b16 %v4041
      %v4138 = vunpack.c.l.b16 %v4042
      %v4139 = vunpack.c.l.b16 %v4043
      %v4140 = vpack.c.b16 %v4093, %v4092
      %v4141 = vpack.c.b16 %v4095, %v4094
      %v4142 = vpack.c.b16 %v4097, %v4096
      %v4143 = vpack.c.b16 %v4099, %v4098
      %v4144 = vpack.c.b16 %v4101, %v4100
      %v4145 = vpack.c.b16 %v4103, %v4102
      %v4146 = vpack.c.b16 %v4105, %v4104
      %v4147 = vpack.c.b16 %v4107, %v4106
      %v4148 = vpack.c.b16 %v4109, %v4108
      %v4149 = vpack.c.b16 %v4111, %v4110
      %v4150 = vpack.c.b16 %v4113, %v4112
      %v4151 = vpack.c.b16 %v4115, %v4114
      %v4152 = vpack.c.b16 %v4117, %v4116
      %v4153 = vpack.c.b16 %v4119, %v4118
      %v4154 = vpack.c.b16 %v4121, %v4120
      %v4155 = vpack.c.b16 %v4123, %v4122
      %v4156 = vpack.c.b16 %v4125, %v4124
      %v4157 = vpack.c.b16 %v4127, %v4126
      %v4158 = vpack.c.b16 %v4129, %v4128
      %v4159 = vpack.c.b16 %v4131, %v4130
      %v4160 = vpack.c.b16 %v4133, %v4132
      %v4161 = vpack.c.b16 %v4135, %v4134
      %v4162 = vpack.c.b16 %v4137, %v4136
      %v4163 = vpack.c.b16 %v4139, %v4138
      %4188 = vmatprep.subr.bf16.mxu0 0
      %4189 = vmatpush1.bf16.msra.mxu0 %v4140
      %4190 = vmatprep.subr.bf16.mxu0 0
      %4191 = vmatpush1.bf16.msra.mxu0 %v4141
      %4192 = vmatprep.subr.bf16.mxu0 0
      %4193 = vmatpush1.bf16.msra.mxu0 %v4142
      %4194 = vmatprep.subr.bf16.mxu0 0
      %4195 = vmatpush1.bf16.msra.mxu0 %v4143
      %4196 = vmatprep.subr.bf16.mxu0 0
      %4197 = vmatpush1.bf16.msra.mxu0 %v4144
      %4198 = vmatprep.subr.bf16.mxu0 0
      %4199 = vmatpush1.bf16.msra.mxu0 %v4145
      %4200 = vmatprep.subr.bf16.mxu0 0
      %4201 = vmatpush1.bf16.msra.mxu0 %v4146
      %4202 = vmatprep.subr.bf16.mxu0 0
      %4203 = vmatpush1.bf16.msra.mxu0 %v4147
      %4204 = vmatprep.subr.bf16.mxu0 0
      %4205 = vmatpush1.bf16.msra.mxu0 %v4148
      %4206 = vmatprep.subr.bf16.mxu0 0
      %4207 = vmatpush1.bf16.msra.mxu0 %v4149
      %4208 = vmatprep.subr.bf16.mxu0 0
      %4209 = vmatpush1.bf16.msra.mxu0 %v4150
      %4210 = vmatprep.subr.bf16.mxu0 0
      %4211 = vmatpush1.bf16.msra.mxu0 %v4151
      %4212 = vmatprep.subr.bf16.mxu0 0
      %4213 = vmatpush1.bf16.msra.mxu0 %v4152
      %4214 = vmatprep.subr.bf16.mxu0 0
      %4215 = vmatpush1.bf16.msra.mxu0 %v4153
      %4216 = vmatprep.subr.bf16.mxu0 0
      %4217 = vmatpush1.bf16.msra.mxu0 %v4154
      %4218 = vmatprep.subr.bf16.mxu0 0
      %4219 = vmatpush1.bf16.msra.mxu0 %v4155
      %4220 = vmatprep.mubr.bf16.mxu0 %v3948
      %4221 = vmatmul.mubr.bf16.gmra.mrb[0].mxu0 %v3947
      %v4222 = vpop.f32.mrb[0].mxu0
      %v4223 = vadd.f32 0.0, %v4222
      %v4224 = vpop.f32.mrb[0].mxu0
      %v4225 = vpop.f32.mrb[0].mxu0
      %v4226 = vadd.f32 0.0, %v4225
      %v4227 = vpop.f32.mrb[0].mxu0
      %4228 = vmatprep.mubr.bf16.mxu0 %v3951
      %4229 = vmatmul.mubr.bf16.gmra.mrb[0].mxu0 %v3950
      %v4230 = vpop.f32.mrb[0].mxu0
      %v4231 = vadd.f32 0.0, %v4230
      %v4232 = vpop.f32.mrb[0].mxu0
      %v4233 = vpop.f32.mrb[0].mxu0
      %v4234 = vadd.f32 0.0, %v4233
      %v4235 = vpop.f32.mrb[0].mxu0
      %4236 = vmatprep.mubr.bf16.mxu0 %v3954
      %4237 = vmatmul.mubr.bf16.gmra.mrb[0].mxu0 %v3953
      %v4238 = vpop.f32.mrb[0].mxu0
      %v4239 = vadd.f32 0.0, %v4238
      %v4240 = vpop.f32.mrb[0].mxu0
      %v4241 = vpop.f32.mrb[0].mxu0
      %v4242 = vadd.f32 0.0, %v4241
      %v4243 = vpop.f32.mrb[0].mxu0
      %4244 = vmatprep.mubr.bf16.mxu0 %v3957
      %4245 = vmatmul.mubr.bf16.gmra.mrb[0].mxu0 %v3956
      %v4246 = vpop.f32.mrb[0].mxu0
      %v4247 = vadd.f32 0.0, %v4246
      %v4248 = vpop.f32.mrb[0].mxu0
      %v4249 = vpop.f32.mrb[0].mxu0
      %v4250 = vadd.f32 0.0, %v4249
      %v4251 = vpop.f32.mrb[0].mxu0
      %4252 = vmatprep.mubr.bf16.mxu0 %v3960
      %4253 = vmatmul.mubr.bf16.gmra.mrb[0].mxu0 %v3959
      %v4254 = vpop.f32.mrb[0].mxu0
      %v4255 = vadd.f32 0.0, %v4254
      %v4256 = vpop.f32.mrb[0].mxu0
      %v4257 = vpop.f32.mrb[0].mxu0
      %v4258 = vadd.f32 0.0, %v4257
      %v4259 = vpop.f32.mrb[0].mxu0
      %4260 = vmatprep.mubr.bf16.mxu0 %v3963
      %4261 = vmatmul.mubr.bf16.gmra.mrb[0].mxu0 %v3962
      %v4262 = vpop.f32.mrb[0].mxu0
      %v4263 = vadd.f32 0.0, %v4262
      %v4264 = vpop.f32.mrb[0].mxu0
      %v4265 = vpop.f32.mrb[0].mxu0
      %v4266 = vadd.f32 0.0, %v4265
      %v4267 = vpop.f32.mrb[0].mxu0
      %4268 = vmatprep.mubr.bf16.mxu0 %v3966
      %4269 = vmatmul.mubr.bf16.gmra.mrb[0].mxu0 %v3965
      %v4270 = vpop.f32.mrb[0].mxu0
      %v4271 = vadd.f32 0.0, %v4270
      %v4272 = vpop.f32.mrb[0].mxu0
      %v4273 = vpop.f32.mrb[0].mxu0
      %v4274 = vadd.f32 0.0, %v4273
      %v4275 = vpop.f32.mrb[0].mxu0
      %4276 = vmatprep.mubr.bf16.mxu0 %v3969
      %4277 = vmatmul.mubr.bf16.gmra.mrb[0].mxu0 %v3968
      %v4278 = vpop.f32.mrb[0].mxu0
      %v4279 = vadd.f32 0.0, %v4278
      %v4280 = vpop.f32.mrb[0].mxu0
      %v4281 = vpop.f32.mrb[0].mxu0
      %v4282 = vadd.f32 0.0, %v4281
      %v4283 = vpop.f32.mrb[0].mxu0
      %4284 = vmatprep.mubr.bf16.mxu0 %v3972
      %4285 = vmatmul.mubr.bf16.gmra.mrb[0].mxu0 %v3971
      %v4286 = vpop.f32.mrb[0].mxu0
      %v4287 = vadd.f32 0.0, %v4286
      %v4288 = vpop.f32.mrb[0].mxu0
      %v4289 = vpop.f32.mrb[0].mxu0
      %v4290 = vadd.f32 0.0, %v4289
      %v4291 = vpop.f32.mrb[0].mxu0
      %4292 = vmatprep.mubr.bf16.mxu0 %v3975
      %4293 = vmatmul.mubr.bf16.gmra.mrb[0].mxu0 %v3974
      %v4294 = vpop.f32.mrb[0].mxu0
      %v4295 = vadd.f32 0.0, %v4294
      %v4296 = vpop.f32.mrb[0].mxu0
      %v4297 = vpop.f32.mrb[0].mxu0
      %v4298 = vadd.f32 0.0, %v4297
      %v4299 = vpop.f32.mrb[0].mxu0
      %4300 = vmatprep.mubr.bf16.mxu0 %v3978
      %4301 = vmatmul.mubr.bf16.gmra.mrb[0].mxu0 %v3977
      %v4302 = vpop.f32.mrb[0].mxu0
      %v4303 = vadd.f32 0.0, %v4302
      %v4304 = vpop.f32.mrb[0].mxu0
      %v4305 = vpop.f32.mrb[0].mxu0
      %v4306 = vadd.f32 0.0, %v4305
      %v4307 = vpop.f32.mrb[0].mxu0
      %4308 = vmatprep.mubr.bf16.mxu0 %v3981
      %4309 = vmatmul.mubr.bf16.gmra.mrb[0].mxu0 %v3980
      %v4310 = vpop.f32.mrb[0].mxu0
      %v4311 = vadd.f32 0.0, %v4310
      %v4312 = vpop.f32.mrb[0].mxu0
      %v4313 = vpop.f32.mrb[0].mxu0
      %v4314 = vadd.f32 0.0, %v4313
      %v4315 = vpop.f32.mrb[0].mxu0
      %4316 = vmatprep.mubr.bf16.mxu0 %v3984
      %4317 = vmatmul.mubr.bf16.gmra.mrb[0].mxu0 %v3983
      %v4318 = vpop.f32.mrb[0].mxu0
      %v4319 = vadd.f32 0.0, %v4318
      %v4320 = vpop.f32.mrb[0].mxu0
      %v4321 = vpop.f32.mrb[0].mxu0
      %v4322 = vadd.f32 0.0, %v4321
      %v4323 = vpop.f32.mrb[0].mxu0
      %4324 = vmatprep.mubr.bf16.mxu0 %v3987
      %4325 = vmatmul.mubr.bf16.gmra.mrb[0].mxu0 %v3986
      %v4326 = vpop.f32.mrb[0].mxu0
      %v4327 = vadd.f32 0.0, %v4326
      %v4328 = vpop.f32.mrb[0].mxu0
      %v4329 = vpop.f32.mrb[0].mxu0
      %v4330 = vadd.f32 0.0, %v4329
      %v4331 = vpop.f32.mrb[0].mxu0
      %4332 = vmatprep.mubr.bf16.mxu0 %v3990
      %4333 = vmatmul.mubr.bf16.gmra.mrb[0].mxu0 %v3989
      %v4334 = vpop.f32.mrb[0].mxu0
      %v4335 = vadd.f32 0.0, %v4334
      %v4336 = vpop.f32.mrb[0].mxu0
      %v4337 = vpop.f32.mrb[0].mxu0
      %v4338 = vadd.f32 0.0, %v4337
      %v4339 = vpop.f32.mrb[0].mxu0
      %4340 = vmatprep.mubr.bf16.mxu0 %v3993
      %4341 = vmatmul.mubr.bf16.gmra.mrb[0].mxu0 %v3992
      %v4342 = vpop.f32.mrb[0].mxu0
      %v4343 = vadd.f32 0.0, %v4342
      %v4344 = vpop.f32.mrb[0].mxu0
      %v4345 = vpop.f32.mrb[0].mxu0
      %v4346 = vadd.f32 0.0, %v4345
      %v4347 = vpop.f32.mrb[0].mxu0
      %4348 = vdwg.mxu0
      %4349 = vmatprep.subr.bf16.mxu0 0
      %4350 = vmatpush1.bf16.msra.mxu0 %v4156
      %4351 = vmatprep.subr.bf16.mxu0 0
      %4352 = vmatpush1.bf16.msra.mxu0 %v4157
      %4353 = vmatprep.subr.bf16.mxu0 0
      %4354 = vmatpush1.bf16.msra.mxu0 %v4158
      %4355 = vmatprep.subr.bf16.mxu0 0
      %4356 = vmatpush1.bf16.msra.mxu0 %v4159
      %4357 = vmatprep.subr.bf16.mxu0 0
      %4358 = vmatpush1.bf16.msra.mxu0 %v4160
      %4359 = vmatprep.subr.bf16.mxu0 0
      %4360 = vmatpush1.bf16.msra.mxu0 %v4161
      %4361 = vmatprep.subr.bf16.mxu0 0
      %4362 = vmatpush1.bf16.msra.mxu0 %v4162
      %4363 = vmatprep.subr.bf16.mxu0 0
      %4364 = vmatpush1.bf16.msra.mxu0 %v4163
      %4365 = vmatprep.subr.bf16.mxu0 0
      %4366 = vmatpush1.bf16.msra.mxu0 0
      %4367 = vmatprep.subr.bf16.mxu0 0
      %4368 = vmatpush1.bf16.msra.mxu0 0
      %4369 = vmatprep.subr.bf16.mxu0 0
      %4370 = vmatpush1.bf16.msra.mxu0 0
      %4371 = vmatprep.subr.bf16.mxu0 0
      %4372 = vmatpush1.bf16.msra.mxu0 0
      %4373 = vmatprep.subr.bf16.mxu0 0
      %4374 = vmatpush1.bf16.msra.mxu0 0
      %4375 = vmatprep.subr.bf16.mxu0 0
      %4376 = vmatpush1.bf16.msra.mxu0 0
      %4377 = vmatprep.subr.bf16.mxu0 0
      %4378 = vmatpush1.bf16.msra.mxu0 0
      %4379 = vmatprep.subr.bf16.mxu0 0
      %4380 = vmatpush1.bf16.msra.mxu0 0
      %4381 = vmatprep.mubr.bf16.mxu0 0
      %4382 = vmatmul.mubr.bf16.gmra.mrb[0].mxu0 %v3949
      %v4383 = vpop.f32.mrb[0].mxu0
      %v4384 = vadd.f32 %v4223, %v4383
      %v4385 = vpop.f32.mrb[0].mxu0
      %v4386 = vpop.f32.mrb[0].mxu0
      %v4387 = vadd.f32 %v4226, %v4386
      %v4388 = vpop.f32.mrb[0].mxu0
      %4389 = vmatprep.mubr.bf16.mxu0 0
      %4390 = vmatmul.mubr.bf16.gmra.mrb[0].mxu0 %v3952
      %v4391 = vpop.f32.mrb[0].mxu0
      %v4392 = vadd.f32 %v4231, %v4391
      %v4393 = vpop.f32.mrb[0].mxu0
      %v4394 = vpop.f32.mrb[0].mxu0
      %v4395 = vadd.f32 %v4234, %v4394
      %v4396 = vpop.f32.mrb[0].mxu0
      %4397 = vmatprep.mubr.bf16.mxu0 0
      %4398 = vmatmul.mubr.bf16.gmra.mrb[0].mxu0 %v3955
      %v4399 = vpop.f32.mrb[0].mxu0
      %v4400 = vadd.f32 %v4239, %v4399
      %v4401 = vpop.f32.mrb[0].mxu0
      %v4402 = vpop.f32.mrb[0].mxu0
      %v4403 = vadd.f32 %v4242, %v4402
      %v4404 = vpop.f32.mrb[0].mxu0
      %4405 = vmatprep.mubr.bf16.mxu0 0
      %4406 = vmatmul.mubr.bf16.gmra.mrb[0].mxu0 %v3958
      %v4407 = vpop.f32.mrb[0].mxu0
      %v4408 = vadd.f32 %v4247, %v4407
      %v4409 = vpop.f32.mrb[0].mxu0
      %v4410 = vpop.f32.mrb[0].mxu0
      %v4411 = vadd.f32 %v4250, %v4410
      %v4412 = vpop.f32.mrb[0].mxu0
      %4413 = vmatprep.mubr.bf16.mxu0 0
      %4414 = vmatmul.mubr.bf16.gmra.mrb[0].mxu0 %v3961
      %v4415 = vpop.f32.mrb[0].mxu0
      %v4416 = vadd.f32 %v4255, %v4415
      %v4417 = vpop.f32.mrb[0].mxu0
      %v4418 = vpop.f32.mrb[0].mxu0
      %v4419 = vadd.f32 %v4258, %v4418
      %v4420 = vpop.f32.mrb[0].mxu0
      %4421 = vmatprep.mubr.bf16.mxu0 0
      %4422 = vmatmul.mubr.bf16.gmra.mrb[0].mxu0 %v3964
      %v4423 = vpop.f32.mrb[0].mxu0
      %v4424 = vadd.f32 %v4263, %v4423
      %v4425 = vpop.f32.mrb[0].mxu0
      %v4426 = vpop.f32.mrb[0].mxu0
      %v4427 = vadd.f32 %v4266, %v4426
      %v4428 = vpop.f32.mrb[0].mxu0
      %4429 = vmatprep.mubr.bf16.mxu0 0
      %4430 = vmatmul.mubr.bf16.gmra.mrb[0].mxu0 %v3967
      %v4431 = vpop.f32.mrb[0].mxu0
      %v4432 = vadd.f32 %v4271, %v4431
      %v4433 = vpop.f32.mrb[0].mxu0
      %v4434 = vpop.f32.mrb[0].mxu0
      %v4435 = vadd.f32 %v4274, %v4434
      %v4436 = vpop.f32.mrb[0].mxu0
      %4437 = vmatprep.mubr.bf16.mxu0 0
      %4438 = vmatmul.mubr.bf16.gmra.mrb[0].mxu0 %v3970
      %v4439 = vpop.f32.mrb[0].mxu0
      %v4440 = vadd.f32 %v4279, %v4439
      %v4441 = vpop.f32.mrb[0].mxu0
      %v4442 = vpop.f32.mrb[0].mxu0
      %v4443 = vadd.f32 %v4282, %v4442
      %v4444 = vpop.f32.mrb[0].mxu0
      %4445 = vmatprep.mubr.bf16.mxu0 0
      %4446 = vmatmul.mubr.bf16.gmra.mrb[0].mxu0 %v3973
      %v4447 = vpop.f32.mrb[0].mxu0
      %v4448 = vadd.f32 %v4287, %v4447
      %v4449 = vpop.f32.mrb[0].mxu0
      %v4450 = vpop.f32.mrb[0].mxu0
      %v4451 = vadd.f32 %v4290, %v4450
      %v4452 = vpop.f32.mrb[0].mxu0
      %4453 = vmatprep.mubr.bf16.mxu0 0
      %4454 = vmatmul.mubr.bf16.gmra.mrb[0].mxu0 %v3976
      %v4455 = vpop.f32.mrb[0].mxu0
      %v4456 = vadd.f32 %v4295, %v4455
      %v4457 = vpop.f32.mrb[0].mxu0
      %v4458 = vpop.f32.mrb[0].mxu0
      %v4459 = vadd.f32 %v4298, %v4458
      %v4460 = vpop.f32.mrb[0].mxu0
      %4461 = vmatprep.mubr.bf16.mxu0 0
      %4462 = vmatmul.mubr.bf16.gmra.mrb[0].mxu0 %v3979
      %v4463 = vpop.f32.mrb[0].mxu0
      %v4464 = vadd.f32 %v4303, %v4463
      %v4465 = vpop.f32.mrb[0].mxu0
      %v4466 = vpop.f32.mrb[0].mxu0
      %v4467 = vadd.f32 %v4306, %v4466
      %v4468 = vpop.f32.mrb[0].mxu0
      %4469 = vmatprep.mubr.bf16.mxu0 0
      %4470 = vmatmul.mubr.bf16.gmra.mrb[0].mxu0 %v3982
      %v4471 = vpop.f32.mrb[0].mxu0
      %v4472 = vadd.f32 %v4311, %v4471
      %v4473 = vpop.f32.mrb[0].mxu0
      %v4474 = vpop.f32.mrb[0].mxu0
      %v4475 = vadd.f32 %v4314, %v4474
      %v4476 = vpop.f32.mrb[0].mxu0
      %4477 = vmatprep.mubr.bf16.mxu0 0
      %4478 = vmatmul.mubr.bf16.gmra.mrb[0].mxu0 %v3985
      %v4479 = vpop.f32.mrb[0].mxu0
      %v4480 = vadd.f32 %v4319, %v4479
      %v4481 = vpop.f32.mrb[0].mxu0
      %v4482 = vpop.f32.mrb[0].mxu0
      %v4483 = vadd.f32 %v4322, %v4482
      %v4484 = vpop.f32.mrb[0].mxu0
      %4485 = vmatprep.mubr.bf16.mxu0 0
      %4486 = vmatmul.mubr.bf16.gmra.mrb[0].mxu0 %v3988
      %v4487 = vpop.f32.mrb[0].mxu0
      %v4488 = vadd.f32 %v4327, %v4487
      %v4489 = vpop.f32.mrb[0].mxu0
      %v4490 = vpop.f32.mrb[0].mxu0
      %v4491 = vadd.f32 %v4330, %v4490
      %v4492 = vpop.f32.mrb[0].mxu0
      %4493 = vmatprep.mubr.bf16.mxu0 0
      %4494 = vmatmul.mubr.bf16.gmra.mrb[0].mxu0 %v3991
      %v4495 = vpop.f32.mrb[0].mxu0
      %v4496 = vadd.f32 %v4335, %v4495
      %v4497 = vpop.f32.mrb[0].mxu0
      %v4498 = vpop.f32.mrb[0].mxu0
      %v4499 = vadd.f32 %v4338, %v4498
      %v4500 = vpop.f32.mrb[0].mxu0
      %4501 = vmatprep.mubr.bf16.mxu0 0
      %4502 = vmatmul.mubr.bf16.gmra.mrb[0].mxu0 %v3994
      %v4503 = vpop.f32.mrb[0].mxu0
      %v4504 = vadd.f32 %v4343, %v4503
      %v4505 = vpop.f32.mrb[0].mxu0
      %v4506 = vpop.f32.mrb[0].mxu0
      %v4507 = vadd.f32 %v4346, %v4506
      %v4508 = vpop.f32.mrb[0].mxu0
      %4509 = vdwg.mxu0
      %v4510 = vadd.f32 %v3228, %v4384
      %v4511 = vadd.f32 %v3231, %v4387
      %v4512 = vadd.f32 %v3236, %v4392
      %v4513 = vadd.f32 %v3239, %v4395
      %v4514 = vadd.f32 %v3244, %v4400
      %v4515 = vadd.f32 %v3247, %v4403
      %v4516 = vadd.f32 %v3252, %v4408
      %v4517 = vadd.f32 %v3255, %v4411
      %v4518 = vadd.f32 %v3260, %v4416
      %v4519 = vadd.f32 %v3263, %v4419
      %v4520 = vadd.f32 %v3268, %v4424
      %v4521 = vadd.f32 %v3271, %v4427
      %v4522 = vadd.f32 %v3276, %v4432
      %v4523 = vadd.f32 %v3279, %v4435
      %v4524 = vadd.f32 %v3284, %v4440
      %v4525 = vadd.f32 %v3287, %v4443
      %v4526 = vadd.f32 %v3292, %v4448
      %v4527 = vadd.f32 %v3295, %v4451
      %v4528 = vadd.f32 %v3300, %v4456
      %v4529 = vadd.f32 %v3303, %v4459
      %v4530 = vadd.f32 %v3308, %v4464
      %v4531 = vadd.f32 %v3311, %v4467
      %v4532 = vadd.f32 %v3316, %v4472
      %v4533 = vadd.f32 %v3319, %v4475
      %v4534 = vadd.f32 %v3324, %v4480
      %v4535 = vadd.f32 %v3327, %v4483
      %v4536 = vadd.f32 %v3332, %v4488
      %v4537 = vadd.f32 %v3335, %v4491
      %v4538 = vadd.f32 %v3340, %v4496
      %v4539 = vadd.f32 %v3343, %v4499
      %v4540 = vadd.f32 %v3348, %v4504
      %v4541 = vadd.f32 %v3351, %v4507
      %v4542 = vld [vmem:[%s5] sm:$0x1]
      %v4544 = vlaneseq
      %v4545 = vshrl.u32 %v4544, 7
      %v4546 = vsub.s32 0, %v4545
      %v4547 = vrot.slane %v4542, %v4546
      %v4549 = vmul.f32 %v4510, %v4547
      %v4550 = vmul.f32 %v4511, %v4547
      %v4551 = vmul.f32 %v4512, %v4547
      %v4552 = vmul.f32 %v4513, %v4547
      %v4553 = vmul.f32 %v4514, %v4547
      %v4554 = vmul.f32 %v4515, %v4547
      %v4555 = vmul.f32 %v4516, %v4547
      %v4556 = vmul.f32 %v4517, %v4547
      %v4557 = vmul.f32 %v4518, %v4547
      %v4558 = vmul.f32 %v4519, %v4547
      %v4559 = vmul.f32 %v4520, %v4547
      %v4560 = vmul.f32 %v4521, %v4547
      %v4561 = vmul.f32 %v4522, %v4547
      %v4562 = vmul.f32 %v4523, %v4547
      %v4563 = vmul.f32 %v4524, %v4547
      %v4564 = vmul.f32 %v4525, %v4547
      %v4565 = vmul.f32 %v4526, %v4547
      %v4566 = vmul.f32 %v4527, %v4547
      %v4567 = vmul.f32 %v4528, %v4547
      %v4568 = vmul.f32 %v4529, %v4547
      %v4569 = vmul.f32 %v4530, %v4547
      %v4570 = vmul.f32 %v4531, %v4547
      %v4571 = vmul.f32 %v4532, %v4547
      %v4572 = vmul.f32 %v4533, %v4547
      %v4573 = vmul.f32 %v4534, %v4547
      %v4574 = vmul.f32 %v4535, %v4547
      %v4575 = vmul.f32 %v4536, %v4547
      %v4576 = vmul.f32 %v4537, %v4547
      %v4577 = vmul.f32 %v4538, %v4547
      %v4578 = vmul.f32 %v4539, %v4547
      %v4579 = vmul.f32 %v4540, %v4547
      %v4580 = vmul.f32 %v4541, %v4547
      %v4581 = vld [vmem:[%s6] sm:$0x1]
      %v4583 = vlaneseq
      %v4584 = vshrl.u32 %v4583, 7
      %v4585 = vsub.s32 0, %v4584
      %v4586 = vrot.slane %v4581, %v4585
      %v4588 = vadd.f32 %v4549, %v4586
      %v4589 = vadd.f32 %v4550, %v4586
      %v4590 = vadd.f32 %v4551, %v4586
      %v4591 = vadd.f32 %v4552, %v4586
      %v4592 = vadd.f32 %v4553, %v4586
      %v4593 = vadd.f32 %v4554, %v4586
      %v4594 = vadd.f32 %v4555, %v4586
      %v4595 = vadd.f32 %v4556, %v4586
      %v4596 = vadd.f32 %v4557, %v4586
      %v4597 = vadd.f32 %v4558, %v4586
      %v4598 = vadd.f32 %v4559, %v4586
      %v4599 = vadd.f32 %v4560, %v4586
      %v4600 = vadd.f32 %v4561, %v4586
      %v4601 = vadd.f32 %v4562, %v4586
      %v4602 = vadd.f32 %v4563, %v4586
      %v4603 = vadd.f32 %v4564, %v4586
      %v4604 = vadd.f32 %v4565, %v4586
      %v4605 = vadd.f32 %v4566, %v4586
      %v4606 = vadd.f32 %v4567, %v4586
      %v4607 = vadd.f32 %v4568, %v4586
      %v4608 = vadd.f32 %v4569, %v4586
      %v4609 = vadd.f32 %v4570, %v4586
      %v4610 = vadd.f32 %v4571, %v4586
      %v4611 = vadd.f32 %v4572, %v4586
      %v4612 = vadd.f32 %v4573, %v4586
      %v4613 = vadd.f32 %v4574, %v4586
      %v4614 = vadd.f32 %v4575, %v4586
      %v4615 = vadd.f32 %v4576, %v4586
      %v4616 = vadd.f32 %v4577, %v4586
      %v4617 = vadd.f32 %v4578, %v4586
      %v4618 = vadd.f32 %v4579, %v4586
      %v4619 = vadd.f32 %v4580, %v4586
      %v4620 = vmax.f32 %v4588, 0.0
      %v4621 = vmax.f32 %v4589, 0.0
      %v4622 = vmax.f32 %v4590, 0.0
      %v4623 = vmax.f32 %v4591, 0.0
      %v4624 = vmax.f32 %v4592, 0.0
      %v4625 = vmax.f32 %v4593, 0.0
      %v4626 = vmax.f32 %v4594, 0.0
      %v4627 = vmax.f32 %v4595, 0.0
      %v4628 = vmax.f32 %v4596, 0.0
      %v4629 = vmax.f32 %v4597, 0.0
      %v4630 = vmax.f32 %v4598, 0.0
      %v4631 = vmax.f32 %v4599, 0.0
      %v4632 = vmax.f32 %v4600, 0.0
      %v4633 = vmax.f32 %v4601, 0.0
      %v4634 = vmax.f32 %v4602, 0.0
      %v4635 = vmax.f32 %v4603, 0.0
      %v4636 = vmax.f32 %v4604, 0.0
      %v4637 = vmax.f32 %v4605, 0.0
      %v4638 = vmax.f32 %v4606, 0.0
      %v4639 = vmax.f32 %v4607, 0.0
      %v4640 = vmax.f32 %v4608, 0.0
      %v4641 = vmax.f32 %v4609, 0.0
      %v4642 = vmax.f32 %v4610, 0.0
      %v4643 = vmax.f32 %v4611, 0.0
      %v4644 = vmax.f32 %v4612, 0.0
      %v4645 = vmax.f32 %v4613, 0.0
      %v4646 = vmax.f32 %v4614, 0.0
      %v4647 = vmax.f32 %v4615, 0.0
      %v4648 = vmax.f32 %v4616, 0.0
      %v4649 = vmax.f32 %v4617, 0.0
      %v4650 = vmax.f32 %v4618, 0.0
      %v4651 = vmax.f32 %v4619, 0.0
      %v4652 = vmin.f32 %v4620, 6.0
      %v4653 = vmin.f32 %v4621, 6.0
      %v4654 = vmin.f32 %v4622, 6.0
      %v4655 = vmin.f32 %v4623, 6.0
      %v4656 = vmin.f32 %v4624, 6.0
      %v4657 = vmin.f32 %v4625, 6.0
      %v4658 = vmin.f32 %v4626, 6.0
      %v4659 = vmin.f32 %v4627, 6.0
      %v4660 = vmin.f32 %v4628, 6.0
      %v4661 = vmin.f32 %v4629, 6.0
      %v4662 = vmin.f32 %v4630, 6.0
      %v4663 = vmin.f32 %v4631, 6.0
      %v4664 = vmin.f32 %v4632, 6.0
      %v4665 = vmin.f32 %v4633, 6.0
      %v4666 = vmin.f32 %v4634, 6.0
      %v4667 = vmin.f32 %v4635, 6.0
      %v4668 = vmin.f32 %v4636, 6.0
      %v4669 = vmin.f32 %v4637, 6.0
      %v4670 = vmin.f32 %v4638, 6.0
      %v4671 = vmin.f32 %v4639, 6.0
      %v4672 = vmin.f32 %v4640, 6.0
      %v4673 = vmin.f32 %v4641, 6.0
      %v4674 = vmin.f32 %v4642, 6.0
      %v4675 = vmin.f32 %v4643, 6.0
      %v4676 = vmin.f32 %v4644, 6.0
      %v4677 = vmin.f32 %v4645, 6.0
      %v4678 = vmin.f32 %v4646, 6.0
      %v4679 = vmin.f32 %v4647, 6.0
      %v4680 = vmin.f32 %v4648, 6.0
      %v4681 = vmin.f32 %v4649, 6.0
      %v4682 = vmin.f32 %v4650, 6.0
      %v4683 = vmin.f32 %v4651, 6.0
      %v4684 = vpack.c.bf16 %v4653, %v4652
      %v4685 = vpack.c.bf16 %v4655, %v4654
      %v4686 = vpack.c.bf16 %v4657, %v4656
      %v4687 = vpack.c.bf16 %v4659, %v4658
      %v4688 = vpack.c.bf16 %v4661, %v4660
      %v4689 = vpack.c.bf16 %v4663, %v4662
      %v4690 = vpack.c.bf16 %v4665, %v4664
      %v4691 = vpack.c.bf16 %v4667, %v4666
      %v4692 = vpack.c.bf16 %v4669, %v4668
      %v4693 = vpack.c.bf16 %v4671, %v4670
      %v4694 = vpack.c.bf16 %v4673, %v4672
      %v4695 = vpack.c.bf16 %v4675, %v4674
      %v4696 = vpack.c.bf16 %v4677, %v4676
      %v4697 = vpack.c.bf16 %v4679, %v4678
      %v4698 = vpack.c.bf16 %v4681, %v4680
      %v4699 = vpack.c.bf16 %v4683, %v4682
      %v4700 = vld [vmem:[%s7] sm:$0xf]
      %v4701 = vld [vmem:[%s7 + $0x4] sm:$0xf]
      %v4702 = vld [vmem:[%s7 + $0x8] sm:$0xf]
      %v4703 = vld [vmem:[%s7 + $0xc] sm:$0xf]
      %v4704 = vld [vmem:[%s7 + $0x10] sm:$0xf]
      %v4705 = vld [vmem:[%s7 + $0x14] sm:$0xf]
      %v4706 = vld [vmem:[%s7 + $0x18] sm:$0xf]
      %v4707 = vld [vmem:[%s7 + $0x1c] sm:$0xf]
      %v4708 = vld [vmem:[%s7 + $0x20] sm:$0xf]
      %v4709 = vld [vmem:[%s7 + $0x24] sm:$0xf]
      %v4710 = vld [vmem:[%s7 + $0x28] sm:$0xf]
      %v4711 = vld [vmem:[%s7 + $0x2c] sm:$0xf]
      %v4712 = vld [vmem:[%s7 + $0x30] sm:$0xf]
      %v4713 = vld [vmem:[%s7 + $0x34] sm:$0xf]
      %v4714 = vld [vmem:[%s7 + $0x38] sm:$0xf]
      %v4715 = vld [vmem:[%s7 + $0x3c] sm:$0xf]
      %v4732 = vunpack.c.l.b16 %v4700
      %v4733 = vunpack.c.l.b16 %v4701
      %v4734 = vunpack.c.l.b16 %v4702
      %v4735 = vunpack.c.l.b16 %v4703
      %v4736 = vunpack.c.l.b16 %v4704
      %v4737 = vunpack.c.l.b16 %v4705
      %v4738 = vunpack.c.l.b16 %v4706
      %v4739 = vunpack.c.l.b16 %v4707
      %v4740 = vunpack.c.l.b16 %v4708
      %v4741 = vunpack.c.l.b16 %v4709
      %v4742 = vunpack.c.l.b16 %v4710
      %v4743 = vunpack.c.l.b16 %v4711
      %v4744 = vunpack.c.l.b16 %v4712
      %v4745 = vunpack.c.l.b16 %v4713
      %v4746 = vunpack.c.l.b16 %v4714
      %v4747 = vunpack.c.l.b16 %v4715
      %v4748 = vpack.c.b16 %v4733, %v4732
      %v4749 = vpack.c.b16 %v4735, %v4734
      %v4750 = vpack.c.b16 %v4737, %v4736
      %v4751 = vpack.c.b16 %v4739, %v4738
      %v4752 = vpack.c.b16 %v4741, %v4740
      %v4753 = vpack.c.b16 %v4743, %v4742
      %v4754 = vpack.c.b16 %v4745, %v4744
      %v4755 = vpack.c.b16 %v4747, %v4746
      %4764 = vmatprep.subr.bf16.mxu0 0
      %4765 = vmatpush1.bf16.msra.mxu0 %v4748
      %4766 = vmatprep.subr.bf16.mxu0 0
      %4767 = vmatpush1.bf16.msra.mxu0 %v4749
      %4768 = vmatprep.subr.bf16.mxu0 0
      %4769 = vmatpush1.bf16.msra.mxu0 %v4750
      %4770 = vmatprep.subr.bf16.mxu0 0
      %4771 = vmatpush1.bf16.msra.mxu0 %v4751
      %4772 = vmatprep.subr.bf16.mxu0 0
      %4773 = vmatpush1.bf16.msra.mxu0 %v4752
      %4774 = vmatprep.subr.bf16.mxu0 0
      %4775 = vmatpush1.bf16.msra.mxu0 %v4753
      %4776 = vmatprep.subr.bf16.mxu0 0
      %4777 = vmatpush1.bf16.msra.mxu0 %v4754
      %4778 = vmatprep.subr.bf16.mxu0 0
      %4779 = vmatpush1.bf16.msra.mxu0 %v4755
      %4780 = vmatprep.subr.bf16.mxu0 0
      %4781 = vmatpush1.bf16.msra.mxu0 0
      %4782 = vmatprep.subr.bf16.mxu0 0
      %4783 = vmatpush1.bf16.msra.mxu0 0
      %4784 = vmatprep.subr.bf16.mxu0 0
      %4785 = vmatpush1.bf16.msra.mxu0 0
      %4786 = vmatprep.subr.bf16.mxu0 0
      %4787 = vmatpush1.bf16.msra.mxu0 0
      %4788 = vmatprep.subr.bf16.mxu0 0
      %4789 = vmatpush1.bf16.msra.mxu0 0
      %4790 = vmatprep.subr.bf16.mxu0 0
      %4791 = vmatpush1.bf16.msra.mxu0 0
      %4792 = vmatprep.subr.bf16.mxu0 0
      %4793 = vmatpush1.bf16.msra.mxu0 0
      %4794 = vmatprep.subr.bf16.mxu0 0
      %4795 = vmatpush1.bf16.msra.mxu0 0
      %4796 = vmatprep.mubr.bf16.mxu0 0
      %4797 = vmatmul.mubr.bf16.gmra.mrb[0].mxu0 %v4684
      %v4798 = vpop.f32.mrb[0].mxu0
      %v4799 = vadd.f32 0.0, %v4798
      %v4800 = vpop.f32.mrb[0].mxu0
      %v4801 = vpop.f32.mrb[0].mxu0
      %v4802 = vadd.f32 0.0, %v4801
      %v4803 = vpop.f32.mrb[0].mxu0
      %4804 = vmatprep.mubr.bf16.mxu0 0
      %4805 = vmatmul.mubr.bf16.gmra.mrb[0].mxu0 %v4685
      %v4806 = vpop.f32.mrb[0].mxu0
      %v4807 = vadd.f32 0.0, %v4806
      %v4808 = vpop.f32.mrb[0].mxu0
      %v4809 = vpop.f32.mrb[0].mxu0
      %v4810 = vadd.f32 0.0, %v4809
      %v4811 = vpop.f32.mrb[0].mxu0
      %4812 = vmatprep.mubr.bf16.mxu0 0
      %4813 = vmatmul.mubr.bf16.gmra.mrb[0].mxu0 %v4686
      %v4814 = vpop.f32.mrb[0].mxu0
      %v4815 = vadd.f32 0.0, %v4814
      %v4816 = vpop.f32.mrb[0].mxu0
      %v4817 = vpop.f32.mrb[0].mxu0
      %v4818 = vadd.f32 0.0, %v4817
      %v4819 = vpop.f32.mrb[0].mxu0
      %4820 = vmatprep.mubr.bf16.mxu0 0
      %4821 = vmatmul.mubr.bf16.gmra.mrb[0].mxu0 %v4687
      %v4822 = vpop.f32.mrb[0].mxu0
      %v4823 = vadd.f32 0.0, %v4822
      %v4824 = vpop.f32.mrb[0].mxu0
      %v4825 = vpop.f32.mrb[0].mxu0
      %v4826 = vadd.f32 0.0, %v4825
      %v4827 = vpop.f32.mrb[0].mxu0
      %4828 = vmatprep.mubr.bf16.mxu0 0
      %4829 = vmatmul.mubr.bf16.gmra.mrb[0].mxu0 %v4688
      %v4830 = vpop.f32.mrb[0].mxu0
      %v4831 = vadd.f32 0.0, %v4830
      %v4832 = vpop.f32.mrb[0].mxu0
      %v4833 = vpop.f32.mrb[0].mxu0
      %v4834 = vadd.f32 0.0, %v4833
      %v4835 = vpop.f32.mrb[0].mxu0
      %4836 = vmatprep.mubr.bf16.mxu0 0
      %4837 = vmatmul.mubr.bf16.gmra.mrb[0].mxu0 %v4689
      %v4838 = vpop.f32.mrb[0].mxu0
      %v4839 = vadd.f32 0.0, %v4838
      %v4840 = vpop.f32.mrb[0].mxu0
      %v4841 = vpop.f32.mrb[0].mxu0
      %v4842 = vadd.f32 0.0, %v4841
      %v4843 = vpop.f32.mrb[0].mxu0
      %4844 = vmatprep.mubr.bf16.mxu0 0
      %4845 = vmatmul.mubr.bf16.gmra.mrb[0].mxu0 %v4690
      %v4846 = vpop.f32.mrb[0].mxu0
      %v4847 = vadd.f32 0.0, %v4846
      %v4848 = vpop.f32.mrb[0].mxu0
      %v4849 = vpop.f32.mrb[0].mxu0
      %v4850 = vadd.f32 0.0, %v4849
      %v4851 = vpop.f32.mrb[0].mxu0
      %4852 = vmatprep.mubr.bf16.mxu0 0
      %4853 = vmatmul.mubr.bf16.gmra.mrb[0].mxu0 %v4691
      %v4854 = vpop.f32.mrb[0].mxu0
      %v4855 = vadd.f32 0.0, %v4854
      %v4856 = vpop.f32.mrb[0].mxu0
      %v4857 = vpop.f32.mrb[0].mxu0
      %v4858 = vadd.f32 0.0, %v4857
      %v4859 = vpop.f32.mrb[0].mxu0
      %4860 = vmatprep.mubr.bf16.mxu0 0
      %4861 = vmatmul.mubr.bf16.gmra.mrb[0].mxu0 %v4692
      %v4862 = vpop.f32.mrb[0].mxu0
      %v4863 = vadd.f32 0.0, %v4862
      %v4864 = vpop.f32.mrb[0].mxu0
      %v4865 = vpop.f32.mrb[0].mxu0
      %v4866 = vadd.f32 0.0, %v4865
      %v4867 = vpop.f32.mrb[0].mxu0
      %4868 = vmatprep.mubr.bf16.mxu0 0
      %4869 = vmatmul.mubr.bf16.gmra.mrb[0].mxu0 %v4693
      %v4870 = vpop.f32.mrb[0].mxu0
      %v4871 = vadd.f32 0.0, %v4870
      %v4872 = vpop.f32.mrb[0].mxu0
      %v4873 = vpop.f32.mrb[0].mxu0
      %v4874 = vadd.f32 0.0, %v4873
      %v4875 = vpop.f32.mrb[0].mxu0
      %4876 = vmatprep.mubr.bf16.mxu0 0
      %4877 = vmatmul.mubr.bf16.gmra.mrb[0].mxu0 %v4694
      %v4878 = vpop.f32.mrb[0].mxu0
      %v4879 = vadd.f32 0.0, %v4878
      %v4880 = vpop.f32.mrb[0].mxu0
      %v4881 = vpop.f32.mrb[0].mxu0
      %v4882 = vadd.f32 0.0, %v4881
      %v4883 = vpop.f32.mrb[0].mxu0
      %4884 = vmatprep.mubr.bf16.mxu0 0
      %4885 = vmatmul.mubr.bf16.gmra.mrb[0].mxu0 %v4695
      %v4886 = vpop.f32.mrb[0].mxu0
      %v4887 = vadd.f32 0.0, %v4886
      %v4888 = vpop.f32.mrb[0].mxu0
      %v4889 = vpop.f32.mrb[0].mxu0
      %v4890 = vadd.f32 0.0, %v4889
      %v4891 = vpop.f32.mrb[0].mxu0
      %4892 = vmatprep.mubr.bf16.mxu0 0
      %4893 = vmatmul.mubr.bf16.gmra.mrb[0].mxu0 %v4696
      %v4894 = vpop.f32.mrb[0].mxu0
      %v4895 = vadd.f32 0.0, %v4894
      %v4896 = vpop.f32.mrb[0].mxu0
      %v4897 = vpop.f32.mrb[0].mxu0
      %v4898 = vadd.f32 0.0, %v4897
      %v4899 = vpop.f32.mrb[0].mxu0
      %4900 = vmatprep.mubr.bf16.mxu0 0
      %4901 = vmatmul.mubr.bf16.gmra.mrb[0].mxu0 %v4697
      %v4902 = vpop.f32.mrb[0].mxu0
      %v4903 = vadd.f32 0.0, %v4902
      %v4904 = vpop.f32.mrb[0].mxu0
      %v4905 = vpop.f32.mrb[0].mxu0
      %v4906 = vadd.f32 0.0, %v4905
      %v4907 = vpop.f32.mrb[0].mxu0
      %4908 = vmatprep.mubr.bf16.mxu0 0
      %4909 = vmatmul.mubr.bf16.gmra.mrb[0].mxu0 %v4698
      %v4910 = vpop.f32.mrb[0].mxu0
      %v4911 = vadd.f32 0.0, %v4910
      %v4912 = vpop.f32.mrb[0].mxu0
      %v4913 = vpop.f32.mrb[0].mxu0
      %v4914 = vadd.f32 0.0, %v4913
      %v4915 = vpop.f32.mrb[0].mxu0
      %4916 = vmatprep.mubr.bf16.mxu0 0
      %4917 = vmatmul.mubr.bf16.gmra.mrb[0].mxu0 %v4699
      %v4918 = vpop.f32.mrb[0].mxu0
      %v4919 = vadd.f32 0.0, %v4918
      %v4920 = vpop.f32.mrb[0].mxu0
      %v4921 = vpop.f32.mrb[0].mxu0
      %v4922 = vadd.f32 0.0, %v4921
      %v4923 = vpop.f32.mrb[0].mxu0
      %4924 = vdwg.mxu0
      %v4925 = vld [vmem:[%s8] sm:$0x1]
      %v4927 = vlaneseq
      %v4928 = vshrl.u32 %v4927, 7
      %v4929 = vsub.s32 0, %v4928
      %v4930 = vrot.slane %v4925, %v4929
      %v4932 = vmul.f32 %v4799, %v4930
      %v4933 = vmul.f32 %v4802, %v4930
      %v4934 = vmul.f32 %v4807, %v4930
      %v4935 = vmul.f32 %v4810, %v4930
      %v4936 = vmul.f32 %v4815, %v4930
      %v4937 = vmul.f32 %v4818, %v4930
      %v4938 = vmul.f32 %v4823, %v4930
      %v4939 = vmul.f32 %v4826, %v4930
      %v4940 = vmul.f32 %v4831, %v4930
      %v4941 = vmul.f32 %v4834, %v4930
      %v4942 = vmul.f32 %v4839, %v4930
      %v4943 = vmul.f32 %v4842, %v4930
      %v4944 = vmul.f32 %v4847, %v4930
      %v4945 = vmul.f32 %v4850, %v4930
      %v4946 = vmul.f32 %v4855, %v4930
      %v4947 = vmul.f32 %v4858, %v4930
      %v4948 = vmul.f32 %v4863, %v4930
      %v4949 = vmul.f32 %v4866, %v4930
      %v4950 = vmul.f32 %v4871, %v4930
      %v4951 = vmul.f32 %v4874, %v4930
      %v4952 = vmul.f32 %v4879, %v4930
      %v4953 = vmul.f32 %v4882, %v4930
      %v4954 = vmul.f32 %v4887, %v4930
      %v4955 = vmul.f32 %v4890, %v4930
      %v4956 = vmul.f32 %v4895, %v4930
      %v4957 = vmul.f32 %v4898, %v4930
      %v4958 = vmul.f32 %v4903, %v4930
      %v4959 = vmul.f32 %v4906, %v4930
      %v4960 = vmul.f32 %v4911, %v4930
      %v4961 = vmul.f32 %v4914, %v4930
      %v4962 = vmul.f32 %v4919, %v4930
      %v4963 = vmul.f32 %v4922, %v4930
      %v4964 = vld [vmem:[%s9] sm:$0x1]
      %v4966 = vlaneseq
      %v4967 = vshrl.u32 %v4966, 7
      %v4968 = vsub.s32 0, %v4967
      %v4969 = vrot.slane %v4964, %v4968
      %v4971 = vadd.f32 %v4932, %v4969
      %v4972 = vadd.f32 %v4933, %v4969
      %v4973 = vadd.f32 %v4934, %v4969
      %v4974 = vadd.f32 %v4935, %v4969
      %v4975 = vadd.f32 %v4936, %v4969
      %v4976 = vadd.f32 %v4937, %v4969
      %v4977 = vadd.f32 %v4938, %v4969
      %v4978 = vadd.f32 %v4939, %v4969
      %v4979 = vadd.f32 %v4940, %v4969
      %v4980 = vadd.f32 %v4941, %v4969
      %v4981 = vadd.f32 %v4942, %v4969
      %v4982 = vadd.f32 %v4943, %v4969
      %v4983 = vadd.f32 %v4944, %v4969
      %v4984 = vadd.f32 %v4945, %v4969
      %v4985 = vadd.f32 %v4946, %v4969
      %v4986 = vadd.f32 %v4947, %v4969
      %v4987 = vadd.f32 %v4948, %v4969
      %v4988 = vadd.f32 %v4949, %v4969
      %v4989 = vadd.f32 %v4950, %v4969
      %v4990 = vadd.f32 %v4951, %v4969
      %v4991 = vadd.f32 %v4952, %v4969
      %v4992 = vadd.f32 %v4953, %v4969
      %v4993 = vadd.f32 %v4954, %v4969
      %v4994 = vadd.f32 %v4955, %v4969
      %v4995 = vadd.f32 %v4956, %v4969
      %v4996 = vadd.f32 %v4957, %v4969
      %v4997 = vadd.f32 %v4958, %v4969
      %v4998 = vadd.f32 %v4959, %v4969
      %v4999 = vadd.f32 %v4960, %v4969
      %v5000 = vadd.f32 %v4961, %v4969
      %v5001 = vadd.f32 %v4962, %v4969
      %v5002 = vadd.f32 %v4963, %v4969
      %v5003 = vld [vmem:[%s10] sm:$0xf]
      %v5004 = vld [vmem:[%s10 + $0x4] sm:$0xf]
      %v5005 = vld [vmem:[%s10 + $0x8] sm:$0xf]
      %v5006 = vld [vmem:[%s10 + $0xc] sm:$0xf]
      %v5007 = vld [vmem:[%s10 + $0x10] sm:$0xf]
      %v5008 = vld [vmem:[%s10 + $0x14] sm:$0xf]
      %v5009 = vld [vmem:[%s10 + $0x18] sm:$0xf]
      %v5010 = vld [vmem:[%s10 + $0x1c] sm:$0xf]
      %v5011 = vld [vmem:[%s10 + $0x20] sm:$0xf]
      %v5012 = vld [vmem:[%s10 + $0x24] sm:$0xf]
      %v5013 = vld [vmem:[%s10 + $0x28] sm:$0xf]
      %v5014 = vld [vmem:[%s10 + $0x2c] sm:$0xf]
      %v5015 = vld [vmem:[%s10 + $0x30] sm:$0xf]
      %v5016 = vld [vmem:[%s10 + $0x34] sm:$0xf]
      %v5017 = vld [vmem:[%s10 + $0x38] sm:$0xf]
      %v5018 = vld [vmem:[%s10 + $0x3c] sm:$0xf]
      %v5035 = vunpack.c.l.b16 %v5003
      %v5036 = vunpack.c.l.b16 %v5004
      %v5037 = vunpack.c.l.b16 %v5005
      %v5038 = vunpack.c.l.b16 %v5006
      %v5039 = vunpack.c.l.b16 %v5007
      %v5040 = vunpack.c.l.b16 %v5008
      %v5041 = vunpack.c.l.b16 %v5009
      %v5042 = vunpack.c.l.b16 %v5010
      %v5043 = vunpack.c.l.b16 %v5011
      %v5044 = vunpack.c.l.b16 %v5012
      %v5045 = vunpack.c.l.b16 %v5013
      %v5046 = vunpack.c.l.b16 %v5014
      %v5047 = vunpack.c.l.b16 %v5015
      %v5048 = vunpack.c.l.b16 %v5016
      %v5049 = vunpack.c.l.b16 %v5017
      %v5050 = vunpack.c.l.b16 %v5018
      %v5051 = vpack.c.b16 %v5036, %v5035
      %v5052 = vpack.c.b16 %v5038, %v5037
      %v5053 = vpack.c.b16 %v5040, %v5039
      %v5054 = vpack.c.b16 %v5042, %v5041
      %v5055 = vpack.c.b16 %v5044, %v5043
      %v5056 = vpack.c.b16 %v5046, %v5045
      %v5057 = vpack.c.b16 %v5048, %v5047
      %v5058 = vpack.c.b16 %v5050, %v5049
      %5067 = vmatprep.subr.bf16.mxu0 0
      %5068 = vmatpush1.bf16.msra.mxu0 %v5051
      %5069 = vmatprep.subr.bf16.mxu0 0
      %5070 = vmatpush1.bf16.msra.mxu0 %v5052
      %5071 = vmatprep.subr.bf16.mxu0 0
      %5072 = vmatpush1.bf16.msra.mxu0 %v5053
      %5073 = vmatprep.subr.bf16.mxu0 0
      %5074 = vmatpush1.bf16.msra.mxu0 %v5054
      %5075 = vmatprep.subr.bf16.mxu0 0
      %5076 = vmatpush1.bf16.msra.mxu0 %v5055
      %5077 = vmatprep.subr.bf16.mxu0 0
      %5078 = vmatpush1.bf16.msra.mxu0 %v5056
      %5079 = vmatprep.subr.bf16.mxu0 0
      %5080 = vmatpush1.bf16.msra.mxu0 %v5057
      %5081 = vmatprep.subr.bf16.mxu0 0
      %5082 = vmatpush1.bf16.msra.mxu0 %v5058
      %5083 = vmatprep.subr.bf16.mxu0 0
      %5084 = vmatpush1.bf16.msra.mxu0 0
      %5085 = vmatprep.subr.bf16.mxu0 0
      %5086 = vmatpush1.bf16.msra.mxu0 0
      %5087 = vmatprep.subr.bf16.mxu0 0
      %5088 = vmatpush1.bf16.msra.mxu0 0
      %5089 = vmatprep.subr.bf16.mxu0 0
      %5090 = vmatpush1.bf16.msra.mxu0 0
      %5091 = vmatprep.subr.bf16.mxu0 0
      %5092 = vmatpush1.bf16.msra.mxu0 0
      %5093 = vmatprep.subr.bf16.mxu0 0
      %5094 = vmatpush1.bf16.msra.mxu0 0
      %5095 = vmatprep.subr.bf16.mxu0 0
      %5096 = vmatpush1.bf16.msra.mxu0 0
      %5097 = vmatprep.subr.bf16.mxu0 0
      %5098 = vmatpush1.bf16.msra.mxu0 0
      %5099 = vmatprep.mubr.bf16.mxu0 0
      %5100 = vmatmul.mubr.bf16.gmra.mrb[0].mxu0 %v626
      %v5101 = vpop.f32.mrb[0].mxu0
      %v5102 = vadd.f32 0.0, %v5101
      %v5103 = vpop.f32.mrb[0].mxu0
      %v5104 = vpop.f32.mrb[0].mxu0
      %v5105 = vadd.f32 0.0, %v5104
      %v5106 = vpop.f32.mrb[0].mxu0
      %5107 = vmatprep.mubr.bf16.mxu0 0
      %5108 = vmatmul.mubr.bf16.gmra.mrb[0].mxu0 %v627
      %v5109 = vpop.f32.mrb[0].mxu0
      %v5110 = vadd.f32 0.0, %v5109
      %v5111 = vpop.f32.mrb[0].mxu0
      %v5112 = vpop.f32.mrb[0].mxu0
      %v5113 = vadd.f32 0.0, %v5112
      %v5114 = vpop.f32.mrb[0].mxu0
      %5115 = vmatprep.mubr.bf16.mxu0 0
      %5116 = vmatmul.mubr.bf16.gmra.mrb[0].mxu0 %v628
      %v5117 = vpop.f32.mrb[0].mxu0
      %v5118 = vadd.f32 0.0, %v5117
      %v5119 = vpop.f32.mrb[0].mxu0
      %v5120 = vpop.f32.mrb[0].mxu0
      %v5121 = vadd.f32 0.0, %v5120
      %v5122 = vpop.f32.mrb[0].mxu0
      %5123 = vmatprep.mubr.bf16.mxu0 0
      %5124 = vmatmul.mubr.bf16.gmra.mrb[0].mxu0 %v629
      %v5125 = vpop.f32.mrb[0].mxu0
      %v5126 = vadd.f32 0.0, %v5125
      %v5127 = vpop.f32.mrb[0].mxu0
      %v5128 = vpop.f32.mrb[0].mxu0
      %v5129 = vadd.f32 0.0, %v5128
      %v5130 = vpop.f32.mrb[0].mxu0
      %5131 = vmatprep.mubr.bf16.mxu0 0
      %5132 = vmatmul.mubr.bf16.gmra.mrb[0].mxu0 %v630
      %v5133 = vpop.f32.mrb[0].mxu0
      %v5134 = vadd.f32 0.0, %v5133
      %v5135 = vpop.f32.mrb[0].mxu0
      %v5136 = vpop.f32.mrb[0].mxu0
      %v5137 = vadd.f32 0.0, %v5136
      %v5138 = vpop.f32.mrb[0].mxu0
      %5139 = vmatprep.mubr.bf16.mxu0 0
      %5140 = vmatmul.mubr.bf16.gmra.mrb[0].mxu0 %v631
      %v5141 = vpop.f32.mrb[0].mxu0
      %v5142 = vadd.f32 0.0, %v5141
      %v5143 = vpop.f32.mrb[0].mxu0
      %v5144 = vpop.f32.mrb[0].mxu0
      %v5145 = vadd.f32 0.0, %v5144
      %v5146 = vpop.f32.mrb[0].mxu0
      %5147 = vmatprep.mubr.bf16.mxu0 0
      %5148 = vmatmul.mubr.bf16.gmra.mrb[0].mxu0 %v632
      %v5149 = vpop.f32.mrb[0].mxu0
      %v5150 = vadd.f32 0.0, %v5149
      %v5151 = vpop.f32.mrb[0].mxu0
      %v5152 = vpop.f32.mrb[0].mxu0
      %v5153 = vadd.f32 0.0, %v5152
      %v5154 = vpop.f32.mrb[0].mxu0
      %5155 = vmatprep.mubr.bf16.mxu0 0
      %5156 = vmatmul.mubr.bf16.gmra.mrb[0].mxu0 %v633
      %v5157 = vpop.f32.mrb[0].mxu0
      %v5158 = vadd.f32 0.0, %v5157
      %v5159 = vpop.f32.mrb[0].mxu0
      %v5160 = vpop.f32.mrb[0].mxu0
      %v5161 = vadd.f32 0.0, %v5160
      %v5162 = vpop.f32.mrb[0].mxu0
      %5163 = vmatprep.mubr.bf16.mxu0 0
      %5164 = vmatmul.mubr.bf16.gmra.mrb[0].mxu0 %v634
      %v5165 = vpop.f32.mrb[0].mxu0
      %v5166 = vadd.f32 0.0, %v5165
      %v5167 = vpop.f32.mrb[0].mxu0
      %v5168 = vpop.f32.mrb[0].mxu0
      %v5169 = vadd.f32 0.0, %v5168
      %v5170 = vpop.f32.mrb[0].mxu0
      %5171 = vmatprep.mubr.bf16.mxu0 0
      %5172 = vmatmul.mubr.bf16.gmra.mrb[0].mxu0 %v635
      %v5173 = vpop.f32.mrb[0].mxu0
      %v5174 = vadd.f32 0.0, %v5173
      %v5175 = vpop.f32.mrb[0].mxu0
      %v5176 = vpop.f32.mrb[0].mxu0
      %v5177 = vadd.f32 0.0, %v5176
      %v5178 = vpop.f32.mrb[0].mxu0
      %5179 = vmatprep.mubr.bf16.mxu0 0
      %5180 = vmatmul.mubr.bf16.gmra.mrb[0].mxu0 %v636
      %v5181 = vpop.f32.mrb[0].mxu0
      %v5182 = vadd.f32 0.0, %v5181
      %v5183 = vpop.f32.mrb[0].mxu0
      %v5184 = vpop.f32.mrb[0].mxu0
      %v5185 = vadd.f32 0.0, %v5184
      %v5186 = vpop.f32.mrb[0].mxu0
      %5187 = vmatprep.mubr.bf16.mxu0 0
      %5188 = vmatmul.mubr.bf16.gmra.mrb[0].mxu0 %v637
      %v5189 = vpop.f32.mrb[0].mxu0
      %v5190 = vadd.f32 0.0, %v5189
      %v5191 = vpop.f32.mrb[0].mxu0
      %v5192 = vpop.f32.mrb[0].mxu0
      %v5193 = vadd.f32 0.0, %v5192
      %v5194 = vpop.f32.mrb[0].mxu0
      %5195 = vmatprep.mubr.bf16.mxu0 0
      %5196 = vmatmul.mubr.bf16.gmra.mrb[0].mxu0 %v638
      %v5197 = vpop.f32.mrb[0].mxu0
      %v5198 = vadd.f32 0.0, %v5197
      %v5199 = vpop.f32.mrb[0].mxu0
      %v5200 = vpop.f32.mrb[0].mxu0
      %v5201 = vadd.f32 0.0, %v5200
      %v5202 = vpop.f32.mrb[0].mxu0
      %5203 = vmatprep.mubr.bf16.mxu0 0
      %5204 = vmatmul.mubr.bf16.gmra.mrb[0].mxu0 %v639
      %v5205 = vpop.f32.mrb[0].mxu0
      %v5206 = vadd.f32 0.0, %v5205
      %v5207 = vpop.f32.mrb[0].mxu0
      %v5208 = vpop.f32.mrb[0].mxu0
      %v5209 = vadd.f32 0.0, %v5208
      %v5210 = vpop.f32.mrb[0].mxu0
      %5211 = vmatprep.mubr.bf16.mxu0 0
      %5212 = vmatmul.mubr.bf16.gmra.mrb[0].mxu0 %v640
      %v5213 = vpop.f32.mrb[0].mxu0
      %v5214 = vadd.f32 0.0, %v5213
      %v5215 = vpop.f32.mrb[0].mxu0
      %v5216 = vpop.f32.mrb[0].mxu0
      %v5217 = vadd.f32 0.0, %v5216
      %v5218 = vpop.f32.mrb[0].mxu0
      %5219 = vmatprep.mubr.bf16.mxu0 0
      %5220 = vmatmul.mubr.bf16.gmra.mrb[0].mxu0 %v641
      %v5221 = vpop.f32.mrb[0].mxu0
      %v5222 = vadd.f32 0.0, %v5221
      %v5223 = vpop.f32.mrb[0].mxu0
      %v5224 = vpop.f32.mrb[0].mxu0
      %v5225 = vadd.f32 0.0, %v5224
      %v5226 = vpop.f32.mrb[0].mxu0
      %5227 = vdwg.mxu0
      %v5228 = vld [vmem:[%s11] sm:$0x1]
      %v5230 = vlaneseq
      %v5231 = vshrl.u32 %v5230, 7
      %v5232 = vsub.s32 0, %v5231
      %v5233 = vrot.slane %v5228, %v5232
      %v5235 = vmul.f32 %v5102, %v5233
      %v5236 = vmul.f32 %v5105, %v5233
      %v5237 = vmul.f32 %v5110, %v5233
      %v5238 = vmul.f32 %v5113, %v5233
      %v5239 = vmul.f32 %v5118, %v5233
      %v5240 = vmul.f32 %v5121, %v5233
      %v5241 = vmul.f32 %v5126, %v5233
      %v5242 = vmul.f32 %v5129, %v5233
      %v5243 = vmul.f32 %v5134, %v5233
      %v5244 = vmul.f32 %v5137, %v5233
      %v5245 = vmul.f32 %v5142, %v5233
      %v5246 = vmul.f32 %v5145, %v5233
      %v5247 = vmul.f32 %v5150, %v5233
      %v5248 = vmul.f32 %v5153, %v5233
      %v5249 = vmul.f32 %v5158, %v5233
      %v5250 = vmul.f32 %v5161, %v5233
      %v5251 = vmul.f32 %v5166, %v5233
      %v5252 = vmul.f32 %v5169, %v5233
      %v5253 = vmul.f32 %v5174, %v5233
      %v5254 = vmul.f32 %v5177, %v5233
      %v5255 = vmul.f32 %v5182, %v5233
      %v5256 = vmul.f32 %v5185, %v5233
      %v5257 = vmul.f32 %v5190, %v5233
      %v5258 = vmul.f32 %v5193, %v5233
      %v5259 = vmul.f32 %v5198, %v5233
      %v5260 = vmul.f32 %v5201, %v5233
      %v5261 = vmul.f32 %v5206, %v5233
      %v5262 = vmul.f32 %v5209, %v5233
      %v5263 = vmul.f32 %v5214, %v5233
      %v5264 = vmul.f32 %v5217, %v5233
      %v5265 = vmul.f32 %v5222, %v5233
      %v5266 = vmul.f32 %v5225, %v5233
      %v5267 = vadd.f32 %v4971, %v5235
      %v5268 = vadd.f32 %v4972, %v5236
      %v5269 = vadd.f32 %v4973, %v5237
      %v5270 = vadd.f32 %v4974, %v5238
      %v5271 = vadd.f32 %v4975, %v5239
      %v5272 = vadd.f32 %v4976, %v5240
      %v5273 = vadd.f32 %v4977, %v5241
      %v5274 = vadd.f32 %v4978, %v5242
      %v5275 = vadd.f32 %v4979, %v5243
      %v5276 = vadd.f32 %v4980, %v5244
      %v5277 = vadd.f32 %v4981, %v5245
      %v5278 = vadd.f32 %v4982, %v5246
      %v5279 = vadd.f32 %v4983, %v5247
      %v5280 = vadd.f32 %v4984, %v5248
      %v5281 = vadd.f32 %v4985, %v5249
      %v5282 = vadd.f32 %v4986, %v5250
      %v5283 = vadd.f32 %v4987, %v5251
      %v5284 = vadd.f32 %v4988, %v5252
      %v5285 = vadd.f32 %v4989, %v5253
      %v5286 = vadd.f32 %v4990, %v5254
      %v5287 = vadd.f32 %v4991, %v5255
      %v5288 = vadd.f32 %v4992, %v5256
      %v5289 = vadd.f32 %v4993, %v5257
      %v5290 = vadd.f32 %v4994, %v5258
      %v5291 = vadd.f32 %v4995, %v5259
      %v5292 = vadd.f32 %v4996, %v5260
      %v5293 = vadd.f32 %v4997, %v5261
      %v5294 = vadd.f32 %v4998, %v5262
      %v5295 = vadd.f32 %v4999, %v5263
      %v5296 = vadd.f32 %v5000, %v5264
      %v5297 = vadd.f32 %v5001, %v5265
      %v5298 = vadd.f32 %v5002, %v5266
      %v5299 = vld [vmem:[%s12] sm:$0x1]
      %v5301 = vlaneseq
      %v5302 = vshrl.u32 %v5301, 7
      %v5303 = vsub.s32 0, %v5302
      %v5304 = vrot.slane %v5299, %v5303
      %v5306 = vadd.f32 %v5267, %v5304
      %v5307 = vadd.f32 %v5268, %v5304
      %v5308 = vadd.f32 %v5269, %v5304
      %v5309 = vadd.f32 %v5270, %v5304
      %v5310 = vadd.f32 %v5271, %v5304
      %v5311 = vadd.f32 %v5272, %v5304
      %v5312 = vadd.f32 %v5273, %v5304
      %v5313 = vadd.f32 %v5274, %v5304
      %v5314 = vadd.f32 %v5275, %v5304
      %v5315 = vadd.f32 %v5276, %v5304
      %v5316 = vadd.f32 %v5277, %v5304
      %v5317 = vadd.f32 %v5278, %v5304
      %v5318 = vadd.f32 %v5279, %v5304
      %v5319 = vadd.f32 %v5280, %v5304
      %v5320 = vadd.f32 %v5281, %v5304
      %v5321 = vadd.f32 %v5282, %v5304
      %v5322 = vadd.f32 %v5283, %v5304
      %v5323 = vadd.f32 %v5284, %v5304
      %v5324 = vadd.f32 %v5285, %v5304
      %v5325 = vadd.f32 %v5286, %v5304
      %v5326 = vadd.f32 %v5287, %v5304
      %v5327 = vadd.f32 %v5288, %v5304
      %v5328 = vadd.f32 %v5289, %v5304
      %v5329 = vadd.f32 %v5290, %v5304
      %v5330 = vadd.f32 %v5291, %v5304
      %v5331 = vadd.f32 %v5292, %v5304
      %v5332 = vadd.f32 %v5293, %v5304
      %v5333 = vadd.f32 %v5294, %v5304
      %v5334 = vadd.f32 %v5295, %v5304
      %v5335 = vadd.f32 %v5296, %v5304
      %v5336 = vadd.f32 %v5297, %v5304
      %v5337 = vadd.f32 %v5298, %v5304
      %5338 = vst [vmem:[%s440] sm:$0xff] %v5306
      %5339 = vst [vmem:[%s440 + $0x8] sm:$0xff] %v5307
      %5340 = vst [vmem:[%s440 + $0x10] sm:$0xff] %v5308
      %5341 = vst [vmem:[%s440 + $0x18] sm:$0xff] %v5309
      %5342 = vst [vmem:[%s440 + $0x20] sm:$0xff] %v5310
      %5343 = vst [vmem:[%s440 + $0x28] sm:$0xff] %v5311
      %5344 = vst [vmem:[%s440 + $0x30] sm:$0xff] %v5312
      %5345 = vst [vmem:[%s440 + $0x38] sm:$0xff] %v5313
      %5346 = vst [vmem:[%s440 + $0x40] sm:$0xff] %v5314
      %5347 = vst [vmem:[%s440 + $0x48] sm:$0xff] %v5315
      %5348 = vst [vmem:[%s440 + $0x50] sm:$0xff] %v5316
      %5349 = vst [vmem:[%s440 + $0x58] sm:$0xff] %v5317
      %5350 = vst [vmem:[%s440 + $0x60] sm:$0xff] %v5318
      %5351 = vst [vmem:[%s440 + $0x68] sm:$0xff] %v5319
      %5352 = vst [vmem:[%s440 + $0x70] sm:$0xff] %v5320
      %5353 = vst [vmem:[%s440 + $0x78] sm:$0xff] %v5321
      %5354 = vst [vmem:[%s440 + $0x80] sm:$0xff] %v5322
      %5355 = vst [vmem:[%s440 + $0x88] sm:$0xff] %v5323
      %5356 = vst [vmem:[%s440 + $0x90] sm:$0xff] %v5324
      %5357 = vst [vmem:[%s440 + $0x98] sm:$0xff] %v5325
      %5358 = vst [vmem:[%s440 + $0xa0] sm:$0xff] %v5326
      %5359 = vst [vmem:[%s440 + $0xa8] sm:$0xff] %v5327
      %5360 = vst [vmem:[%s440 + $0xb0] sm:$0xff] %v5328
      %5361 = vst [vmem:[%s440 + $0xb8] sm:$0xff] %v5329
      %5362 = vst [vmem:[%s440 + $0xc0] sm:$0xff] %v5330
      %5363 = vst [vmem:[%s440 + $0xc8] sm:$0xff] %v5331
      %5364 = vst [vmem:[%s440 + $0xd0] sm:$0xff] %v5332
      %5365 = vst [vmem:[%s440 + $0xd8] sm:$0xff] %v5333
      %5366 = vst [vmem:[%s440 + $0xe0] sm:$0xff] %v5334
      %5367 = vst [vmem:[%s440 + $0xe8] sm:$0xff] %v5335
      %5368 = vst [vmem:[%s440 + $0xf0] sm:$0xff] %v5336
      %5369 = vst [vmem:[%s440 + $0xf8] sm:$0xff] %v5337
      %p5370 = scmp.lt.s32.totalorder %s24, 1
      %s5371 = scalar_select %p5370, %s24, 1
      %s5372 = smul.addr %s5371, 32
      %s5373 = smul.addr %s5372, 8
      %s5374 = scalar_lea.vmem %s13, %s5373
      // Predicated region
      $region73: #{inverted_residual_pallas.1} parent=71 // pred_check
        %p5375 = pneg %p320
      $region74: #{inverted_residual_pallas.1} parent=71 // pred_check_branch
        %5377 = sbr.rel (%p5375) target = $region76
      $region75: #{inverted_residual_pallas.1} parent=71 // pred_region
        _
      $region76: #{inverted_residual_pallas.1} parent=71 // pred_fallthru
        _
    $region72: #{inverted_residual_pallas.1} parent=5 // pred_fallthru
      _
    %p5378 = scmp.le.s32.totalorder 2, %s19
    // Predicated region
    $region77: #{inverted_residual_pallas.1} parent=5 // pred_check
      %p5379 = pneg %p5378
    $region78: #{inverted_residual_pallas.1} parent=5 // pred_check_branch
      %5381 = sbr.rel (%p5379) target = $region80
    $region79: #{inverted_residual_pallas.1} parent=5 // pred_region
      %s5382 = ssub.s32 %s19, 2
      // Predicated region
      $region81: #{inverted_residual_pallas.1} parent=79 // pred_check
        %p5383 = pneg %p326
      $region82: #{inverted_residual_pallas.1} parent=79 // pred_check_branch
        %5385 = sbr.rel (%p5383) target = $region84
      $region83: #{inverted_residual_pallas.1} parent=79 // pred_region
        %p5386 = scmp.lt.s32.totalorder %s25, 1
        %s5387 = scalar_select %p5386, %s25, 1
        %s5388 = smul.addr %s5387, 32
        %s5389 = smul.addr %s5388, 8
        %s5390 = scalar_lea.vmem %s13, %s5389
      $region84: #{inverted_residual_pallas.1} parent=79 // pred_fallthru
        _
    $region80: #{inverted_residual_pallas.1} parent=5 // pred_fallthru
      _
  $region6: #{inverted_residual_pallas.1} parent=0 // loop_footer
    %s23 = sadd.s32 1, %s19
  $region7: #{inverted_residual_pallas.1} parent=0 // loop_footer_branch
    %18 = sbr.rel target = $region3
  $region8: #{inverted_residual_pallas.1} parent=0 // loop_exit
    _

</llo_original>
